<compile_context>
chip_gen: v7x
topology: tpu7x:2x2x1
jax: 0.10.0
libtpu: 0.0.40
codegen_flags: <defaults>
</compile_context>

<pallas_src>
import numpy as np
import jax
import jax.numpy as jnp
from jax.experimental import pallas as pl
from jax.experimental.pallas import tpu as pltpu

# ----------------------------------------------------------------------------
# Model geometry (fixed by the reference: Linear(980, ...) => 28x28x3 input)
# ----------------------------------------------------------------------------
H_IN = W_IN = 28
C_IN, C1, C2 = 3, 10, 20
KS, STRIDE, PAD = 4, 2, 1
OH1 = (H_IN + 2 * PAD - KS) // STRIDE + 1          # 14
OW1 = OH1
OH2 = (OH1 + 2 * PAD - KS) // STRIDE + 1           # 7
OW2 = OH2
M1 = OH1 * OW1                                     # 196 conv1 output positions
M2 = OH2 * OW2                                     # 49  conv2 output positions
K1 = C_IN * KS * KS                                # 48  conv1 im2col K
NOFF = KS * KS                                     # 16  kernel offsets (kh,kw)
NFLAT = C2 * M2                                    # 980
HID = 128
NCLS = 10


def _round_up(x, m):
    return (x + m - 1) // m * m


# ----------------------------------------------------------------------------
# Pallas kernels
# ----------------------------------------------------------------------------
def conv_stack_kernel(p1_ref, w1_ref, b1_ref, s_ref, w2_ref, b2_ref, o_ref):
    """Fused conv1 -> ReLU -> conv2 -> ReLU for ONE image.

    p1_ref : (1, 196, 48) bf16  conv1 im2col patches, K order = ci*16+kh*4+kw
    w1_ref : (48, 10)     bf16  conv1 weight matrix
    b1_ref : (1, 10)      f32
    s_ref  : (16, 49, 196) bf16 constant 0/1 selection (conv2 patch gather + pad)
    w2_ref : (16, 10, 20) f32   conv2 weight per (kh,kw) offset
    b2_ref : (1, 20)      f32
    o_ref  : (1, 49, 20)  bf16  conv2 output, row q = oh2*7+ow2, col = co
    """
    # conv1: one matmul, f32 accumulate, f32 bias+ReLU epilogue.
    y1 = jnp.dot(p1_ref[0], w1_ref[...], preferred_element_type=jnp.float32)
    y1 = jnp.maximum(y1 + b1_ref[...], 0.0)          # (196, 10) f32, stays in VMEM
    y1b = y1.astype(jnp.bfloat16)                     # MXU operand for conv2

    # conv2: for each (kh,kw) offset, gather the shifted/strided window of the
    # conv1 output with a 0/1 selection matmul (zero padding comes for free),
    # then contract over Cin.  Everything stays in VMEM/vregs.
    acc = jnp.zeros((M2, C2), jnp.float32)
    for t in range(NOFF):
        pt = jnp.dot(s_ref[t], y1b, preferred_element_type=jnp.float32)      # (49, 10)
        acc = acc + jnp.dot(pt, w2_ref[t], preferred_element_type=jnp.float32)
    y2 = jnp.maximum(acc + b2_ref[...], 0.0)          # (49, 20) f32
    o_ref[0] = y2.astype(o_ref.dtype)


def mlp_head_kernel(x_ref, w1_ref, b1_ref, w2_ref, b2_ref, o_ref):
    """logits = relu(x @ w1 + b1) @ w2 + b2; the hidden never leaves VMEM."""
    h = jnp.dot(x_ref[...], w1_ref[...], preferred_element_type=jnp.float32)
    h = jnp.maximum(h + b1_ref[...], 0.0)
    out = jnp.dot(h.astype(jnp.bfloat16), w2_ref[...],
                  preferred_element_type=jnp.float32) + b2_ref[...]
    o_ref[...] = out


# ----------------------------------------------------------------------------
# Host/XLA glue
# ----------------------------------------------------------------------------
def im2col_conv1(x_nhwc):
    """(B,28,28,3) -> (B,196,48) patches with PyTorch K order ci*16+kh*4+kw."""
    B = x_nhwc.shape[0]
    xp = jnp.pad(x_nhwc, ((0, 0), (PAD, PAD), (PAD, PAD), (0, 0)))
    cols = []
    for kh in range(KS):
        for kw in range(KS):
            cols.append(xp[:, kh:kh + STRIDE * OH1:STRIDE,
                            kw:kw + STRIDE * OW1:STRIDE, :])
    p = jnp.stack(cols, axis=-1)              # (B,14,14,3,16): (ci, kh*4+kw) order
    return p.reshape(B, M1, K1)


def _conv2_selection_matrices():
    """(16, 49, 196) 0/1 matrices: S[t] @ y1 gathers conv2's (kh,kw)=t window."""
    s = np.zeros((NOFF, M2, M1), np.float32)
    for kh in range(KS):
        for kw in range(KS):
            t = kh * KS + kw
            for oh in range(OH2):
                for ow in range(OW2):
                    ih = STRIDE * oh - PAD + kh
                    iw = STRIDE * ow - PAD + kw
                    if 0 <= ih < OH1 and 0 <= iw < OW1:
                        s[t, oh * OW2 + ow, ih * OW1 + iw] = 1.0
    return s


def init_params(key):
    """PyTorch-layout parameters."""
    ks = jax.random.split(key, 8)
    s = 0.05
    return {
        "conv1_w": jax.random.normal(ks[0], (C1, C_IN, KS, KS), jnp.float32) * s,
        "conv1_b": jax.random.normal(ks[1], (C1,), jnp.float32) * s,
        "conv2_w": jax.random.normal(ks[2], (C2, C1, KS, KS), jnp.float32) * s,
        "conv2_b": jax.random.normal(ks[3], (C2,), jnp.float32) * s,
        # stored as (in, out) = PyTorch weight.T; fc1 rows in (co, oh, ow) flatten order
        "fc1_w": jax.random.normal(ks[4], (NFLAT, HID), jnp.float32) * s,
        "fc1_b": jax.random.normal(ks[5], (HID,), jnp.float32) * s,
        "fc2_w": jax.random.normal(ks[6], (HID, NCLS), jnp.float32) * s,
        "fc2_b": jax.random.normal(ks[7], (NCLS,), jnp.float32) * s,
    }


def pack_params(params):
    """One-time rearrangement of PyTorch-layout weights into kernel-ready form."""
    w1 = params["conv1_w"]                                  # (10, 3, 4, 4)
    w2 = params["conv2_w"]                                  # (20, 10, 4, 4)
    # fc1 rows are in PyTorch flatten order co*49+q; the kernel produces the
    # conv2 output as (49, 20) -> flatten index q*20+co, so permute rows once.
    fc1 = params["fc1_w"].reshape(C2, M2, HID).transpose(1, 0, 2).reshape(NFLAT, HID)
    return {
        "w1m": jnp.asarray(w1.reshape(C1, K1).T, jnp.bfloat16),              # (48, 10)
        "b1": params["conv1_b"].reshape(1, C1).astype(jnp.float32),
        "sel": jnp.asarray(_conv2_selection_matrices(), jnp.bfloat16),       # (16, 49, 196)
        "w2m": jnp.asarray(jnp.transpose(w2, (2, 3, 1, 0)).reshape(NOFF, C1, C2),
                           jnp.float32),                                     # (16, 10, 20)
        "b2": params["conv2_b"].reshape(1, C2).astype(jnp.float32),
        "fc1_w": fc1.astype(jnp.bfloat16),                                   # (980, 128)
        "fc1_b": params["fc1_b"].reshape(1, HID).astype(jnp.float32),
        "fc2_w": params["fc2_w"].astype(jnp.bfloat16),                       # (128, 10)
        "fc2_b": params["fc2_b"].reshape(1, NCLS).astype(jnp.float32),
    }


def _compiler_params():
    return pltpu.CompilerParams(
        dimension_semantics=("parallel",),
        vmem_limit_bytes=32 * 1024 * 1024,
    )


def conv_stack(x_nchw, pp):
    """Fused conv1+ReLU+conv2+ReLU.  x: (B,3,28,28) -> (B,49,20) bf16."""
    B = x_nchw.shape[0]
    x_nhwc = jnp.transpose(x_nchw, (0, 2, 3, 1))
    p1 = im2col_conv1(x_nhwc).astype(jnp.bfloat16)          # (B, 196, 48), natural K

    cost = pl.CostEstimate(
        flops=2 * B * (M1 * K1 * C1 + NOFF * (M2 * M1 * C1 + M2 * C1 * C2)),
        transcendentals=0,
        bytes_accessed=(2 * B * M1 * K1 + 2 * NOFF * M2 * M1 + 4 * NOFF * C1 * C2
                        + 2 * K1 * C1 + 2 * B * M2 * C2 + 4 * (C1 + C2)),
    )

    return pl.pallas_call(
        conv_stack_kernel,
        out_shape=jax.ShapeDtypeStruct((B, M2, C2), jnp.bfloat16),
        grid=(B,),
        in_specs=[
            pl.BlockSpec((1, M1, K1), lambda i: (i, 0, 0)),        # patches (per image)
            pl.BlockSpec((K1, C1), lambda i: (0, 0)),              # conv1 weight (resident)
            pl.BlockSpec((1, C1), lambda i: (0, 0)),               # conv1 bias
            pl.BlockSpec((NOFF, M2, M1), lambda i: (0, 0, 0)),     # selection matrices
            pl.BlockSpec((NOFF, C1, C2), lambda i: (0, 0, 0)),     # conv2 weight
            pl.BlockSpec((1, C2), lambda i: (0, 0)),               # conv2 bias
        ],
        out_specs=pl.BlockSpec((1, M2, C2), lambda i: (i, 0, 0)),
        compiler_params=_compiler_params(),
        cost_estimate=cost,
    )(p1, pp["w1m"], pp["b1"], pp["sel"], pp["w2m"], pp["b2"])


def mlp_head(y2, pp):
    """(B,49,20) -> logits (B,10).  Flatten order already folded into fc1_w."""
    B = y2.shape[0]
    x_flat = y2.reshape(B, NFLAT)                            # q*20+co order, bf16

    # Row tile: >=2 grid steps for large batches (v7x megacore); natural K/N.
    TB = max(8, min(256, _round_up((B + 1) // 2, 8)))
    Bp = _round_up(B, TB)
    if Bp != B:
        x_flat = jnp.pad(x_flat, ((0, Bp - B), (0, 0)))

    cost = pl.CostEstimate(
        flops=2 * Bp * (NFLAT * HID + HID * NCLS),
        transcendentals=0,
        bytes_accessed=(2 * Bp * NFLAT + 2 * NFLAT * HID + 4 * HID
                        + 2 * HID * NCLS + 4 * NCLS + 4 * Bp * NCLS),
    )

    out = pl.pallas_call(
        mlp_head_kernel,
        out_shape=jax.ShapeDtypeStruct((Bp, NCLS), jnp.float32),
        grid=(Bp // TB,),
        in_specs=[
            pl.BlockSpec((TB, NFLAT), lambda i: (i, 0)),
            pl.BlockSpec((NFLAT, HID), lambda i: (0, 0)),
            pl.BlockSpec((1, HID), lambda i: (0, 0)),
            pl.BlockSpec((HID, NCLS), lambda i: (0, 0)),
            pl.BlockSpec((1, NCLS), lambda i: (0, 0)),
        ],
        out_specs=pl.BlockSpec((TB, NCLS), lambda i: (i, 0)),
        compiler_params=_compiler_params(),
        cost_estimate=cost,
    )(x_flat, pp["fc1_w"], pp["fc1_b"], pp["fc2_w"], pp["fc2_b"])
    return out[:B]


def clf_img_forward(packed, x):
    """x: (B, 3, 28, 28) f32 (PyTorch-like NCHW) -> logits (B, 10) f32."""
    y2 = conv_stack(x, packed)        # conv1+conv2 fused; only (B,49,20) hits HBM
    return mlp_head(y2, packed)       # fc1+ReLU+fc2 fused


if __name__ == "__main__":
    key = jax.random.PRNGKey(0)
    k_param, k_x = jax.random.split(key)
    params = init_params(k_param)
    packed = pack_params(params)      # one-time weight repack (flatten order, bf16)
    # Linear(980, ...) implies 28x28 spatial input with 3 channels.
    x = jax.random.normal(k_x, (2, C_IN, H_IN, W_IN), jnp.float32)

    logits = jax.jit(clf_img_forward)(packed, x)
    logits = jax.block_until_ready(logits)
    assert logits.shape == (2, NCLS) and logits.dtype == jnp.float32
    assert bool(jnp.all(jnp.isfinite(logits)))
    print("KERNEL_OK")
</pallas_src>

<mosaic_0001>
module attributes {stable_mosaic.version = 11 : i64} {
  func.func @conv_stack_kernel(%arg0: i32, %arg1: memref<1x196x48xbf16, #tpu.memory_space<vmem>>, %arg2: memref<48x10xbf16, #tpu.memory_space<vmem>>, %arg3: memref<1x10xf32, #tpu.memory_space<vmem>>, %arg4: memref<16x49x196xbf16, #tpu.memory_space<vmem>>, %arg5: memref<16x10x20xf32, #tpu.memory_space<vmem>>, %arg6: memref<1x20xf32, #tpu.memory_space<vmem>>, %arg7: memref<1x49x20xbf16, #tpu.memory_space<vmem>>) attributes {dimension_semantics = [#tpu.dimension_semantics<parallel>], iteration_bounds = array<i64: 2>, scalar_prefetch = 0 : i64, scratch_operands = 0 : i64, tpu.core_type = #tpu.core_type<tc>, window_params = [{transform_indices = @transform_0, window_bounds = array<i64: 1, 196, 48>}, {pipeline_mode = #tpu.pipeline_mode<synchronous>, transform_indices = @transform_1, window_bounds = array<i64: 48, 10>}, {pipeline_mode = #tpu.pipeline_mode<synchronous>, transform_indices = @transform_2, window_bounds = array<i64: 1, 10>}, {pipeline_mode = #tpu.pipeline_mode<synchronous>, transform_indices = @transform_3, window_bounds = array<i64: 16, 49, 196>}, {pipeline_mode = #tpu.pipeline_mode<synchronous>, transform_indices = @transform_4, window_bounds = array<i64: 16, 10, 20>}, {pipeline_mode = #tpu.pipeline_mode<synchronous>, transform_indices = @transform_5, window_bounds = array<i64: 1, 20>}, {transform_indices = @transform_6, window_bounds = array<i64: 1, 49, 20>}]} {
    %c0 = arith.constant 0 : index
    %c0_0 = arith.constant 0 : index
    %c0_1 = arith.constant 0 : index
    %0 = vector.load %arg1[%c0, %c0_0, %c0_1] : memref<1x196x48xbf16, #tpu.memory_space<vmem>>, vector<1x196x48xbf16>
    %1 = vector.shape_cast %0 : vector<1x196x48xbf16> to vector<196x48xbf16>
    %c0_2 = arith.constant 0 : index
    %c0_3 = arith.constant 0 : index
    %2 = vector.load %arg2[%c0_2, %c0_3] : memref<48x10xbf16, #tpu.memory_space<vmem>>, vector<48x10xbf16>
    %cst = arith.constant dense<0.000000e+00> : vector<196x10xf32>
    %3 = tpu.matmul %1, %2, %cst {dimension_numbers = #tpu.dot_dimension_numbers<[1], [0], [0], [1], [0, 0, 1, 1], [], []>} : vector<196x48xbf16>, vector<48x10xbf16>, vector<196x10xf32> -> vector<196x10xf32>
    %c0_4 = arith.constant 0 : index
    %c0_5 = arith.constant 0 : index
    %4 = vector.load %arg3[%c0_4, %c0_5] : memref<1x10xf32, #tpu.memory_space<vmem>>, vector<1x10xf32>
    %5 = vector.broadcast %4 : vector<1x10xf32> to vector<196x10xf32>
    %6 = arith.addf %3, %5 : vector<196x10xf32>
    %cst_6 = arith.constant 0.000000e+00 : f32
    %7 = vector.broadcast %cst_6 : f32 to vector<196x10xf32>
    %8 = arith.maximumf %6, %7 : vector<196x10xf32>
    %9 = arith.truncf %8 : vector<196x10xf32> to vector<196x10xbf16>
    %cst_7 = arith.constant 0.000000e+00 : f32
    %10 = vector.broadcast %cst_7 : f32 to vector<49x20xf32>
    %c0_8 = arith.constant 0 : index
    %c0_9 = arith.constant 0 : index
    %c0_10 = arith.constant 0 : index
    %11 = vector.load %arg4[%c0_8, %c0_9, %c0_10] : memref<16x49x196xbf16, #tpu.memory_space<vmem>>, vector<1x49x196xbf16>
    %12 = vector.shape_cast %11 : vector<1x49x196xbf16> to vector<49x196xbf16>
    %cst_11 = arith.constant dense<0.000000e+00> : vector<49x10xf32>
    %13 = tpu.matmul %12, %9, %cst_11 {dimension_numbers = #tpu.dot_dimension_numbers<[1], [0], [0], [1], [0, 0, 1, 1], [], []>} : vector<49x196xbf16>, vector<196x10xbf16>, vector<49x10xf32> -> vector<49x10xf32>
    %c0_12 = arith.constant 0 : index
    %c0_13 = arith.constant 0 : index
    %c0_14 = arith.constant 0 : index
    %14 = vector.load %arg5[%c0_12, %c0_13, %c0_14] : memref<16x10x20xf32, #tpu.memory_space<vmem>>, vector<1x10x20xf32>
    %15 = vector.shape_cast %14 : vector<1x10x20xf32> to vector<10x20xf32>
    %cst_15 = arith.constant dense<0.000000e+00> : vector<49x20xf32>
    %16 = tpu.matmul %13, %15, %cst_15 {dimension_numbers = #tpu.dot_dimension_numbers<[1], [0], [0], [1], [0, 0, 1, 1], [], []>} : vector<49x10xf32>, vector<10x20xf32>, vector<49x20xf32> -> vector<49x20xf32>
    %17 = arith.addf %10, %16 : vector<49x20xf32>
    %c1 = arith.constant 1 : index
    %c0_16 = arith.constant 0 : index
    %c0_17 = arith.constant 0 : index
    %18 = vector.load %arg4[%c1, %c0_16, %c0_17] : memref<16x49x196xbf16, #tpu.memory_space<vmem>>, vector<1x49x196xbf16>
    %19 = vector.shape_cast %18 : vector<1x49x196xbf16> to vector<49x196xbf16>
    %cst_18 = arith.constant dense<0.000000e+00> : vector<49x10xf32>
    %20 = tpu.matmul %19, %9, %cst_18 {dimension_numbers = #tpu.dot_dimension_numbers<[1], [0], [0], [1], [0, 0, 1, 1], [], []>} : vector<49x196xbf16>, vector<196x10xbf16>, vector<49x10xf32> -> vector<49x10xf32>
    %c1_19 = arith.constant 1 : index
    %c0_20 = arith.constant 0 : index
    %c0_21 = arith.constant 0 : index
    %21 = vector.load %arg5[%c1_19, %c0_20, %c0_21] : memref<16x10x20xf32, #tpu.memory_space<vmem>>, vector<1x10x20xf32>
    %22 = vector.shape_cast %21 : vector<1x10x20xf32> to vector<10x20xf32>
    %cst_22 = arith.constant dense<0.000000e+00> : vector<49x20xf32>
    %23 = tpu.matmul %20, %22, %cst_22 {dimension_numbers = #tpu.dot_dimension_numbers<[1], [0], [0], [1], [0, 0, 1, 1], [], []>} : vector<49x10xf32>, vector<10x20xf32>, vector<49x20xf32> -> vector<49x20xf32>
    %24 = arith.addf %17, %23 : vector<49x20xf32>
    %c2 = arith.constant 2 : index
    %c0_23 = arith.constant 0 : index
    %c0_24 = arith.constant 0 : index
    %25 = vector.load %arg4[%c2, %c0_23, %c0_24] : memref<16x49x196xbf16, #tpu.memory_space<vmem>>, vector<1x49x196xbf16>
    %26 = vector.shape_cast %25 : vector<1x49x196xbf16> to vector<49x196xbf16>
    %cst_25 = arith.constant dense<0.000000e+00> : vector<49x10xf32>
    %27 = tpu.matmul %26, %9, %cst_25 {dimension_numbers = #tpu.dot_dimension_numbers<[1], [0], [0], [1], [0, 0, 1, 1], [], []>} : vector<49x196xbf16>, vector<196x10xbf16>, vector<49x10xf32> -> vector<49x10xf32>
    %c2_26 = arith.constant 2 : index
    %c0_27 = arith.constant 0 : index
    %c0_28 = arith.constant 0 : index
    %28 = vector.load %arg5[%c2_26, %c0_27, %c0_28] : memref<16x10x20xf32, #tpu.memory_space<vmem>>, vector<1x10x20xf32>
    %29 = vector.shape_cast %28 : vector<1x10x20xf32> to vector<10x20xf32>
    %cst_29 = arith.constant dense<0.000000e+00> : vector<49x20xf32>
    %30 = tpu.matmul %27, %29, %cst_29 {dimension_numbers = #tpu.dot_dimension_numbers<[1], [0], [0], [1], [0, 0, 1, 1], [], []>} : vector<49x10xf32>, vector<10x20xf32>, vector<49x20xf32> -> vector<49x20xf32>
    %31 = arith.addf %24, %30 : vector<49x20xf32>
    %c3 = arith.constant 3 : index
    %c0_30 = arith.constant 0 : index
    %c0_31 = arith.constant 0 : index
    %32 = vector.load %arg4[%c3, %c0_30, %c0_31] : memref<16x49x196xbf16, #tpu.memory_space<vmem>>, vector<1x49x196xbf16>
    %33 = vector.shape_cast %32 : vector<1x49x196xbf16> to vector<49x196xbf16>
    %cst_32 = arith.constant dense<0.000000e+00> : vector<49x10xf32>
    %34 = tpu.matmul %33, %9, %cst_32 {dimension_numbers = #tpu.dot_dimension_numbers<[1], [0], [0], [1], [0, 0, 1, 1], [], []>} : vector<49x196xbf16>, vector<196x10xbf16>, vector<49x10xf32> -> vector<49x10xf32>
    %c3_33 = arith.constant 3 : index
    %c0_34 = arith.constant 0 : index
    %c0_35 = arith.constant 0 : index
    %35 = vector.load %arg5[%c3_33, %c0_34, %c0_35] : memref<16x10x20xf32, #tpu.memory_space<vmem>>, vector<1x10x20xf32>
    %36 = vector.shape_cast %35 : vector<1x10x20xf32> to vector<10x20xf32>
    %cst_36 = arith.constant dense<0.000000e+00> : vector<49x20xf32>
    %37 = tpu.matmul %34, %36, %cst_36 {dimension_numbers = #tpu.dot_dimension_numbers<[1], [0], [0], [1], [0, 0, 1, 1], [], []>} : vector<49x10xf32>, vector<10x20xf32>, vector<49x20xf32> -> vector<49x20xf32>
    %38 = arith.addf %31, %37 : vector<49x20xf32>
    %c4 = arith.constant 4 : index
    %c0_37 = arith.constant 0 : index
    %c0_38 = arith.constant 0 : index
    %39 = vector.load %arg4[%c4, %c0_37, %c0_38] : memref<16x49x196xbf16, #tpu.memory_space<vmem>>, vector<1x49x196xbf16>
    %40 = vector.shape_cast %39 : vector<1x49x196xbf16> to vector<49x196xbf16>
    %cst_39 = arith.constant dense<0.000000e+00> : vector<49x10xf32>
    %41 = tpu.matmul %40, %9, %cst_39 {dimension_numbers = #tpu.dot_dimension_numbers<[1], [0], [0], [1], [0, 0, 1, 1], [], []>} : vector<49x196xbf16>, vector<196x10xbf16>, vector<49x10xf32> -> vector<49x10xf32>
    %c4_40 = arith.constant 4 : index
    %c0_41 = arith.constant 0 : index
    %c0_42 = arith.constant 0 : index
    %42 = vector.load %arg5[%c4_40, %c0_41, %c0_42] : memref<16x10x20xf32, #tpu.memory_space<vmem>>, vector<1x10x20xf32>
    %43 = vector.shape_cast %42 : vector<1x10x20xf32> to vector<10x20xf32>
    %cst_43 = arith.constant dense<0.000000e+00> : vector<49x20xf32>
    %44 = tpu.matmul %41, %43, %cst_43 {dimension_numbers = #tpu.dot_dimension_numbers<[1], [0], [0], [1], [0, 0, 1, 1], [], []>} : vector<49x10xf32>, vector<10x20xf32>, vector<49x20xf32> -> vector<49x20xf32>
    %45 = arith.addf %38, %44 : vector<49x20xf32>
    %c5 = arith.constant 5 : index
    %c0_44 = arith.constant 0 : index
    %c0_45 = arith.constant 0 : index
    %46 = vector.load %arg4[%c5, %c0_44, %c0_45] : memref<16x49x196xbf16, #tpu.memory_space<vmem>>, vector<1x49x196xbf16>
    %47 = vector.shape_cast %46 : vector<1x49x196xbf16> to vector<49x196xbf16>
    %cst_46 = arith.constant dense<0.000000e+00> : vector<49x10xf32>
    %48 = tpu.matmul %47, %9, %cst_46 {dimension_numbers = #tpu.dot_dimension_numbers<[1], [0], [0], [1], [0, 0, 1, 1], [], []>} : vector<49x196xbf16>, vector<196x10xbf16>, vector<49x10xf32> -> vector<49x10xf32>
    %c5_47 = arith.constant 5 : index
    %c0_48 = arith.constant 0 : index
    %c0_49 = arith.constant 0 : index
    %49 = vector.load %arg5[%c5_47, %c0_48, %c0_49] : memref<16x10x20xf32, #tpu.memory_space<vmem>>, vector<1x10x20xf32>
    %50 = vector.shape_cast %49 : vector<1x10x20xf32> to vector<10x20xf32>
    %cst_50 = arith.constant dense<0.000000e+00> : vector<49x20xf32>
    %51 = tpu.matmul %48, %50, %cst_50 {dimension_numbers = #tpu.dot_dimension_numbers<[1], [0], [0], [1], [0, 0, 1, 1], [], []>} : vector<49x10xf32>, vector<10x20xf32>, vector<49x20xf32> -> vector<49x20xf32>
    %52 = arith.addf %45, %51 : vector<49x20xf32>
    %c6 = arith.constant 6 : index
    %c0_51 = arith.constant 0 : index
    %c0_52 = arith.constant 0 : index
    %53 = vector.load %arg4[%c6, %c0_51, %c0_52] : memref<16x49x196xbf16, #tpu.memory_space<vmem>>, vector<1x49x196xbf16>
    %54 = vector.shape_cast %53 : vector<1x49x196xbf16> to vector<49x196xbf16>
    %cst_53 = arith.constant dense<0.000000e+00> : vector<49x10xf32>
    %55 = tpu.matmul %54, %9, %cst_53 {dimension_numbers = #tpu.dot_dimension_numbers<[1], [0], [0], [1], [0, 0, 1, 1], [], []>} : vector<49x196xbf16>, vector<196x10xbf16>, vector<49x10xf32> -> vector<49x10xf32>
    %c6_54 = arith.constant 6 : index
    %c0_55 = arith.constant 0 : index
    %c0_56 = arith.constant 0 : index
    %56 = vector.load %arg5[%c6_54, %c0_55, %c0_56] : memref<16x10x20xf32, #tpu.memory_space<vmem>>, vector<1x10x20xf32>
    %57 = vector.shape_cast %56 : vector<1x10x20xf32> to vector<10x20xf32>
    %cst_57 = arith.constant dense<0.000000e+00> : vector<49x20xf32>
    %58 = tpu.matmul %55, %57, %cst_57 {dimension_numbers = #tpu.dot_dimension_numbers<[1], [0], [0], [1], [0, 0, 1, 1], [], []>} : vector<49x10xf32>, vector<10x20xf32>, vector<49x20xf32> -> vector<49x20xf32>
    %59 = arith.addf %52, %58 : vector<49x20xf32>
    %c7 = arith.constant 7 : index
    %c0_58 = arith.constant 0 : index
    %c0_59 = arith.constant 0 : index
    %60 = vector.load %arg4[%c7, %c0_58, %c0_59] : memref<16x49x196xbf16, #tpu.memory_space<vmem>>, vector<1x49x196xbf16>
    %61 = vector.shape_cast %60 : vector<1x49x196xbf16> to vector<49x196xbf16>
    %cst_60 = arith.constant dense<0.000000e+00> : vector<49x10xf32>
    %62 = tpu.matmul %61, %9, %cst_60 {dimension_numbers = #tpu.dot_dimension_numbers<[1], [0], [0], [1], [0, 0, 1, 1], [], []>} : vector<49x196xbf16>, vector<196x10xbf16>, vector<49x10xf32> -> vector<49x10xf32>
    %c7_61 = arith.constant 7 : index
    %c0_62 = arith.constant 0 : index
    %c0_63 = arith.constant 0 : index
    %63 = vector.load %arg5[%c7_61, %c0_62, %c0_63] : memref<16x10x20xf32, #tpu.memory_space<vmem>>, vector<1x10x20xf32>
    %64 = vector.shape_cast %63 : vector<1x10x20xf32> to vector<10x20xf32>
    %cst_64 = arith.constant dense<0.000000e+00> : vector<49x20xf32>
    %65 = tpu.matmul %62, %64, %cst_64 {dimension_numbers = #tpu.dot_dimension_numbers<[1], [0], [0], [1], [0, 0, 1, 1], [], []>} : vector<49x10xf32>, vector<10x20xf32>, vector<49x20xf32> -> vector<49x20xf32>
    %66 = arith.addf %59, %65 : vector<49x20xf32>
    %c8 = arith.constant 8 : index
    %c0_65 = arith.constant 0 : index
    %c0_66 = arith.constant 0 : index
    %67 = vector.load %arg4[%c8, %c0_65, %c0_66] : memref<16x49x196xbf16, #tpu.memory_space<vmem>>, vector<1x49x196xbf16>
    %68 = vector.shape_cast %67 : vector<1x49x196xbf16> to vector<49x196xbf16>
    %cst_67 = arith.constant dense<0.000000e+00> : vector<49x10xf32>
    %69 = tpu.matmul %68, %9, %cst_67 {dimension_numbers = #tpu.dot_dimension_numbers<[1], [0], [0], [1], [0, 0, 1, 1], [], []>} : vector<49x196xbf16>, vector<196x10xbf16>, vector<49x10xf32> -> vector<49x10xf32>
    %c8_68 = arith.constant 8 : index
    %c0_69 = arith.constant 0 : index
    %c0_70 = arith.constant 0 : index
    %70 = vector.load %arg5[%c8_68, %c0_69, %c0_70] : memref<16x10x20xf32, #tpu.memory_space<vmem>>, vector<1x10x20xf32>
    %71 = vector.shape_cast %70 : vector<1x10x20xf32> to vector<10x20xf32>
    %cst_71 = arith.constant dense<0.000000e+00> : vector<49x20xf32>
    %72 = tpu.matmul %69, %71, %cst_71 {dimension_numbers = #tpu.dot_dimension_numbers<[1], [0], [0], [1], [0, 0, 1, 1], [], []>} : vector<49x10xf32>, vector<10x20xf32>, vector<49x20xf32> -> vector<49x20xf32>
    %73 = arith.addf %66, %72 : vector<49x20xf32>
    %c9 = arith.constant 9 : index
    %c0_72 = arith.constant 0 : index
    %c0_73 = arith.constant 0 : index
    %74 = vector.load %arg4[%c9, %c0_72, %c0_73] : memref<16x49x196xbf16, #tpu.memory_space<vmem>>, vector<1x49x196xbf16>
    %75 = vector.shape_cast %74 : vector<1x49x196xbf16> to vector<49x196xbf16>
    %cst_74 = arith.constant dense<0.000000e+00> : vector<49x10xf32>
    %76 = tpu.matmul %75, %9, %cst_74 {dimension_numbers = #tpu.dot_dimension_numbers<[1], [0], [0], [1], [0, 0, 1, 1], [], []>} : vector<49x196xbf16>, vector<196x10xbf16>, vector<49x10xf32> -> vector<49x10xf32>
    %c9_75 = arith.constant 9 : index
    %c0_76 = arith.constant 0 : index
    %c0_77 = arith.constant 0 : index
    %77 = vector.load %arg5[%c9_75, %c0_76, %c0_77] : memref<16x10x20xf32, #tpu.memory_space<vmem>>, vector<1x10x20xf32>
    %78 = vector.shape_cast %77 : vector<1x10x20xf32> to vector<10x20xf32>
    %cst_78 = arith.constant dense<0.000000e+00> : vector<49x20xf32>
    %79 = tpu.matmul %76, %78, %cst_78 {dimension_numbers = #tpu.dot_dimension_numbers<[1], [0], [0], [1], [0, 0, 1, 1], [], []>} : vector<49x10xf32>, vector<10x20xf32>, vector<49x20xf32> -> vector<49x20xf32>
    %80 = arith.addf %73, %79 : vector<49x20xf32>
    %c10 = arith.constant 10 : index
    %c0_79 = arith.constant 0 : index
    %c0_80 = arith.constant 0 : index
    %81 = vector.load %arg4[%c10, %c0_79, %c0_80] : memref<16x49x196xbf16, #tpu.memory_space<vmem>>, vector<1x49x196xbf16>
    %82 = vector.shape_cast %81 : vector<1x49x196xbf16> to vector<49x196xbf16>
    %cst_81 = arith.constant dense<0.000000e+00> : vector<49x10xf32>
    %83 = tpu.matmul %82, %9, %cst_81 {dimension_numbers = #tpu.dot_dimension_numbers<[1], [0], [0], [1], [0, 0, 1, 1], [], []>} : vector<49x196xbf16>, vector<196x10xbf16>, vector<49x10xf32> -> vector<49x10xf32>
    %c10_82 = arith.constant 10 : index
    %c0_83 = arith.constant 0 : index
    %c0_84 = arith.constant 0 : index
    %84 = vector.load %arg5[%c10_82, %c0_83, %c0_84] : memref<16x10x20xf32, #tpu.memory_space<vmem>>, vector<1x10x20xf32>
    %85 = vector.shape_cast %84 : vector<1x10x20xf32> to vector<10x20xf32>
    %cst_85 = arith.constant dense<0.000000e+00> : vector<49x20xf32>
    %86 = tpu.matmul %83, %85, %cst_85 {dimension_numbers = #tpu.dot_dimension_numbers<[1], [0], [0], [1], [0, 0, 1, 1], [], []>} : vector<49x10xf32>, vector<10x20xf32>, vector<49x20xf32> -> vector<49x20xf32>
    %87 = arith.addf %80, %86 : vector<49x20xf32>
    %c11 = arith.constant 11 : index
    %c0_86 = arith.constant 0 : index
    %c0_87 = arith.constant 0 : index
    %88 = vector.load %arg4[%c11, %c0_86, %c0_87] : memref<16x49x196xbf16, #tpu.memory_space<vmem>>, vector<1x49x196xbf16>
    %89 = vector.shape_cast %88 : vector<1x49x196xbf16> to vector<49x196xbf16>
    %cst_88 = arith.constant dense<0.000000e+00> : vector<49x10xf32>
    %90 = tpu.matmul %89, %9, %cst_88 {dimension_numbers = #tpu.dot_dimension_numbers<[1], [0], [0], [1], [0, 0, 1, 1], [], []>} : vector<49x196xbf16>, vector<196x10xbf16>, vector<49x10xf32> -> vector<49x10xf32>
    %c11_89 = arith.constant 11 : index
    %c0_90 = arith.constant 0 : index
    %c0_91 = arith.constant 0 : index
    %91 = vector.load %arg5[%c11_89, %c0_90, %c0_91] : memref<16x10x20xf32, #tpu.memory_space<vmem>>, vector<1x10x20xf32>
    %92 = vector.shape_cast %91 : vector<1x10x20xf32> to vector<10x20xf32>
    %cst_92 = arith.constant dense<0.000000e+00> : vector<49x20xf32>
    %93 = tpu.matmul %90, %92, %cst_92 {dimension_numbers = #tpu.dot_dimension_numbers<[1], [0], [0], [1], [0, 0, 1, 1], [], []>} : vector<49x10xf32>, vector<10x20xf32>, vector<49x20xf32> -> vector<49x20xf32>
    %94 = arith.addf %87, %93 : vector<49x20xf32>
    %c12 = arith.constant 12 : index
    %c0_93 = arith.constant 0 : index
    %c0_94 = arith.constant 0 : index
    %95 = vector.load %arg4[%c12, %c0_93, %c0_94] : memref<16x49x196xbf16, #tpu.memory_space<vmem>>, vector<1x49x196xbf16>
    %96 = vector.shape_cast %95 : vector<1x49x196xbf16> to vector<49x196xbf16>
    %cst_95 = arith.constant dense<0.000000e+00> : vector<49x10xf32>
    %97 = tpu.matmul %96, %9, %cst_95 {dimension_numbers = #tpu.dot_dimension_numbers<[1], [0], [0], [1], [0, 0, 1, 1], [], []>} : vector<49x196xbf16>, vector<196x10xbf16>, vector<49x10xf32> -> vector<49x10xf32>
    %c12_96 = arith.constant 12 : index
    %c0_97 = arith.constant 0 : index
    %c0_98 = arith.constant 0 : index
    %98 = vector.load %arg5[%c12_96, %c0_97, %c0_98] : memref<16x10x20xf32, #tpu.memory_space<vmem>>, vector<1x10x20xf32>
    %99 = vector.shape_cast %98 : vector<1x10x20xf32> to vector<10x20xf32>
    %cst_99 = arith.constant dense<0.000000e+00> : vector<49x20xf32>
    %100 = tpu.matmul %97, %99, %cst_99 {dimension_numbers = #tpu.dot_dimension_numbers<[1], [0], [0], [1], [0, 0, 1, 1], [], []>} : vector<49x10xf32>, vector<10x20xf32>, vector<49x20xf32> -> vector<49x20xf32>
    %101 = arith.addf %94, %100 : vector<49x20xf32>
    %c13 = arith.constant 13 : index
    %c0_100 = arith.constant 0 : index
    %c0_101 = arith.constant 0 : index
    %102 = vector.load %arg4[%c13, %c0_100, %c0_101] : memref<16x49x196xbf16, #tpu.memory_space<vmem>>, vector<1x49x196xbf16>
    %103 = vector.shape_cast %102 : vector<1x49x196xbf16> to vector<49x196xbf16>
    %cst_102 = arith.constant dense<0.000000e+00> : vector<49x10xf32>
    %104 = tpu.matmul %103, %9, %cst_102 {dimension_numbers = #tpu.dot_dimension_numbers<[1], [0], [0], [1], [0, 0, 1, 1], [], []>} : vector<49x196xbf16>, vector<196x10xbf16>, vector<49x10xf32> -> vector<49x10xf32>
    %c13_103 = arith.constant 13 : index
    %c0_104 = arith.constant 0 : index
    %c0_105 = arith.constant 0 : index
    %105 = vector.load %arg5[%c13_103, %c0_104, %c0_105] : memref<16x10x20xf32, #tpu.memory_space<vmem>>, vector<1x10x20xf32>
    %106 = vector.shape_cast %105 : vector<1x10x20xf32> to vector<10x20xf32>
    %cst_106 = arith.constant dense<0.000000e+00> : vector<49x20xf32>
    %107 = tpu.matmul %104, %106, %cst_106 {dimension_numbers = #tpu.dot_dimension_numbers<[1], [0], [0], [1], [0, 0, 1, 1], [], []>} : vector<49x10xf32>, vector<10x20xf32>, vector<49x20xf32> -> vector<49x20xf32>
    %108 = arith.addf %101, %107 : vector<49x20xf32>
    %c14 = arith.constant 14 : index
    %c0_107 = arith.constant 0 : index
    %c0_108 = arith.constant 0 : index
    %109 = vector.load %arg4[%c14, %c0_107, %c0_108] : memref<16x49x196xbf16, #tpu.memory_space<vmem>>, vector<1x49x196xbf16>
    %110 = vector.shape_cast %109 : vector<1x49x196xbf16> to vector<49x196xbf16>
    %cst_109 = arith.constant dense<0.000000e+00> : vector<49x10xf32>
    %111 = tpu.matmul %110, %9, %cst_109 {dimension_numbers = #tpu.dot_dimension_numbers<[1], [0], [0], [1], [0, 0, 1, 1], [], []>} : vector<49x196xbf16>, vector<196x10xbf16>, vector<49x10xf32> -> vector<49x10xf32>
    %c14_110 = arith.constant 14 : index
    %c0_111 = arith.constant 0 : index
    %c0_112 = arith.constant 0 : index
    %112 = vector.load %arg5[%c14_110, %c0_111, %c0_112] : memref<16x10x20xf32, #tpu.memory_space<vmem>>, vector<1x10x20xf32>
    %113 = vector.shape_cast %112 : vector<1x10x20xf32> to vector<10x20xf32>
    %cst_113 = arith.constant dense<0.000000e+00> : vector<49x20xf32>
    %114 = tpu.matmul %111, %113, %cst_113 {dimension_numbers = #tpu.dot_dimension_numbers<[1], [0], [0], [1], [0, 0, 1, 1], [], []>} : vector<49x10xf32>, vector<10x20xf32>, vector<49x20xf32> -> vector<49x20xf32>
    %115 = arith.addf %108, %114 : vector<49x20xf32>
    %c15 = arith.constant 15 : index
    %c0_114 = arith.constant 0 : index
    %c0_115 = arith.constant 0 : index
    %116 = vector.load %arg4[%c15, %c0_114, %c0_115] : memref<16x49x196xbf16, #tpu.memory_space<vmem>>, vector<1x49x196xbf16>
    %117 = vector.shape_cast %116 : vector<1x49x196xbf16> to vector<49x196xbf16>
    %cst_116 = arith.constant dense<0.000000e+00> : vector<49x10xf32>
    %118 = tpu.matmul %117, %9, %cst_116 {dimension_numbers = #tpu.dot_dimension_numbers<[1], [0], [0], [1], [0, 0, 1, 1], [], []>} : vector<49x196xbf16>, vector<196x10xbf16>, vector<49x10xf32> -> vector<49x10xf32>
    %c15_117 = arith.constant 15 : index
    %c0_118 = arith.constant 0 : index
    %c0_119 = arith.constant 0 : index
    %119 = vector.load %arg5[%c15_117, %c0_118, %c0_119] : memref<16x10x20xf32, #tpu.memory_space<vmem>>, vector<1x10x20xf32>
    %120 = vector.shape_cast %119 : vector<1x10x20xf32> to vector<10x20xf32>
    %cst_120 = arith.constant dense<0.000000e+00> : vector<49x20xf32>
    %121 = tpu.matmul %118, %120, %cst_120 {dimension_numbers = #tpu.dot_dimension_numbers<[1], [0], [0], [1], [0, 0, 1, 1], [], []>} : vector<49x10xf32>, vector<10x20xf32>, vector<49x20xf32> -> vector<49x20xf32>
    %122 = arith.addf %115, %121 : vector<49x20xf32>
    %c0_121 = arith.constant 0 : index
    %c0_122 = arith.constant 0 : index
    %123 = vector.load %arg6[%c0_121, %c0_122] : memref<1x20xf32, #tpu.memory_space<vmem>>, vector<1x20xf32>
    %124 = vector.broadcast %123 : vector<1x20xf32> to vector<49x20xf32>
    %125 = arith.addf %122, %124 : vector<49x20xf32>
    %cst_123 = arith.constant 0.000000e+00 : f32
    %126 = vector.broadcast %cst_123 : f32 to vector<49x20xf32>
    %127 = arith.maximumf %125, %126 : vector<49x20xf32>
    %128 = arith.truncf %127 : vector<49x20xf32> to vector<49x20xbf16>
    %c0_124 = arith.constant 0 : index
    %c0_125 = arith.constant 0 : index
    %c0_126 = arith.constant 0 : index
    %129 = vector.load %arg7[%c0_124, %c0_125, %c0_126] : memref<1x49x20xbf16, #tpu.memory_space<vmem>>, vector<1x49x20xbf16>
    %130 = vector.shape_cast %129 : vector<1x49x20xbf16> to vector<49x20xbf16>
    %131 = vector.shape_cast %128 : vector<49x20xbf16> to vector<1x49x20xbf16>
    tpu.vector_store %arg7[%c0_124, %c0_125, %c0_126], %131 {strides = array<i32>} : memref<1x49x20xbf16, #tpu.memory_space<vmem>>, vector<1x49x20xbf16>,
    return
  }
  func.func @transform_0(%arg0: i32) -> (i32, i32, i32) {
    %c0_i32 = arith.constant 0 : i32
    %c0_i32_0 = arith.constant 0 : i32
    %c0_i32_1 = arith.constant 0 : i32
    return %arg0, %c0_i32, %c0_i32_0 : i32, i32, i32
  }
  func.func @transform_1(%arg0: i32) -> (i32, i32) {
    %c0_i32 = arith.constant 0 : i32
    %c0_i32_0 = arith.constant 0 : i32
    %c0_i32_1 = arith.constant 0 : i32
    return %c0_i32, %c0_i32_0 : i32, i32
  }
  func.func @transform_2(%arg0: i32) -> (i32, i32) {
    %c0_i32 = arith.constant 0 : i32
    %c0_i32_0 = arith.constant 0 : i32
    %c0_i32_1 = arith.constant 0 : i32
    return %c0_i32, %c0_i32_0 : i32, i32
  }
  func.func @transform_3(%arg0: i32) -> (i32, i32, i32) {
    %c0_i32 = arith.constant 0 : i32
    %c0_i32_0 = arith.constant 0 : i32
    %c0_i32_1 = arith.constant 0 : i32
    %c0_i32_2 = arith.constant 0 : i32
    return %c0_i32, %c0_i32_0, %c0_i32_1 : i32, i32, i32
  }
  func.func @transform_4(%arg0: i32) -> (i32, i32, i32) {
    %c0_i32 = arith.constant 0 : i32
    %c0_i32_0 = arith.constant 0 : i32
    %c0_i32_1 = arith.constant 0 : i32
    %c0_i32_2 = arith.constant 0 : i32
    return %c0_i32, %c0_i32_0, %c0_i32_1 : i32, i32, i32
  }
  func.func @transform_5(%arg0: i32) -> (i32, i32) {
    %c0_i32 = arith.constant 0 : i32
    %c0_i32_0 = arith.constant 0 : i32
    %c0_i32_1 = arith.constant 0 : i32
    return %c0_i32, %c0_i32_0 : i32, i32
  }
  func.func @transform_6(%arg0: i32) -> (i32, i32, i32) {
    %c0_i32 = arith.constant 0 : i32
    %c0_i32_0 = arith.constant 0 : i32
    %c0_i32_1 = arith.constant 0 : i32
    return %arg0, %c0_i32, %c0_i32_0 : i32, i32, i32
  }
}

module attributes {stable_mosaic.version = 11 : i64} {
  func.func @mlp_head_kernel(%arg0: i32, %arg1: memref<8x980xbf16, #tpu.memory_space<vmem>>, %arg2: memref<980x128xbf16, #tpu.memory_space<vmem>>, %arg3: memref<1x128xf32, #tpu.memory_space<vmem>>, %arg4: memref<128x10xbf16, #tpu.memory_space<vmem>>, %arg5: memref<1x10xf32, #tpu.memory_space<vmem>>, %arg6: memref<8x10xf32, #tpu.memory_space<vmem>>) attributes {dimension_semantics = [#tpu.dimension_semantics<parallel>], iteration_bounds = array<i64: 1>, scalar_prefetch = 0 : i64, scratch_operands = 0 : i64, tpu.core_type = #tpu.core_type<tc>, window_params = [{transform_indices = @transform_0, window_bounds = array<i64: 8, 980>}, {pipeline_mode = #tpu.pipeline_mode<synchronous>, transform_indices = @transform_1, window_bounds = array<i64: 980, 128>}, {pipeline_mode = #tpu.pipeline_mode<synchronous>, transform_indices = @transform_2, window_bounds = array<i64: 1, 128>}, {pipeline_mode = #tpu.pipeline_mode<synchronous>, transform_indices = @transform_3, window_bounds = array<i64: 128, 10>}, {pipeline_mode = #tpu.pipeline_mode<synchronous>, transform_indices = @transform_4, window_bounds = array<i64: 1, 10>}, {transform_indices = @transform_5, window_bounds = array<i64: 8, 10>}]} {
    %c0 = arith.constant 0 : index
    %c0_0 = arith.constant 0 : index
    %0 = vector.load %arg1[%c0, %c0_0] : memref<8x980xbf16, #tpu.memory_space<vmem>>, vector<8x980xbf16>
    %c0_1 = arith.constant 0 : index
    %c0_2 = arith.constant 0 : index
    %1 = vector.load %arg2[%c0_1, %c0_2] : memref<980x128xbf16, #tpu.memory_space<vmem>>, vector<980x128xbf16>
    %cst = arith.constant dense<0.000000e+00> : vector<8x128xf32>
    %2 = tpu.matmul %0, %1, %cst {dimension_numbers = #tpu.dot_dimension_numbers<[1], [0], [0], [1], [0, 0, 1, 1], [], []>} : vector<8x980xbf16>, vector<980x128xbf16>, vector<8x128xf32> -> vector<8x128xf32>
    %c0_3 = arith.constant 0 : index
    %c0_4 = arith.constant 0 : index
    %3 = vector.load %arg3[%c0_3, %c0_4] : memref<1x128xf32, #tpu.memory_space<vmem>>, vector<1x128xf32>
    %4 = vector.broadcast %3 : vector<1x128xf32> to vector<8x128xf32>
    %5 = arith.addf %2, %4 : vector<8x128xf32>
    %cst_5 = arith.constant 0.000000e+00 : f32
    %6 = vector.broadcast %cst_5 : f32 to vector<8x128xf32>
    %7 = arith.maximumf %5, %6 : vector<8x128xf32>
    %8 = arith.truncf %7 : vector<8x128xf32> to vector<8x128xbf16>
    %c0_6 = arith.constant 0 : index
    %c0_7 = arith.constant 0 : index
    %9 = vector.load %arg4[%c0_6, %c0_7] : memref<128x10xbf16, #tpu.memory_space<vmem>>, vector<128x10xbf16>
    %cst_8 = arith.constant dense<0.000000e+00> : vector<8x10xf32>
    %10 = tpu.matmul %8, %9, %cst_8 {dimension_numbers = #tpu.dot_dimension_numbers<[1], [0], [0], [1], [0, 0, 1, 1], [], []>} : vector<8x128xbf16>, vector<128x10xbf16>, vector<8x10xf32> -> vector<8x10xf32>
    %c0_9 = arith.constant 0 : index
    %c0_10 = arith.constant 0 : index
    %11 = vector.load %arg5[%c0_9, %c0_10] : memref<1x10xf32, #tpu.memory_space<vmem>>, vector<1x10xf32>
    %12 = vector.broadcast %11 : vector<1x10xf32> to vector<8x10xf32>
    %13 = arith.addf %10, %12 : vector<8x10xf32>
    %c0_11 = arith.constant 0 : index
    %c0_12 = arith.constant 0 : index
    %14 = vector.load %arg6[%c0_11, %c0_12] : memref<8x10xf32, #tpu.memory_space<vmem>>, vector<8x10xf32>
    tpu.vector_store %arg6[%c0_11, %c0_12], %13 {strides = array<i32>} : memref<8x10xf32, #tpu.memory_space<vmem>>, vector<8x10xf32>,
    return
  }
  func.func @transform_0(%arg0: i32) -> (i32, i32) {
    %c0_i32 = arith.constant 0 : i32
    %c0_i32_0 = arith.constant 0 : i32
    return %arg0, %c0_i32 : i32, i32
  }
  func.func @transform_1(%arg0: i32) -> (i32, i32) {
    %c0_i32 = arith.constant 0 : i32
    %c0_i32_0 = arith.constant 0 : i32
    %c0_i32_1 = arith.constant 0 : i32
    return %c0_i32, %c0_i32_0 : i32, i32
  }
  func.func @transform_2(%arg0: i32) -> (i32, i32) {
    %c0_i32 = arith.constant 0 : i32
    %c0_i32_0 = arith.constant 0 : i32
    %c0_i32_1 = arith.constant 0 : i32
    return %c0_i32, %c0_i32_0 : i32, i32
  }
  func.func @transform_3(%arg0: i32) -> (i32, i32) {
    %c0_i32 = arith.constant 0 : i32
    %c0_i32_0 = arith.constant 0 : i32
    %c0_i32_1 = arith.constant 0 : i32
    return %c0_i32, %c0_i32_0 : i32, i32
  }
  func.func @transform_4(%arg0: i32) -> (i32, i32) {
    %c0_i32 = arith.constant 0 : i32
    %c0_i32_0 = arith.constant 0 : i32
    %c0_i32_1 = arith.constant 0 : i32
    return %c0_i32, %c0_i32_0 : i32, i32
  }
  func.func @transform_5(%arg0: i32) -> (i32, i32) {
    %c0_i32 = arith.constant 0 : i32
    %c0_i32_0 = arith.constant 0 : i32
    return %arg0, %c0_i32 : i32, i32
  }
}

</mosaic_0001>

<llo_original>
// kernel: clf_img_forward.3
$region0: #{clf_img_forward.3}
  #allocation0 [shape = 'u32[]', space=smem, size = 0x4, offset = 0x4, fixed_abs, tag = 'smem constant byte address 0x4 - core index']
  #allocation1 [shape = 'u32[144,128]{1,0:T(1,128)}', space=vmem, size = 0x12000, scoped, tag = 'internal scratch']
  %s0 = inlined_call_operand.vmem [shape: bf16[8,980], index: 0, kind: input, shape index: {}]
  %s1 = inlined_call_operand.vmem [shape: bf16[980,128], index: 1, kind: input, shape index: {}]
  %s2 = inlined_call_operand.vmem [shape: f32[1,128], index: 2, kind: input, shape index: {}]
  %s3 = inlined_call_operand.vmem [shape: bf16[128,10], index: 3, kind: input, shape index: {}]
  %s4 = inlined_call_operand.vmem [shape: f32[1,10], index: 4, kind: input, shape index: {}]
  %s5 = inlined_call_operand.vmem [shape: f32[8,10], index: 5, kind: output, shape index: {}]
  %s6 = sld [smem:[#allocation0]]
  $region30: #{clf_img_forward.3} parent=0
    _
  %s8 = ssub.s32 1, %s6
  %s9 = scalar_select 0, %s8, %s6
  // Predicated region
  $region2: #{clf_img_forward.3} parent=0 // pred_check
    _
  $region3: #{clf_img_forward.3} parent=0 // pred_check_branch
    %11 = sbr.rel (0) target = $region5
  $region4: #{clf_img_forward.3} parent=0 // pred_region
    _
  $region5: #{clf_img_forward.3} parent=0 // pred_fallthru
    _
  // Predicated region
  $region6: #{clf_img_forward.3} parent=0 // pred_check
    _
  $region7: #{clf_img_forward.3} parent=0 // pred_check_branch
    %13 = sbr.rel (0) target = $region9
  $region8: #{clf_img_forward.3} parent=0 // pred_region
    _
  $region9: #{clf_img_forward.3} parent=0 // pred_fallthru
    _
  // Predicated region
  $region10: #{clf_img_forward.3} parent=0 // pred_check
    _
  $region11: #{clf_img_forward.3} parent=0 // pred_check_branch
    %15 = sbr.rel (0) target = $region13
  $region12: #{clf_img_forward.3} parent=0 // pred_region
    _
  $region13: #{clf_img_forward.3} parent=0 // pred_fallthru
    _
  // Predicated region
  $region14: #{clf_img_forward.3} parent=0 // pred_check
    _
  $region15: #{clf_img_forward.3} parent=0 // pred_check_branch
    %17 = sbr.rel (0) target = $region17
  $region16: #{clf_img_forward.3} parent=0 // pred_region
    _
  $region17: #{clf_img_forward.3} parent=0 // pred_fallthru
    _
  // Predicated region
  $region18: #{clf_img_forward.3} parent=0 // pred_check
    _
  $region19: #{clf_img_forward.3} parent=0 // pred_check_branch
    %19 = sbr.rel (0) target = $region21
  $region20: #{clf_img_forward.3} parent=0 // pred_region
    _
  $region21: #{clf_img_forward.3} parent=0 // pred_fallthru
    _
  %v21 = vld [vmem:[%s0] sm:$0xff]
  %v22 = vld [vmem:[%s0 + $0x8] sm:$0xff]
  %v23 = vld [vmem:[%s0 + $0x10] sm:$0xff]
  %v24 = vld [vmem:[%s0 + $0x18] sm:$0xff]
  %v25 = vld [vmem:[%s1] sm:$0xf]
  %v26 = vld [vmem:[%s1 + $0x4] sm:$0xf]
  %v27 = vld [vmem:[%s1 + $0x8] sm:$0xf]
  %v28 = vld [vmem:[%s1 + $0xc] sm:$0xf]
  %v29 = vld [vmem:[%s1 + $0x10] sm:$0xf]
  %v30 = vld [vmem:[%s1 + $0x14] sm:$0xf]
  %v31 = vld [vmem:[%s1 + $0x18] sm:$0xf]
  %v32 = vld [vmem:[%s1 + $0x1c] sm:$0xf]
  %v33 = vld [vmem:[%s1 + $0x20] sm:$0xf]
  %v34 = vld [vmem:[%s1 + $0x24] sm:$0xf]
  %v35 = vld [vmem:[%s1 + $0x28] sm:$0xf]
  %v36 = vld [vmem:[%s1 + $0x2c] sm:$0xf]
  %v37 = vld [vmem:[%s1 + $0x30] sm:$0xf]
  %v38 = vld [vmem:[%s1 + $0x34] sm:$0xf]
  %v39 = vld [vmem:[%s1 + $0x38] sm:$0xf]
  %v40 = vld [vmem:[%s1 + $0x3c] sm:$0xf]
  %v41 = vld [vmem:[%s1 + $0x40] sm:$0xf]
  %v42 = vld [vmem:[%s1 + $0x44] sm:$0xf]
  %v43 = vld [vmem:[%s1 + $0x48] sm:$0xf]
  %v44 = vld [vmem:[%s1 + $0x4c] sm:$0xf]
  %v45 = vld [vmem:[%s1 + $0x50] sm:$0xf]
  %v46 = vld [vmem:[%s1 + $0x54] sm:$0xf]
  %v47 = vld [vmem:[%s1 + $0x58] sm:$0xf]
  %v48 = vld [vmem:[%s1 + $0x5c] sm:$0xf]
  %v49 = vld [vmem:[%s1 + $0x60] sm:$0xf]
  %v50 = vld [vmem:[%s1 + $0x64] sm:$0xf]
  %v51 = vld [vmem:[%s1 + $0x68] sm:$0xf]
  %v52 = vld [vmem:[%s1 + $0x6c] sm:$0xf]
  %v53 = vld [vmem:[%s1 + $0x70] sm:$0xf]
  %v54 = vld [vmem:[%s1 + $0x74] sm:$0xf]
  %v55 = vld [vmem:[%s1 + $0x78] sm:$0xf]
  %v56 = vld [vmem:[%s1 + $0x7c] sm:$0xf]
  %v57 = vld [vmem:[%s1 + $0x80] sm:$0xf]
  %v58 = vld [vmem:[%s1 + $0x84] sm:$0xf]
  %v59 = vld [vmem:[%s1 + $0x88] sm:$0xf]
  %v60 = vld [vmem:[%s1 + $0x8c] sm:$0xf]
  %v61 = vld [vmem:[%s1 + $0x90] sm:$0xf]
  %v62 = vld [vmem:[%s1 + $0x94] sm:$0xf]
  %v63 = vld [vmem:[%s1 + $0x98] sm:$0xf]
  %v64 = vld [vmem:[%s1 + $0x9c] sm:$0xf]
  %v65 = vld [vmem:[%s1 + $0xa0] sm:$0xf]
  %v66 = vld [vmem:[%s1 + $0xa4] sm:$0xf]
  %v67 = vld [vmem:[%s1 + $0xa8] sm:$0xf]
  %v68 = vld [vmem:[%s1 + $0xac] sm:$0xf]
  %v69 = vld [vmem:[%s1 + $0xb0] sm:$0xf]
  %v70 = vld [vmem:[%s1 + $0xb4] sm:$0xf]
  %v71 = vld [vmem:[%s1 + $0xb8] sm:$0xf]
  %v72 = vld [vmem:[%s1 + $0xbc] sm:$0xf]
  %v73 = vld [vmem:[%s1 + $0xc0] sm:$0xf]
  %v74 = vld [vmem:[%s1 + $0xc4] sm:$0xf]
  %v75 = vld [vmem:[%s1 + $0xc8] sm:$0xf]
  %v76 = vld [vmem:[%s1 + $0xcc] sm:$0xf]
  %v77 = vld [vmem:[%s1 + $0xd0] sm:$0xf]
  %v78 = vld [vmem:[%s1 + $0xd4] sm:$0xf]
  %v79 = vld [vmem:[%s1 + $0xd8] sm:$0xf]
  %v80 = vld [vmem:[%s1 + $0xdc] sm:$0xf]
  %v81 = vld [vmem:[%s1 + $0xe0] sm:$0xf]
  %v82 = vld [vmem:[%s1 + $0xe4] sm:$0xf]
  %v83 = vld [vmem:[%s1 + $0xe8] sm:$0xf]
  %v84 = vld [vmem:[%s1 + $0xec] sm:$0xf]
  %v85 = vld [vmem:[%s1 + $0xf0] sm:$0xf]
  %v86 = vld [vmem:[%s1 + $0xf4] sm:$0xf]
  %v87 = vld [vmem:[%s1 + $0xf8] sm:$0xf]
  %v88 = vld [vmem:[%s1 + $0xfc] sm:$0xf]
  %v89 = vld [vmem:[%s1 + $0x100] sm:$0xf]
  %v90 = vld [vmem:[%s1 + $0x104] sm:$0xf]
  %v91 = vld [vmem:[%s1 + $0x108] sm:$0xf]
  %v92 = vld [vmem:[%s1 + $0x10c] sm:$0xf]
  %v93 = vld [vmem:[%s1 + $0x110] sm:$0xf]
  %v94 = vld [vmem:[%s1 + $0x114] sm:$0xf]
  %v95 = vld [vmem:[%s1 + $0x118] sm:$0xf]
  %v96 = vld [vmem:[%s1 + $0x11c] sm:$0xf]
  %v97 = vld [vmem:[%s1 + $0x120] sm:$0xf]
  %v98 = vld [vmem:[%s1 + $0x124] sm:$0xf]
  %v99 = vld [vmem:[%s1 + $0x128] sm:$0xf]
  %v100 = vld [vmem:[%s1 + $0x12c] sm:$0xf]
  %v101 = vld [vmem:[%s1 + $0x130] sm:$0xf]
  %v102 = vld [vmem:[%s1 + $0x134] sm:$0xf]
  %v103 = vld [vmem:[%s1 + $0x138] sm:$0xf]
  %v104 = vld [vmem:[%s1 + $0x13c] sm:$0xf]
  %v105 = vld [vmem:[%s1 + $0x140] sm:$0xf]
  %v106 = vld [vmem:[%s1 + $0x144] sm:$0xf]
  %v107 = vld [vmem:[%s1 + $0x148] sm:$0xf]
  %v108 = vld [vmem:[%s1 + $0x14c] sm:$0xf]
  %v109 = vld [vmem:[%s1 + $0x150] sm:$0xf]
  %v110 = vld [vmem:[%s1 + $0x154] sm:$0xf]
  %v111 = vld [vmem:[%s1 + $0x158] sm:$0xf]
  %v112 = vld [vmem:[%s1 + $0x15c] sm:$0xf]
  %v113 = vld [vmem:[%s1 + $0x160] sm:$0xf]
  %v114 = vld [vmem:[%s1 + $0x164] sm:$0xf]
  %v115 = vld [vmem:[%s1 + $0x168] sm:$0xf]
  %v116 = vld [vmem:[%s1 + $0x16c] sm:$0xf]
  %v117 = vld [vmem:[%s1 + $0x170] sm:$0xf]
  %v118 = vld [vmem:[%s1 + $0x174] sm:$0xf]
  %v119 = vld [vmem:[%s1 + $0x178] sm:$0xf]
  %v120 = vld [vmem:[%s1 + $0x17c] sm:$0xf]
  %v121 = vld [vmem:[%s1 + $0x180] sm:$0xf]
  %v122 = vld [vmem:[%s1 + $0x184] sm:$0xf]
  %v123 = vld [vmem:[%s1 + $0x188] sm:$0xf]
  %v124 = vld [vmem:[%s1 + $0x18c] sm:$0xf]
  %v125 = vld [vmem:[%s1 + $0x190] sm:$0xf]
  %v126 = vld [vmem:[%s1 + $0x194] sm:$0xf]
  %v127 = vld [vmem:[%s1 + $0x198] sm:$0xf]
  %v128 = vld [vmem:[%s1 + $0x19c] sm:$0xf]
  %v129 = vld [vmem:[%s1 + $0x1a0] sm:$0xf]
  %v130 = vld [vmem:[%s1 + $0x1a4] sm:$0xf]
  %v131 = vld [vmem:[%s1 + $0x1a8] sm:$0xf]
  %v132 = vld [vmem:[%s1 + $0x1ac] sm:$0xf]
  %v133 = vld [vmem:[%s1 + $0x1b0] sm:$0xf]
  %v134 = vld [vmem:[%s1 + $0x1b4] sm:$0xf]
  %v135 = vld [vmem:[%s1 + $0x1b8] sm:$0xf]
  %v136 = vld [vmem:[%s1 + $0x1bc] sm:$0xf]
  %v137 = vld [vmem:[%s1 + $0x1c0] sm:$0xf]
  %v138 = vld [vmem:[%s1 + $0x1c4] sm:$0xf]
  %v139 = vld [vmem:[%s1 + $0x1c8] sm:$0xf]
  %v140 = vld [vmem:[%s1 + $0x1cc] sm:$0xf]
  %v141 = vld [vmem:[%s1 + $0x1d0] sm:$0xf]
  %v142 = vld [vmem:[%s1 + $0x1d4] sm:$0xf]
  %v143 = vld [vmem:[%s1 + $0x1d8] sm:$0xf]
  %v144 = vld [vmem:[%s1 + $0x1dc] sm:$0xf]
  %v145 = vld [vmem:[%s1 + $0x1e0] sm:$0xf]
  %v146 = vld [vmem:[%s1 + $0x1e4] sm:$0xf]
  %v147 = vld [vmem:[%s1 + $0x1e8] sm:$0x3]
  %v148 = vld [vmem:[%s2] sm:$0x1]
  %v150 = vlaneseq
  %v151 = vshrl.u32 %v150, 7
  %v152 = vsub.s32 0, %v151
  %v153 = vrot.slane %v148, %v152
  %v159 = vunpack.c.l.b16 %v21
  %v160 = vunpack.c.h.b16 %v21
  %v161 = vunpack.c.l.b16 %v22
  %v162 = vunpack.c.h.b16 %v22
  %v163 = vunpack.c.l.b16 %v23
  %v164 = vunpack.c.h.b16 %v23
  %v165 = vunpack.c.l.b16 %v24
  %v166 = vunpack.c.h.b16 %v24
  %v167 = vpack.c.b16 %v159, %v159
  %v168 = vpack.c.b16 %v160, %v160
  %v169 = vpack.c.b16 %v161, %v161
  %v170 = vpack.c.b16 %v162, %v162
  %v171 = vpack.c.b16 %v163, %v163
  %v172 = vpack.c.b16 %v164, %v164
  %v173 = vpack.c.b16 %v165, %v165
  %v174 = vpack.c.b16 %v166, %v166
  %v305 = vunpack.c.l.b16 %v25
  %v306 = vunpack.c.l.b16 %v26
  %v307 = vunpack.c.l.b16 %v27
  %v308 = vunpack.c.l.b16 %v28
  %v309 = vunpack.c.l.b16 %v29
  %v310 = vunpack.c.l.b16 %v30
  %v311 = vunpack.c.l.b16 %v31
  %v312 = vunpack.c.l.b16 %v32
  %v313 = vunpack.c.l.b16 %v33
  %v314 = vunpack.c.l.b16 %v34
  %v315 = vunpack.c.l.b16 %v35
  %v316 = vunpack.c.l.b16 %v36
  %v317 = vunpack.c.l.b16 %v37
  %v318 = vunpack.c.l.b16 %v38
  %v319 = vunpack.c.l.b16 %v39
  %v320 = vunpack.c.l.b16 %v40
  %v321 = vunpack.c.l.b16 %v41
  %v322 = vunpack.c.l.b16 %v42
  %v323 = vunpack.c.l.b16 %v43
  %v324 = vunpack.c.l.b16 %v44
  %v325 = vunpack.c.l.b16 %v45
  %v326 = vunpack.c.l.b16 %v46
  %v327 = vunpack.c.l.b16 %v47
  %v328 = vunpack.c.l.b16 %v48
  %v329 = vunpack.c.l.b16 %v49
  %v330 = vunpack.c.l.b16 %v50
  %v331 = vunpack.c.l.b16 %v51
  %v332 = vunpack.c.l.b16 %v52
  %v333 = vunpack.c.l.b16 %v53
  %v334 = vunpack.c.l.b16 %v54
  %v335 = vunpack.c.l.b16 %v55
  %v336 = vunpack.c.l.b16 %v56
  %v337 = vunpack.c.l.b16 %v57
  %v338 = vunpack.c.l.b16 %v58
  %v339 = vunpack.c.l.b16 %v59
  %v340 = vunpack.c.l.b16 %v60
  %v341 = vunpack.c.l.b16 %v61
  %v342 = vunpack.c.l.b16 %v62
  %v343 = vunpack.c.l.b16 %v63
  %v344 = vunpack.c.l.b16 %v64
  %v345 = vunpack.c.l.b16 %v65
  %v346 = vunpack.c.l.b16 %v66
  %v347 = vunpack.c.l.b16 %v67
  %v348 = vunpack.c.l.b16 %v68
  %v349 = vunpack.c.l.b16 %v69
  %v350 = vunpack.c.l.b16 %v70
  %v351 = vunpack.c.l.b16 %v71
  %v352 = vunpack.c.l.b16 %v72
  %v353 = vunpack.c.l.b16 %v73
  %v354 = vunpack.c.l.b16 %v74
  %v355 = vunpack.c.l.b16 %v75
  %v356 = vunpack.c.l.b16 %v76
  %v357 = vunpack.c.l.b16 %v77
  %v358 = vunpack.c.l.b16 %v78
  %v359 = vunpack.c.l.b16 %v79
  %v360 = vunpack.c.l.b16 %v80
  %v361 = vunpack.c.l.b16 %v81
  %v362 = vunpack.c.l.b16 %v82
  %v363 = vunpack.c.l.b16 %v83
  %v364 = vunpack.c.l.b16 %v84
  %v365 = vunpack.c.l.b16 %v85
  %v366 = vunpack.c.l.b16 %v86
  %v367 = vunpack.c.l.b16 %v87
  %v368 = vunpack.c.l.b16 %v88
  %v369 = vunpack.c.l.b16 %v89
  %v370 = vunpack.c.l.b16 %v90
  %v371 = vunpack.c.l.b16 %v91
  %v372 = vunpack.c.l.b16 %v92
  %v373 = vunpack.c.l.b16 %v93
  %v374 = vunpack.c.l.b16 %v94
  %v375 = vunpack.c.l.b16 %v95
  %v376 = vunpack.c.l.b16 %v96
  %v377 = vunpack.c.l.b16 %v97
  %v378 = vunpack.c.l.b16 %v98
  %v379 = vunpack.c.l.b16 %v99
  %v380 = vunpack.c.l.b16 %v100
  %v381 = vunpack.c.l.b16 %v101
  %v382 = vunpack.c.l.b16 %v102
  %v383 = vunpack.c.l.b16 %v103
  %v384 = vunpack.c.l.b16 %v104
  %v385 = vunpack.c.l.b16 %v105
  %v386 = vunpack.c.l.b16 %v106
  %v387 = vunpack.c.l.b16 %v107
  %v388 = vunpack.c.l.b16 %v108
  %v389 = vunpack.c.l.b16 %v109
  %v390 = vunpack.c.l.b16 %v110
  %v391 = vunpack.c.l.b16 %v111
  %v392 = vunpack.c.l.b16 %v112
  %v393 = vunpack.c.l.b16 %v113
  %v394 = vunpack.c.l.b16 %v114
  %v395 = vunpack.c.l.b16 %v115
  %v396 = vunpack.c.l.b16 %v116
  %v397 = vunpack.c.l.b16 %v117
  %v398 = vunpack.c.l.b16 %v118
  %v399 = vunpack.c.l.b16 %v119
  %v400 = vunpack.c.l.b16 %v120
  %v401 = vunpack.c.l.b16 %v121
  %v402 = vunpack.c.l.b16 %v122
  %v403 = vunpack.c.l.b16 %v123
  %v404 = vunpack.c.l.b16 %v124
  %v405 = vunpack.c.l.b16 %v125
  %v406 = vunpack.c.l.b16 %v126
  %v407 = vunpack.c.l.b16 %v127
  %v408 = vunpack.c.l.b16 %v128
  %v409 = vunpack.c.l.b16 %v129
  %v410 = vunpack.c.l.b16 %v130
  %v411 = vunpack.c.l.b16 %v131
  %v412 = vunpack.c.l.b16 %v132
  %v413 = vunpack.c.l.b16 %v133
  %v414 = vunpack.c.l.b16 %v134
  %v415 = vunpack.c.l.b16 %v135
  %v416 = vunpack.c.l.b16 %v136
  %v417 = vunpack.c.l.b16 %v137
  %v418 = vunpack.c.l.b16 %v138
  %v419 = vunpack.c.l.b16 %v139
  %v420 = vunpack.c.l.b16 %v140
  %v421 = vunpack.c.l.b16 %v141
  %v422 = vunpack.c.l.b16 %v142
  %v423 = vunpack.c.l.b16 %v143
  %v424 = vunpack.c.l.b16 %v144
  %v425 = vunpack.c.l.b16 %v145
  %v426 = vunpack.c.l.b16 %v146
  %v427 = vunpack.c.l.b16 %v147
  %v428 = vpack.c.b16 %v306, %v305
  %v429 = vpack.c.b16 %v308, %v307
  %v430 = vpack.c.b16 %v310, %v309
  %v431 = vpack.c.b16 %v312, %v311
  %v432 = vpack.c.b16 %v314, %v313
  %v433 = vpack.c.b16 %v316, %v315
  %v434 = vpack.c.b16 %v318, %v317
  %v435 = vpack.c.b16 %v320, %v319
  %v436 = vpack.c.b16 %v322, %v321
  %v437 = vpack.c.b16 %v324, %v323
  %v438 = vpack.c.b16 %v326, %v325
  %v439 = vpack.c.b16 %v328, %v327
  %v440 = vpack.c.b16 %v330, %v329
  %v441 = vpack.c.b16 %v332, %v331
  %v442 = vpack.c.b16 %v334, %v333
  %v443 = vpack.c.b16 %v336, %v335
  %v444 = vpack.c.b16 %v338, %v337
  %v445 = vpack.c.b16 %v340, %v339
  %v446 = vpack.c.b16 %v342, %v341
  %v447 = vpack.c.b16 %v344, %v343
  %v448 = vpack.c.b16 %v346, %v345
  %v449 = vpack.c.b16 %v348, %v347
  %v450 = vpack.c.b16 %v350, %v349
  %v451 = vpack.c.b16 %v352, %v351
  %v452 = vpack.c.b16 %v354, %v353
  %v453 = vpack.c.b16 %v356, %v355
  %v454 = vpack.c.b16 %v358, %v357
  %v455 = vpack.c.b16 %v360, %v359
  %v456 = vpack.c.b16 %v362, %v361
  %v457 = vpack.c.b16 %v364, %v363
  %v458 = vpack.c.b16 %v366, %v365
  %v459 = vpack.c.b16 %v368, %v367
  %v460 = vpack.c.b16 %v370, %v369
  %v461 = vpack.c.b16 %v372, %v371
  %v462 = vpack.c.b16 %v374, %v373
  %v463 = vpack.c.b16 %v376, %v375
  %v464 = vpack.c.b16 %v378, %v377
  %v465 = vpack.c.b16 %v380, %v379
  %v466 = vpack.c.b16 %v382, %v381
  %v467 = vpack.c.b16 %v384, %v383
  %v468 = vpack.c.b16 %v386, %v385
  %v469 = vpack.c.b16 %v388, %v387
  %v470 = vpack.c.b16 %v390, %v389
  %v471 = vpack.c.b16 %v392, %v391
  %v472 = vpack.c.b16 %v394, %v393
  %v473 = vpack.c.b16 %v396, %v395
  %v474 = vpack.c.b16 %v398, %v397
  %v475 = vpack.c.b16 %v400, %v399
  %v476 = vpack.c.b16 %v402, %v401
  %v477 = vpack.c.b16 %v404, %v403
  %v478 = vpack.c.b16 %v406, %v405
  %v479 = vpack.c.b16 %v408, %v407
  %v480 = vpack.c.b16 %v410, %v409
  %v481 = vpack.c.b16 %v412, %v411
  %v482 = vpack.c.b16 %v414, %v413
  %v483 = vpack.c.b16 %v416, %v415
  %v484 = vpack.c.b16 %v418, %v417
  %v485 = vpack.c.b16 %v420, %v419
  %v486 = vpack.c.b16 %v422, %v421
  %v487 = vpack.c.b16 %v424, %v423
  %v488 = vpack.c.b16 %v426, %v425
  %v489 = vpack.c.b16 %v427, %v427
  %vm551 = vcmask 687104
  %v553 = vsel %vm551, %v174, 0
  %vm555 = vcmask 1041408
  %v557 = vsel %vm555, %v489, 0
  %559 = vmatprep.subr.bf16.mxu0 0
  %560 = vmatpush1.bf16.msra.mxu0 %v428
  %561 = vmatprep.subr.bf16.mxu0 0
  %562 = vmatpush1.bf16.msra.mxu0 %v429
  %563 = vmatprep.subr.bf16.mxu0 0
  %564 = vmatpush1.bf16.msra.mxu0 %v430
  %565 = vmatprep.subr.bf16.mxu0 0
  %566 = vmatpush1.bf16.msra.mxu0 %v431
  %567 = vmatprep.subr.bf16.mxu0 0
  %568 = vmatpush1.bf16.msra.mxu0 %v432
  %569 = vmatprep.subr.bf16.mxu0 0
  %570 = vmatpush1.bf16.msra.mxu0 %v433
  %571 = vmatprep.subr.bf16.mxu0 0
  %572 = vmatpush1.bf16.msra.mxu0 %v434
  %573 = vmatprep.subr.bf16.mxu0 0
  %574 = vmatpush1.bf16.msra.mxu0 %v435
  %575 = vmatprep.subr.bf16.mxu0 0
  %576 = vmatpush1.bf16.msra.mxu0 %v436
  %577 = vmatprep.subr.bf16.mxu0 0
  %578 = vmatpush1.bf16.msra.mxu0 %v437
  %579 = vmatprep.subr.bf16.mxu0 0
  %580 = vmatpush1.bf16.msra.mxu0 %v438
  %581 = vmatprep.subr.bf16.mxu0 0
  %582 = vmatpush1.bf16.msra.mxu0 %v439
  %583 = vmatprep.subr.bf16.mxu0 0
  %584 = vmatpush1.bf16.msra.mxu0 %v440
  %585 = vmatprep.subr.bf16.mxu0 0
  %586 = vmatpush1.bf16.msra.mxu0 %v441
  %587 = vmatprep.subr.bf16.mxu0 0
  %588 = vmatpush1.bf16.msra.mxu0 %v442
  %589 = vmatprep.subr.bf16.mxu0 0
  %590 = vmatpush1.bf16.msra.mxu0 %v443
  %591 = vmatprep.mubr.bf16.mxu0 %v168
  %592 = vmatmul.mubr.bf16.gmra.mrb[0].mxu0 %v167
  %v593 = vpop.f32.mrb[0].mxu0
  %v594 = vadd.f32 %v153, %v593
  %v595 = vpop.f32.mrb[0].mxu0
  %v596 = vpop.f32.mrb[0].mxu0
  %v597 = vpop.f32.mrb[0].mxu0
  %598 = vdwg.mxu0
  %599 = vmatprep.subr.bf16.mxu0 0
  %600 = vmatpush1.bf16.msra.mxu0 %v444
  %601 = vmatprep.subr.bf16.mxu0 0
  %602 = vmatpush1.bf16.msra.mxu0 %v445
  %603 = vmatprep.subr.bf16.mxu0 0
  %604 = vmatpush1.bf16.msra.mxu0 %v446
  %605 = vmatprep.subr.bf16.mxu0 0
  %606 = vmatpush1.bf16.msra.mxu0 %v447
  %607 = vmatprep.subr.bf16.mxu0 0
  %608 = vmatpush1.bf16.msra.mxu0 %v448
  %609 = vmatprep.subr.bf16.mxu0 0
  %610 = vmatpush1.bf16.msra.mxu0 %v449
  %611 = vmatprep.subr.bf16.mxu0 0
  %612 = vmatpush1.bf16.msra.mxu0 %v450
  %613 = vmatprep.subr.bf16.mxu0 0
  %614 = vmatpush1.bf16.msra.mxu0 %v451
  %615 = vmatprep.subr.bf16.mxu0 0
  %616 = vmatpush1.bf16.msra.mxu0 %v452
  %617 = vmatprep.subr.bf16.mxu0 0
  %618 = vmatpush1.bf16.msra.mxu0 %v453
  %619 = vmatprep.subr.bf16.mxu0 0
  %620 = vmatpush1.bf16.msra.mxu0 %v454
  %621 = vmatprep.subr.bf16.mxu0 0
  %622 = vmatpush1.bf16.msra.mxu0 %v455
  %623 = vmatprep.subr.bf16.mxu0 0
  %624 = vmatpush1.bf16.msra.mxu0 %v456
  %625 = vmatprep.subr.bf16.mxu0 0
  %626 = vmatpush1.bf16.msra.mxu0 %v457
  %627 = vmatprep.subr.bf16.mxu0 0
  %628 = vmatpush1.bf16.msra.mxu0 %v458
  %629 = vmatprep.subr.bf16.mxu0 0
  %630 = vmatpush1.bf16.msra.mxu0 %v459
  %631 = vmatprep.mubr.bf16.mxu0 %v170
  %632 = vmatmul.mubr.bf16.gmra.mrb[0].mxu0 %v169
  %v633 = vpop.f32.mrb[0].mxu0
  %v634 = vadd.f32 %v594, %v633
  %v635 = vpop.f32.mrb[0].mxu0
  %v636 = vpop.f32.mrb[0].mxu0
  %v637 = vpop.f32.mrb[0].mxu0
  %638 = vdwg.mxu0
  %639 = vmatprep.subr.bf16.mxu0 0
  %640 = vmatpush1.bf16.msra.mxu0 %v460
  %641 = vmatprep.subr.bf16.mxu0 0
  %642 = vmatpush1.bf16.msra.mxu0 %v461
  %643 = vmatprep.subr.bf16.mxu0 0
  %644 = vmatpush1.bf16.msra.mxu0 %v462
  %645 = vmatprep.subr.bf16.mxu0 0
  %646 = vmatpush1.bf16.msra.mxu0 %v463
  %647 = vmatprep.subr.bf16.mxu0 0
  %648 = vmatpush1.bf16.msra.mxu0 %v464
  %649 = vmatprep.subr.bf16.mxu0 0
  %650 = vmatpush1.bf16.msra.mxu0 %v465
  %651 = vmatprep.subr.bf16.mxu0 0
  %652 = vmatpush1.bf16.msra.mxu0 %v466
  %653 = vmatprep.subr.bf16.mxu0 0
  %654 = vmatpush1.bf16.msra.mxu0 %v467
  %655 = vmatprep.subr.bf16.mxu0 0
  %656 = vmatpush1.bf16.msra.mxu0 %v468
  %657 = vmatprep.subr.bf16.mxu0 0
  %658 = vmatpush1.bf16.msra.mxu0 %v469
  %659 = vmatprep.subr.bf16.mxu0 0
  %660 = vmatpush1.bf16.msra.mxu0 %v470
  %661 = vmatprep.subr.bf16.mxu0 0
  %662 = vmatpush1.bf16.msra.mxu0 %v471
  %663 = vmatprep.subr.bf16.mxu0 0
  %664 = vmatpush1.bf16.msra.mxu0 %v472
  %665 = vmatprep.subr.bf16.mxu0 0
  %666 = vmatpush1.bf16.msra.mxu0 %v473
  %667 = vmatprep.subr.bf16.mxu0 0
  %668 = vmatpush1.bf16.msra.mxu0 %v474
  %669 = vmatprep.subr.bf16.mxu0 0
  %670 = vmatpush1.bf16.msra.mxu0 %v475
  %671 = vmatprep.mubr.bf16.mxu0 %v172
  %672 = vmatmul.mubr.bf16.gmra.mrb[0].mxu0 %v171
  %v673 = vpop.f32.mrb[0].mxu0
  %v674 = vadd.f32 %v634, %v673
  %v675 = vpop.f32.mrb[0].mxu0
  %v676 = vpop.f32.mrb[0].mxu0
  %v677 = vpop.f32.mrb[0].mxu0
  %678 = vdwg.mxu0
  %679 = vmatprep.subr.bf16.mxu0 0
  %680 = vmatpush1.bf16.msra.mxu0 %v476
  %681 = vmatprep.subr.bf16.mxu0 0
  %682 = vmatpush1.bf16.msra.mxu0 %v477
  %683 = vmatprep.subr.bf16.mxu0 0
  %684 = vmatpush1.bf16.msra.mxu0 %v478
  %685 = vmatprep.subr.bf16.mxu0 0
  %686 = vmatpush1.bf16.msra.mxu0 %v479
  %687 = vmatprep.subr.bf16.mxu0 0
  %688 = vmatpush1.bf16.msra.mxu0 %v480
  %689 = vmatprep.subr.bf16.mxu0 0
  %690 = vmatpush1.bf16.msra.mxu0 %v481
  %691 = vmatprep.subr.bf16.mxu0 0
  %692 = vmatpush1.bf16.msra.mxu0 %v482
  %693 = vmatprep.subr.bf16.mxu0 0
  %694 = vmatpush1.bf16.msra.mxu0 %v483
  %695 = vmatprep.subr.bf16.mxu0 0
  %696 = vmatpush1.bf16.msra.mxu0 %v484
  %697 = vmatprep.subr.bf16.mxu0 0
  %698 = vmatpush1.bf16.msra.mxu0 %v485
  %699 = vmatprep.subr.bf16.mxu0 0
  %700 = vmatpush1.bf16.msra.mxu0 %v486
  %701 = vmatprep.subr.bf16.mxu0 0
  %702 = vmatpush1.bf16.msra.mxu0 %v487
  %703 = vmatprep.subr.bf16.mxu0 0
  %704 = vmatpush1.bf16.msra.mxu0 %v488
  %705 = vmatprep.subr.bf16.mxu0 0
  %706 = vmatpush1.bf16.msra.mxu0 %v557
  %707 = vmatprep.subr.bf16.mxu0 0
  %708 = vmatpush1.bf16.msra.mxu0 0
  %709 = vmatprep.subr.bf16.mxu0 0
  %710 = vmatpush1.bf16.msra.mxu0 0
  %711 = vmatprep.mubr.bf16.mxu0 %v553
  %712 = vmatmul.mubr.bf16.gmra.mrb[0].mxu0 %v173
  %v713 = vpop.f32.mrb[0].mxu0
  %v714 = vadd.f32 %v674, %v713
  %v715 = vpop.f32.mrb[0].mxu0
  %v716 = vpop.f32.mrb[0].mxu0
  %v717 = vpop.f32.mrb[0].mxu0
  %718 = vdwg.mxu0
  %v719 = vmax.f32 %v714, 0.0
  %v720 = vpack.c.bf16 %v719, %v719
  %v721 = vld [vmem:[%s3] sm:$0xf]
  %v722 = vld [vmem:[%s3 + $0x4] sm:$0xf]
  %v723 = vld [vmem:[%s3 + $0x8] sm:$0xf]
  %v724 = vld [vmem:[%s3 + $0xc] sm:$0xf]
  %v725 = vld [vmem:[%s3 + $0x10] sm:$0xf]
  %v726 = vld [vmem:[%s3 + $0x14] sm:$0xf]
  %v727 = vld [vmem:[%s3 + $0x18] sm:$0xf]
  %v728 = vld [vmem:[%s3 + $0x1c] sm:$0xf]
  %v729 = vld [vmem:[%s3 + $0x20] sm:$0xf]
  %v730 = vld [vmem:[%s3 + $0x24] sm:$0xf]
  %v731 = vld [vmem:[%s3 + $0x28] sm:$0xf]
  %v732 = vld [vmem:[%s3 + $0x2c] sm:$0xf]
  %v733 = vld [vmem:[%s3 + $0x30] sm:$0xf]
  %v734 = vld [vmem:[%s3 + $0x34] sm:$0xf]
  %v735 = vld [vmem:[%s3 + $0x38] sm:$0xf]
  %v736 = vld [vmem:[%s3 + $0x3c] sm:$0xf]
  %v737 = vld [vmem:[%s4] sm:$0x1]
  %v739 = vlaneseq
  %v740 = vshrl.u32 %v739, 7
  %v741 = vsub.s32 0, %v740
  %v742 = vrot.slane %v737, %v741
  %v760 = vunpack.c.l.b16 %v721
  %v761 = vunpack.c.l.b16 %v722
  %v762 = vunpack.c.l.b16 %v723
  %v763 = vunpack.c.l.b16 %v724
  %v764 = vunpack.c.l.b16 %v725
  %v765 = vunpack.c.l.b16 %v726
  %v766 = vunpack.c.l.b16 %v727
  %v767 = vunpack.c.l.b16 %v728
  %v768 = vunpack.c.l.b16 %v729
  %v769 = vunpack.c.l.b16 %v730
  %v770 = vunpack.c.l.b16 %v731
  %v771 = vunpack.c.l.b16 %v732
  %v772 = vunpack.c.l.b16 %v733
  %v773 = vunpack.c.l.b16 %v734
  %v774 = vunpack.c.l.b16 %v735
  %v775 = vunpack.c.l.b16 %v736
  %v776 = vpack.c.b16 %v761, %v760
  %v777 = vpack.c.b16 %v763, %v762
  %v778 = vpack.c.b16 %v765, %v764
  %v779 = vpack.c.b16 %v767, %v766
  %v780 = vpack.c.b16 %v769, %v768
  %v781 = vpack.c.b16 %v771, %v770
  %v782 = vpack.c.b16 %v773, %v772
  %v783 = vpack.c.b16 %v775, %v774
  %792 = vmatprep.subr.bf16.mxu0 0
  %793 = vmatpush1.bf16.msra.mxu0 %v776
  %794 = vmatprep.subr.bf16.mxu0 0
  %795 = vmatpush1.bf16.msra.mxu0 %v777
  %796 = vmatprep.subr.bf16.mxu0 0
  %797 = vmatpush1.bf16.msra.mxu0 %v778
  %798 = vmatprep.subr.bf16.mxu0 0
  %799 = vmatpush1.bf16.msra.mxu0 %v779
  %800 = vmatprep.subr.bf16.mxu0 0
  %801 = vmatpush1.bf16.msra.mxu0 %v780
  %802 = vmatprep.subr.bf16.mxu0 0
  %803 = vmatpush1.bf16.msra.mxu0 %v781
  %804 = vmatprep.subr.bf16.mxu0 0
  %805 = vmatpush1.bf16.msra.mxu0 %v782
  %806 = vmatprep.subr.bf16.mxu0 0
  %807 = vmatpush1.bf16.msra.mxu0 %v783
  %808 = vmatprep.subr.bf16.mxu0 0
  %809 = vmatpush1.bf16.msra.mxu0 0
  %810 = vmatprep.subr.bf16.mxu0 0
  %811 = vmatpush1.bf16.msra.mxu0 0
  %812 = vmatprep.subr.bf16.mxu0 0
  %813 = vmatpush1.bf16.msra.mxu0 0
  %814 = vmatprep.subr.bf16.mxu0 0
  %815 = vmatpush1.bf16.msra.mxu0 0
  %816 = vmatprep.subr.bf16.mxu0 0
  %817 = vmatpush1.bf16.msra.mxu0 0
  %818 = vmatprep.subr.bf16.mxu0 0
  %819 = vmatpush1.bf16.msra.mxu0 0
  %820 = vmatprep.subr.bf16.mxu0 0
  %821 = vmatpush1.bf16.msra.mxu0 0
  %822 = vmatprep.subr.bf16.mxu0 0
  %823 = vmatpush1.bf16.msra.mxu0 0
  %824 = vmatprep.mubr.bf16.mxu0 0
  %825 = vmatmul.mubr.bf16.gmra.mrb[0].mxu0 %v720
  %v826 = vpop.f32.mrb[0].mxu0
  %v827 = vadd.f32 %v742, %v826
  %v828 = vpop.f32.mrb[0].mxu0
  %v829 = vpop.f32.mrb[0].mxu0
  %v830 = vpop.f32.mrb[0].mxu0
  %831 = vdwg.mxu0
  %vm832 = vcmask 80896
  %833 = vst.msk [vmem:[%s5] sm:$0xff] %vm832, %v827
  // Predicated region
  $region22: #{clf_img_forward.3} parent=0 // pred_check
    _
  $region23: #{clf_img_forward.3} parent=0 // pred_check_branch
    %835 = sbr.rel (0) target = $region25
  $region24: #{clf_img_forward.3} parent=0 // pred_region
    _
  $region25: #{clf_img_forward.3} parent=0 // pred_fallthru
    _
  // Predicated region
  $region26: #{clf_img_forward.3} parent=0 // pred_check
    _
  $region27: #{clf_img_forward.3} parent=0 // pred_check_branch
    %837 = sbr.rel (0) target = $region29
  $region28: #{clf_img_forward.3} parent=0 // pred_region
    _
  $region29: #{clf_img_forward.3} parent=0 // pred_fallthru
    _

// kernel: clf_img_forward.2
$region0: #{clf_img_forward.2}
  #allocation0 [shape = 'u32[]', space=smem, size = 0x4, offset = 0x4, fixed_abs, tag = 'smem constant byte address 0x4 - core index']
  #allocation1 [shape = 'u32[144,128]{1,0:T(1,128)}', space=vmem, size = 0x12000, scoped, tag = 'internal scratch']
  %s0 = inlined_call_operand.vmem [shape: bf16[2,196,48], index: 0, kind: input, shape index: {}]
  %s1 = inlined_call_operand.vmem [shape: bf16[48,10], index: 1, kind: input, shape index: {}]
  %s2 = inlined_call_operand.vmem [shape: f32[1,10], index: 2, kind: input, shape index: {}]
  %s3 = inlined_call_operand.vmem [shape: bf16[16,49,196], index: 3, kind: input, shape index: {}]
  %s4 = inlined_call_operand.vmem [shape: f32[16,10,20], index: 4, kind: input, shape index: {}]
  %s5 = inlined_call_operand.vmem [shape: f32[1,20], index: 5, kind: input, shape index: {}]
  %s6 = inlined_call_operand.vmem [shape: bf16[2,49,20], index: 6, kind: output, shape index: {}]
  %s7 = sld [smem:[#allocation0]]
  $region57: #{clf_img_forward.2} parent=0
    _
  %s9 = ssub.s32 1, %s7
  %s10 = scalar_select 0, %s9, %s7
  loop: start=0, step=1, limit=4
  $region2: #{clf_img_forward.2} parent=0 // loop_pre_header
    _
  $region3: #{clf_img_forward.2} parent=0 // loop_header
    %s12 = sphi 0, %s16
    %p13 = scmp.ge.s32.totalorder %s12, 4
    %s22 = sphi 0, %s24
    %s25 = sphi 0, %s22
    %s26 = sphi 0, %s25
    %s42 = sphi 0, %s26
    %s46 = sphi 0, %s46
    %s48 = sphi 0, %s46
    %s49 = sphi 0, %s48
    %s63 = sphi 0, %s49
    %s67 = sphi 0, %s67
    %s69 = sphi 0, %s67
    %s70 = sphi 0, %s69
    %s84 = sphi 0, %s70
    %s88 = sphi 0, %s88
    %s90 = sphi 0, %s88
    %s91 = sphi 0, %s90
    %s105 = sphi 0, %s91
    %s109 = sphi 0, %s109
    %s111 = sphi 0, %s109
    %s112 = sphi 0, %s111
    %s126 = sphi 0, %s112
    %s130 = sphi 0, %s130
    %s132 = sphi 0, %s130
    %s133 = sphi 0, %s132
    %s147 = sphi 0, %s133
    %s153 = sphi 0, %s155
    %s156 = sphi 0, %s153
    %s157 = sphi 0, %s156
    %s173 = sphi 0, %s157
  $region4: #{clf_img_forward.2} parent=0 // loop_header_branch
    %15 = sbr.rel (%p13) target = $region8
  $region5: #{clf_img_forward.2} parent=0 // loop_body
    %s17 = ssub.s32 %s12, 1
    %s18 = ssub.s32 %s12, 2
    %s19 = sadd.s32 %s12, 1
    %s20 = ssub.s32 %s12, %s19
    %p21 = scmp.eq.s32.totalorder %s20, 0
    %s23 = sadd.s32 %s22, 1
    %s24 = scalar_select %p21, %s22, %s23
    %p27 = pneg %p21
    %p28 = scmp.eq.s32.totalorder %s12, 1
    %p29 = por %p27, %p28
    %p30 = scmp.ne.s32.totalorder %s22, %s25
    %p31 = scmp.eq.s32.totalorder %s12, 0
    %p32 = por %p30, %p31
    %p33 = scmp.ne.s32.totalorder %s22, %s25
    %p34 = scmp.eq.s32.totalorder %s17, 1
    %p35 = por %p33, %p34
    %p36 = scmp.ne.s32.totalorder %s25, %s26
    %p37 = scmp.eq.s32.totalorder %s17, 0
    %p38 = por %p36, %p37
    %p39 = scmp.ne.s32.totalorder %s25, %s26
    %p40 = scmp.eq.s32.totalorder %s18, 1
    %p41 = por %p39, %p40
    %p43 = scmp.ne.s32.totalorder %s26, %s42
    %p44 = scmp.eq.s32.totalorder %s18, 0
    %p45 = por %p43, %p44
    %s47 = sadd.s32 %s46, 1
    %p50 = scmp.eq.s32.totalorder %s12, 1
    %p51 = scmp.ne.s32.totalorder %s46, %s48
    %p52 = scmp.eq.s32.totalorder %s12, 0
    %p53 = por %p51, %p52
    %p54 = scmp.ne.s32.totalorder %s46, %s48
    %p55 = scmp.eq.s32.totalorder %s17, 1
    %p56 = por %p54, %p55
    %p57 = scmp.ne.s32.totalorder %s48, %s49
    %p58 = scmp.eq.s32.totalorder %s17, 0
    %p59 = por %p57, %p58
    %p60 = scmp.ne.s32.totalorder %s48, %s49
    %p61 = scmp.eq.s32.totalorder %s18, 1
    %p62 = por %p60, %p61
    %p64 = scmp.ne.s32.totalorder %s49, %s63
    %p65 = scmp.eq.s32.totalorder %s18, 0
    %p66 = por %p64, %p65
    %s68 = sadd.s32 %s67, 1
    %p71 = scmp.eq.s32.totalorder %s12, 1
    %p72 = scmp.ne.s32.totalorder %s67, %s69
    %p73 = scmp.eq.s32.totalorder %s12, 0
    %p74 = por %p72, %p73
    %p75 = scmp.ne.s32.totalorder %s67, %s69
    %p76 = scmp.eq.s32.totalorder %s17, 1
    %p77 = por %p75, %p76
    %p78 = scmp.ne.s32.totalorder %s69, %s70
    %p79 = scmp.eq.s32.totalorder %s17, 0
    %p80 = por %p78, %p79
    %p81 = scmp.ne.s32.totalorder %s69, %s70
    %p82 = scmp.eq.s32.totalorder %s18, 1
    %p83 = por %p81, %p82
    %p85 = scmp.ne.s32.totalorder %s70, %s84
    %p86 = scmp.eq.s32.totalorder %s18, 0
    %p87 = por %p85, %p86
    %s89 = sadd.s32 %s88, 1
    %p92 = scmp.eq.s32.totalorder %s12, 1
    %p93 = scmp.ne.s32.totalorder %s88, %s90
    %p94 = scmp.eq.s32.totalorder %s12, 0
    %p95 = por %p93, %p94
    %p96 = scmp.ne.s32.totalorder %s88, %s90
    %p97 = scmp.eq.s32.totalorder %s17, 1
    %p98 = por %p96, %p97
    %p99 = scmp.ne.s32.totalorder %s90, %s91
    %p100 = scmp.eq.s32.totalorder %s17, 0
    %p101 = por %p99, %p100
    %p102 = scmp.ne.s32.totalorder %s90, %s91
    %p103 = scmp.eq.s32.totalorder %s18, 1
    %p104 = por %p102, %p103
    %p106 = scmp.ne.s32.totalorder %s91, %s105
    %p107 = scmp.eq.s32.totalorder %s18, 0
    %p108 = por %p106, %p107
    %s110 = sadd.s32 %s109, 1
    %p113 = scmp.eq.s32.totalorder %s12, 1
    %p114 = scmp.ne.s32.totalorder %s109, %s111
    %p115 = scmp.eq.s32.totalorder %s12, 0
    %p116 = por %p114, %p115
    %p117 = scmp.ne.s32.totalorder %s109, %s111
    %p118 = scmp.eq.s32.totalorder %s17, 1
    %p119 = por %p117, %p118
    %p120 = scmp.ne.s32.totalorder %s111, %s112
    %p121 = scmp.eq.s32.totalorder %s17, 0
    %p122 = por %p120, %p121
    %p123 = scmp.ne.s32.totalorder %s111, %s112
    %p124 = scmp.eq.s32.totalorder %s18, 1
    %p125 = por %p123, %p124
    %p127 = scmp.ne.s32.totalorder %s112, %s126
    %p128 = scmp.eq.s32.totalorder %s18, 0
    %p129 = por %p127, %p128
    %s131 = sadd.s32 %s130, 1
    %p134 = scmp.eq.s32.totalorder %s12, 1
    %p135 = scmp.ne.s32.totalorder %s130, %s132
    %p136 = scmp.eq.s32.totalorder %s12, 0
    %p137 = por %p135, %p136
    %p138 = scmp.ne.s32.totalorder %s130, %s132
    %p139 = scmp.eq.s32.totalorder %s17, 1
    %p140 = por %p138, %p139
    %p141 = scmp.ne.s32.totalorder %s132, %s133
    %p142 = scmp.eq.s32.totalorder %s17, 0
    %p143 = por %p141, %p142
    %p144 = scmp.ne.s32.totalorder %s132, %s133
    %p145 = scmp.eq.s32.totalorder %s18, 1
    %p146 = por %p144, %p145
    %p148 = scmp.ne.s32.totalorder %s133, %s147
    %p149 = scmp.eq.s32.totalorder %s18, 0
    %p150 = por %p148, %p149
    %s151 = ssub.s32 %s12, %s19
    %p152 = scmp.eq.s32.totalorder %s151, 0
    %s154 = sadd.s32 %s153, 1
    %s155 = scalar_select %p152, %s153, %s154
    %p158 = pneg %p152
    %p159 = scmp.eq.s32.totalorder %s12, 1
    %p160 = por %p158, %p159
    %p161 = scmp.ne.s32.totalorder %s153, %s156
    %p162 = scmp.eq.s32.totalorder %s12, 0
    %p163 = por %p161, %p162
    %p164 = scmp.ne.s32.totalorder %s153, %s156
    %p165 = scmp.eq.s32.totalorder %s17, 1
    %p166 = por %p164, %p165
    %p167 = scmp.ne.s32.totalorder %s156, %s157
    %p168 = scmp.eq.s32.totalorder %s17, 0
    %p169 = por %p167, %p168
    %p170 = scmp.ne.s32.totalorder %s156, %s157
    %p171 = scmp.eq.s32.totalorder %s18, 1
    %p172 = por %p170, %p171
    %p174 = scmp.ne.s32.totalorder %s157, %s173
    %p175 = scmp.eq.s32.totalorder %s18, 0
    %p176 = por %p174, %p175
    %p177 = scmp.le.s32.totalorder 1, %s12
    %p178 = scmp.lt.s32.totalorder %s12, 3
    %p179 = pnand %p177, %p178
    %p180 = pneg %p179
    // Predicated region
    $region9: #{clf_img_forward.2} parent=5 // pred_check
      _
    $region10: #{clf_img_forward.2} parent=5 // pred_check_branch
      %182 = sbr.rel (%p179) target = $region12
    $region11: #{clf_img_forward.2} parent=5 // pred_region
      %s183 = ssub.s32 %s12, 1
      // Predicated region
      $region13: #{clf_img_forward.2} parent=11 // pred_check
        %p184 = pneg %p59
      $region14: #{clf_img_forward.2} parent=11 // pred_check_branch
        %186 = sbr.rel (%p184) target = $region16
      $region15: #{clf_img_forward.2} parent=11 // pred_region
        _
      $region16: #{clf_img_forward.2} parent=11 // pred_fallthru
        _
      // Predicated region
      $region17: #{clf_img_forward.2} parent=11 // pred_check
        %p187 = pneg %p80
      $region18: #{clf_img_forward.2} parent=11 // pred_check_branch
        %189 = sbr.rel (%p187) target = $region20
      $region19: #{clf_img_forward.2} parent=11 // pred_region
        _
      $region20: #{clf_img_forward.2} parent=11 // pred_fallthru
        _
      // Predicated region
      $region21: #{clf_img_forward.2} parent=11 // pred_check
        %p190 = pneg %p101
      $region22: #{clf_img_forward.2} parent=11 // pred_check_branch
        %192 = sbr.rel (%p190) target = $region24
      $region23: #{clf_img_forward.2} parent=11 // pred_region
        _
      $region24: #{clf_img_forward.2} parent=11 // pred_fallthru
        _
      // Predicated region
      $region25: #{clf_img_forward.2} parent=11 // pred_check
        %p193 = pneg %p122
      $region26: #{clf_img_forward.2} parent=11 // pred_check_branch
        %195 = sbr.rel (%p193) target = $region28
      $region27: #{clf_img_forward.2} parent=11 // pred_region
        _
      $region28: #{clf_img_forward.2} parent=11 // pred_fallthru
        _
      // Predicated region
      $region29: #{clf_img_forward.2} parent=11 // pred_check
        %p196 = pneg %p143
      $region30: #{clf_img_forward.2} parent=11 // pred_check_branch
        %198 = sbr.rel (%p196) target = $region32
      $region31: #{clf_img_forward.2} parent=11 // pred_region
        _
      $region32: #{clf_img_forward.2} parent=11 // pred_fallthru
        _
    $region12: #{clf_img_forward.2} parent=5 // pred_fallthru
      _
    %p199 = scmp.lt.s32.totalorder %s12, 2
    // Predicated region
    $region33: #{clf_img_forward.2} parent=5 // pred_check
      %p200 = pneg %p199
    $region34: #{clf_img_forward.2} parent=5 // pred_check_branch
      %202 = sbr.rel (%p200) target = $region36
    $region35: #{clf_img_forward.2} parent=5 // pred_region
      // Predicated region
      $region37: #{clf_img_forward.2} parent=35 // pred_check
        %p203 = pneg %p32
      $region38: #{clf_img_forward.2} parent=35 // pred_check_branch
        %205 = sbr.rel (%p203) target = $region40
      $region39: #{clf_img_forward.2} parent=35 // pred_region
        %p206 = scmp.lt.s32.totalorder %s12, 1
        %s207 = scalar_select %p206, %s12, 1
        %s208 = smul.addr %s207, 25
        %s209 = smul.addr %s208, 4
        %s210 = scalar_lea.vmem %s0, %s209
      $region40: #{clf_img_forward.2} parent=35 // pred_fallthru
        _
    $region36: #{clf_img_forward.2} parent=5 // pred_fallthru
      _
    %p211 = scmp.le.s32.totalorder 1, %s12
    %p212 = scmp.lt.s32.totalorder %s12, 3
    %p213 = pnand %p211, %p212
    %p214 = pneg %p213
    // Predicated region
    $region41: #{clf_img_forward.2} parent=5 // pred_check
      _
    $region42: #{clf_img_forward.2} parent=5 // pred_check_branch
      %216 = sbr.rel (%p213) target = $region44
    $region43: #{clf_img_forward.2} parent=5 // pred_region
      %s217 = ssub.s32 %s12, 1
      %p218 = scmp.lt.s32.totalorder %s17, 1
      %s219 = scalar_select %p218, %s17, 1
      %s220 = smul.addr %s219, 25
      %s221 = smul.addr %s220, 4
      %s222 = scalar_lea.vmem %s0, %s221
      %p223 = pneg %p38
      %p224 = pneg %p35
      %p225 = pneg %p59
      %p226 = pneg %p56
      %p227 = pneg %p80
      %p228 = pneg %p77
      %p229 = pneg %p101
      %p230 = pneg %p98
      %p231 = pneg %p122
      %p232 = pneg %p119
      %p233 = pneg %p143
      %p234 = pneg %p140
      %p235 = pneg %p169
      %p236 = pneg %p166
      %p237 = scmp.lt.s32.totalorder %s17, 1
      %s238 = scalar_select %p237, %s17, 1
      %s239 = smul.addr %s238, 7
      %s240 = smul.addr %s239, 4
      %s241 = scalar_lea.vmem %s6, %s240
      %p242 = scmp.lt.s32.totalorder %s17, 1
      %s243 = scalar_select %p242, %s17, 1
      %s244 = smul.addr %s243, 25
      %s245 = smul.addr %s244, 4
      %s246 = scalar_lea.vmem %s0, %s245
      %p247 = scmp.lt.s32.totalorder %s17, 1
      %s248 = scalar_select %p247, %s17, 1
      %s249 = smul.addr %s248, 7
      %s250 = smul.addr %s249, 4
      %s251 = scalar_lea.vmem %s6, %s250
      %v253 = vld [vmem:[%s246] sm:$0xf]
      %v254 = vld [vmem:[%s246 + $0x4] sm:$0xf]
      %v255 = vld [vmem:[%s246 + $0x8] sm:$0xf]
      %v256 = vld [vmem:[%s246 + $0xc] sm:$0xf]
      %v257 = vld [vmem:[%s246 + $0x10] sm:$0xf]
      %v258 = vld [vmem:[%s246 + $0x14] sm:$0xf]
      %v259 = vld [vmem:[%s246 + $0x18] sm:$0xf]
      %v260 = vld [vmem:[%s246 + $0x1c] sm:$0xf]
      %v261 = vld [vmem:[%s246 + $0x20] sm:$0xf]
      %v262 = vld [vmem:[%s246 + $0x24] sm:$0xf]
      %v263 = vld [vmem:[%s246 + $0x28] sm:$0xf]
      %v264 = vld [vmem:[%s246 + $0x2c] sm:$0xf]
      %v265 = vld [vmem:[%s246 + $0x30] sm:$0xf]
      %v266 = vld [vmem:[%s246 + $0x34] sm:$0xf]
      %v267 = vld [vmem:[%s246 + $0x38] sm:$0xf]
      %v268 = vld [vmem:[%s246 + $0x3c] sm:$0xf]
      %v269 = vld [vmem:[%s246 + $0x40] sm:$0xf]
      %v270 = vld [vmem:[%s246 + $0x44] sm:$0xf]
      %v271 = vld [vmem:[%s246 + $0x48] sm:$0xf]
      %v272 = vld [vmem:[%s246 + $0x4c] sm:$0xf]
      %v273 = vld [vmem:[%s246 + $0x50] sm:$0xf]
      %v274 = vld [vmem:[%s246 + $0x54] sm:$0xf]
      %v275 = vld [vmem:[%s246 + $0x58] sm:$0xf]
      %v276 = vld [vmem:[%s246 + $0x5c] sm:$0xf]
      %v277 = vld [vmem:[%s246 + $0x60] sm:$0x3]
      %v278 = vld [vmem:[%s1] sm:$0xf]
      %v279 = vld [vmem:[%s1 + $0x4] sm:$0xf]
      %v280 = vld [vmem:[%s1 + $0x8] sm:$0xf]
      %v281 = vld [vmem:[%s1 + $0xc] sm:$0xf]
      %v282 = vld [vmem:[%s1 + $0x10] sm:$0xf]
      %v283 = vld [vmem:[%s1 + $0x14] sm:$0xf]
      %v284 = vld [vmem:[%s2] sm:$0x1]
      %v286 = vlaneseq
      %v287 = vshrl.u32 %v286, 7
      %v288 = vsub.s32 0, %v287
      %v289 = vrot.slane %v284, %v288
      %v316 = vunpack.c.l.b16 %v253
      %v317 = vunpack.c.l.b16 %v254
      %v318 = vunpack.c.l.b16 %v255
      %v319 = vunpack.c.l.b16 %v256
      %v320 = vunpack.c.l.b16 %v257
      %v321 = vunpack.c.l.b16 %v258
      %v322 = vunpack.c.l.b16 %v259
      %v323 = vunpack.c.l.b16 %v260
      %v324 = vunpack.c.l.b16 %v261
      %v325 = vunpack.c.l.b16 %v262
      %v326 = vunpack.c.l.b16 %v263
      %v327 = vunpack.c.l.b16 %v264
      %v328 = vunpack.c.l.b16 %v265
      %v329 = vunpack.c.l.b16 %v266
      %v330 = vunpack.c.l.b16 %v267
      %v331 = vunpack.c.l.b16 %v268
      %v332 = vunpack.c.l.b16 %v269
      %v333 = vunpack.c.l.b16 %v270
      %v334 = vunpack.c.l.b16 %v271
      %v335 = vunpack.c.l.b16 %v272
      %v336 = vunpack.c.l.b16 %v273
      %v337 = vunpack.c.l.b16 %v274
      %v338 = vunpack.c.l.b16 %v275
      %v339 = vunpack.c.l.b16 %v276
      %v340 = vunpack.c.l.b16 %v277
      %v341 = vpack.c.b16 %v317, %v316
      %v342 = vpack.c.b16 %v319, %v318
      %v343 = vpack.c.b16 %v321, %v320
      %v344 = vpack.c.b16 %v323, %v322
      %v345 = vpack.c.b16 %v325, %v324
      %v346 = vpack.c.b16 %v327, %v326
      %v347 = vpack.c.b16 %v329, %v328
      %v348 = vpack.c.b16 %v331, %v330
      %v349 = vpack.c.b16 %v333, %v332
      %v350 = vpack.c.b16 %v335, %v334
      %v351 = vpack.c.b16 %v337, %v336
      %v352 = vpack.c.b16 %v339, %v338
      %v353 = vpack.c.b16 %v340, %v340
      %v360 = vunpack.c.l.b16 %v278
      %v361 = vunpack.c.l.b16 %v279
      %v362 = vunpack.c.l.b16 %v280
      %v363 = vunpack.c.l.b16 %v281
      %v364 = vunpack.c.l.b16 %v282
      %v365 = vunpack.c.l.b16 %v283
      %v366 = vpack.c.b16 %v361, %v360
      %v367 = vpack.c.b16 %v363, %v362
      %v368 = vpack.c.b16 %v365, %v364
      %vm372 = vcmask 392192
      %v374 = vsel %vm372, %v341, 0
      %v377 = vsel %vm372, %v342, 0
      %v380 = vsel %vm372, %v343, 0
      %v383 = vsel %vm372, %v344, 0
      %v386 = vsel %vm372, %v345, 0
      %v389 = vsel %vm372, %v346, 0
      %v392 = vsel %vm372, %v347, 0
      %v395 = vsel %vm372, %v348, 0
      %v398 = vsel %vm372, %v349, 0
      %v401 = vsel %vm372, %v350, 0
      %v404 = vsel %vm372, %v351, 0
      %v407 = vsel %vm372, %v352, 0
      %v410 = vsel %vm372, %v353, 0
      %412 = vmatprep.subr.bf16.mxu0 0
      %413 = vmatpush1.bf16.msra.mxu0 %v366
      %414 = vmatprep.subr.bf16.mxu0 0
      %415 = vmatpush1.bf16.msra.mxu0 %v367
      %416 = vmatprep.subr.bf16.mxu0 0
      %417 = vmatpush1.bf16.msra.mxu0 %v368
      %418 = vmatprep.subr.bf16.mxu0 0
      %419 = vmatpush1.bf16.msra.mxu0 0
      %420 = vmatprep.subr.bf16.mxu0 0
      %421 = vmatpush1.bf16.msra.mxu0 0
      %422 = vmatprep.subr.bf16.mxu0 0
      %423 = vmatpush1.bf16.msra.mxu0 0
      %424 = vmatprep.subr.bf16.mxu0 0
      %425 = vmatpush1.bf16.msra.mxu0 0
      %426 = vmatprep.subr.bf16.mxu0 0
      %427 = vmatpush1.bf16.msra.mxu0 0
      %428 = vmatprep.subr.bf16.mxu0 0
      %429 = vmatpush1.bf16.msra.mxu0 0
      %430 = vmatprep.subr.bf16.mxu0 0
      %431 = vmatpush1.bf16.msra.mxu0 0
      %432 = vmatprep.subr.bf16.mxu0 0
      %433 = vmatpush1.bf16.msra.mxu0 0
      %434 = vmatprep.subr.bf16.mxu0 0
      %435 = vmatpush1.bf16.msra.mxu0 0
      %436 = vmatprep.subr.bf16.mxu0 0
      %437 = vmatpush1.bf16.msra.mxu0 0
      %438 = vmatprep.subr.bf16.mxu0 0
      %439 = vmatpush1.bf16.msra.mxu0 0
      %440 = vmatprep.subr.bf16.mxu0 0
      %441 = vmatpush1.bf16.msra.mxu0 0
      %442 = vmatprep.subr.bf16.mxu0 0
      %443 = vmatpush1.bf16.msra.mxu0 0
      %444 = vmatprep.mubr.bf16.mxu0 0
      %445 = vmatmul.mubr.bf16.gmra.mrb[0].mxu0 %v374
      %v446 = vpop.f32.mrb[0].mxu0
      %v447 = vadd.f32 %v289, %v446
      %v448 = vpop.f32.mrb[0].mxu0
      %v449 = vpop.f32.mrb[0].mxu0
      %v450 = vadd.f32 %v289, %v449
      %v451 = vpop.f32.mrb[0].mxu0
      %452 = vmatprep.mubr.bf16.mxu0 0
      %453 = vmatmul.mubr.bf16.gmra.mrb[0].mxu0 %v377
      %v454 = vpop.f32.mrb[0].mxu0
      %v455 = vadd.f32 %v289, %v454
      %v456 = vpop.f32.mrb[0].mxu0
      %v457 = vpop.f32.mrb[0].mxu0
      %v458 = vadd.f32 %v289, %v457
      %v459 = vpop.f32.mrb[0].mxu0
      %460 = vmatprep.mubr.bf16.mxu0 0
      %461 = vmatmul.mubr.bf16.gmra.mrb[0].mxu0 %v380
      %v462 = vpop.f32.mrb[0].mxu0
      %v463 = vadd.f32 %v289, %v462
      %v464 = vpop.f32.mrb[0].mxu0
      %v465 = vpop.f32.mrb[0].mxu0
      %v466 = vadd.f32 %v289, %v465
      %v467 = vpop.f32.mrb[0].mxu0
      %468 = vmatprep.mubr.bf16.mxu0 0
      %469 = vmatmul.mubr.bf16.gmra.mrb[0].mxu0 %v383
      %v470 = vpop.f32.mrb[0].mxu0
      %v471 = vadd.f32 %v289, %v470
      %v472 = vpop.f32.mrb[0].mxu0
      %v473 = vpop.f32.mrb[0].mxu0
      %v474 = vadd.f32 %v289, %v473
      %v475 = vpop.f32.mrb[0].mxu0
      %476 = vmatprep.mubr.bf16.mxu0 0
      %477 = vmatmul.mubr.bf16.gmra.mrb[0].mxu0 %v386
      %v478 = vpop.f32.mrb[0].mxu0
      %v479 = vadd.f32 %v289, %v478
      %v480 = vpop.f32.mrb[0].mxu0
      %v481 = vpop.f32.mrb[0].mxu0
      %v482 = vadd.f32 %v289, %v481
      %v483 = vpop.f32.mrb[0].mxu0
      %484 = vmatprep.mubr.bf16.mxu0 0
      %485 = vmatmul.mubr.bf16.gmra.mrb[0].mxu0 %v389
      %v486 = vpop.f32.mrb[0].mxu0
      %v487 = vadd.f32 %v289, %v486
      %v488 = vpop.f32.mrb[0].mxu0
      %v489 = vpop.f32.mrb[0].mxu0
      %v490 = vadd.f32 %v289, %v489
      %v491 = vpop.f32.mrb[0].mxu0
      %492 = vmatprep.mubr.bf16.mxu0 0
      %493 = vmatmul.mubr.bf16.gmra.mrb[0].mxu0 %v392
      %v494 = vpop.f32.mrb[0].mxu0
      %v495 = vadd.f32 %v289, %v494
      %v496 = vpop.f32.mrb[0].mxu0
      %v497 = vpop.f32.mrb[0].mxu0
      %v498 = vadd.f32 %v289, %v497
      %v499 = vpop.f32.mrb[0].mxu0
      %500 = vmatprep.mubr.bf16.mxu0 0
      %501 = vmatmul.mubr.bf16.gmra.mrb[0].mxu0 %v395
      %v502 = vpop.f32.mrb[0].mxu0
      %v503 = vadd.f32 %v289, %v502
      %v504 = vpop.f32.mrb[0].mxu0
      %v505 = vpop.f32.mrb[0].mxu0
      %v506 = vadd.f32 %v289, %v505
      %v507 = vpop.f32.mrb[0].mxu0
      %508 = vmatprep.mubr.bf16.mxu0 0
      %509 = vmatmul.mubr.bf16.gmra.mrb[0].mxu0 %v398
      %v510 = vpop.f32.mrb[0].mxu0
      %v511 = vadd.f32 %v289, %v510
      %v512 = vpop.f32.mrb[0].mxu0
      %v513 = vpop.f32.mrb[0].mxu0
      %v514 = vadd.f32 %v289, %v513
      %v515 = vpop.f32.mrb[0].mxu0
      %516 = vmatprep.mubr.bf16.mxu0 0
      %517 = vmatmul.mubr.bf16.gmra.mrb[0].mxu0 %v401
      %v518 = vpop.f32.mrb[0].mxu0
      %v519 = vadd.f32 %v289, %v518
      %v520 = vpop.f32.mrb[0].mxu0
      %v521 = vpop.f32.mrb[0].mxu0
      %v522 = vadd.f32 %v289, %v521
      %v523 = vpop.f32.mrb[0].mxu0
      %524 = vmatprep.mubr.bf16.mxu0 0
      %525 = vmatmul.mubr.bf16.gmra.mrb[0].mxu0 %v404
      %v526 = vpop.f32.mrb[0].mxu0
      %v527 = vadd.f32 %v289, %v526
      %v528 = vpop.f32.mrb[0].mxu0
      %v529 = vpop.f32.mrb[0].mxu0
      %v530 = vadd.f32 %v289, %v529
      %v531 = vpop.f32.mrb[0].mxu0
      %532 = vmatprep.mubr.bf16.mxu0 0
      %533 = vmatmul.mubr.bf16.gmra.mrb[0].mxu0 %v407
      %v534 = vpop.f32.mrb[0].mxu0
      %v535 = vadd.f32 %v289, %v534
      %v536 = vpop.f32.mrb[0].mxu0
      %v537 = vpop.f32.mrb[0].mxu0
      %v538 = vadd.f32 %v289, %v537
      %v539 = vpop.f32.mrb[0].mxu0
      %540 = vmatprep.mubr.bf16.mxu0 0
      %541 = vmatmul.mubr.bf16.gmra.mrb[0].mxu0 %v410
      %v542 = vpop.f32.mrb[0].mxu0
      %v543 = vadd.f32 %v289, %v542
      %v544 = vpop.f32.mrb[0].mxu0
      %v545 = vpop.f32.mrb[0].mxu0
      %v546 = vpop.f32.mrb[0].mxu0
      %547 = vdwg.mxu0
      %v548 = vmax.f32 %v447, 0.0
      %v549 = vmax.f32 %v450, 0.0
      %v550 = vmax.f32 %v455, 0.0
      %v551 = vmax.f32 %v458, 0.0
      %v552 = vmax.f32 %v463, 0.0
      %v553 = vmax.f32 %v466, 0.0
      %v554 = vmax.f32 %v471, 0.0
      %v555 = vmax.f32 %v474, 0.0
      %v556 = vmax.f32 %v479, 0.0
      %v557 = vmax.f32 %v482, 0.0
      %v558 = vmax.f32 %v487, 0.0
      %v559 = vmax.f32 %v490, 0.0
      %v560 = vmax.f32 %v495, 0.0
      %v561 = vmax.f32 %v498, 0.0
      %v562 = vmax.f32 %v503, 0.0
      %v563 = vmax.f32 %v506, 0.0
      %v564 = vmax.f32 %v511, 0.0
      %v565 = vmax.f32 %v514, 0.0
      %v566 = vmax.f32 %v519, 0.0
      %v567 = vmax.f32 %v522, 0.0
      %v568 = vmax.f32 %v527, 0.0
      %v569 = vmax.f32 %v530, 0.0
      %v570 = vmax.f32 %v535, 0.0
      %v571 = vmax.f32 %v538, 0.0
      %v572 = vmax.f32 %v543, 0.0
      %v573 = vpack.c.bf16 %v549, %v548
      %v574 = vpack.c.bf16 %v551, %v550
      %v575 = vpack.c.bf16 %v553, %v552
      %v576 = vpack.c.bf16 %v555, %v554
      %v577 = vpack.c.bf16 %v557, %v556
      %v578 = vpack.c.bf16 %v559, %v558
      %v579 = vpack.c.bf16 %v561, %v560
      %v580 = vpack.c.bf16 %v563, %v562
      %v581 = vpack.c.bf16 %v565, %v564
      %v582 = vpack.c.bf16 %v567, %v566
      %v583 = vpack.c.bf16 %v569, %v568
      %v584 = vpack.c.bf16 %v571, %v570
      %v585 = vpack.c.bf16 %v572, %v572
      %v586 = vld [vmem:[%s3] sm:$0xff]
      %v587 = vld [vmem:[%s3 + $0x8] sm:$0xff]
      %v588 = vld [vmem:[%s3 + $0x10] sm:$0xff]
      %v589 = vld [vmem:[%s3 + $0x18] sm:$0xff]
      %v590 = vld [vmem:[%s3 + $0x20] sm:$0xff]
      %v591 = vld [vmem:[%s3 + $0x28] sm:$0xff]
      %v592 = vld [vmem:[%s3 + $0x30] sm:$0x11]
      %v600 = vunpack.c.l.b16 %v586
      %v601 = vunpack.c.h.b16 %v586
      %v602 = vunpack.c.l.b16 %v587
      %v603 = vunpack.c.h.b16 %v587
      %v604 = vunpack.c.l.b16 %v588
      %v605 = vunpack.c.h.b16 %v588
      %v606 = vunpack.c.l.b16 %v589
      %v607 = vunpack.c.h.b16 %v589
      %v608 = vunpack.c.l.b16 %v590
      %v609 = vunpack.c.h.b16 %v590
      %v610 = vunpack.c.l.b16 %v591
      %v611 = vunpack.c.h.b16 %v591
      %v612 = vunpack.c.l.b16 %v592
      %v613 = vunpack.c.h.b16 %v592
      %v614 = vpack.c.b16 %v602, %v600
      %v615 = vpack.c.b16 %v603, %v601
      %v616 = vpack.c.b16 %v606, %v604
      %v617 = vpack.c.b16 %v607, %v605
      %v618 = vpack.c.b16 %v610, %v608
      %v619 = vpack.c.b16 %v611, %v609
      %v620 = vpack.c.b16 %v612, %v612
      %v621 = vpack.c.b16 %v613, %v613
      %vm626 = vcmask 556032
      %v628 = vsel %vm626, %v615, 0
      %v631 = vsel %vm626, %v617, 0
      %v634 = vsel %vm626, %v619, 0
      %v637 = vsel %vm626, %v621, 0
      %vm639 = vcmask 1041408
      %v641 = vsel %vm639, %v585, 0
      %643 = vmatprep.subr.bf16.mxu0 0
      %644 = vmatpush1.bf16.msra.mxu0 %v573
      %645 = vmatprep.subr.bf16.mxu0 0
      %646 = vmatpush1.bf16.msra.mxu0 %v574
      %647 = vmatprep.subr.bf16.mxu0 0
      %648 = vmatpush1.bf16.msra.mxu0 %v575
      %649 = vmatprep.subr.bf16.mxu0 0
      %650 = vmatpush1.bf16.msra.mxu0 %v576
      %651 = vmatprep.subr.bf16.mxu0 0
      %652 = vmatpush1.bf16.msra.mxu0 %v577
      %653 = vmatprep.subr.bf16.mxu0 0
      %654 = vmatpush1.bf16.msra.mxu0 %v578
      %655 = vmatprep.subr.bf16.mxu0 0
      %656 = vmatpush1.bf16.msra.mxu0 %v579
      %657 = vmatprep.subr.bf16.mxu0 0
      %658 = vmatpush1.bf16.msra.mxu0 %v580
      %659 = vmatprep.subr.bf16.mxu0 0
      %660 = vmatpush1.bf16.msra.mxu0 %v581
      %661 = vmatprep.subr.bf16.mxu0 0
      %662 = vmatpush1.bf16.msra.mxu0 %v582
      %663 = vmatprep.subr.bf16.mxu0 0
      %664 = vmatpush1.bf16.msra.mxu0 %v583
      %665 = vmatprep.subr.bf16.mxu0 0
      %666 = vmatpush1.bf16.msra.mxu0 %v584
      %667 = vmatprep.subr.bf16.mxu0 0
      %668 = vmatpush1.bf16.msra.mxu0 %v641
      %669 = vmatprep.subr.bf16.mxu0 0
      %670 = vmatpush1.bf16.msra.mxu0 0
      %671 = vmatprep.subr.bf16.mxu0 0
      %672 = vmatpush1.bf16.msra.mxu0 0
      %673 = vmatprep.subr.bf16.mxu0 0
      %674 = vmatpush1.bf16.msra.mxu0 0
      %675 = vmatprep.mubr.bf16.mxu0 %v628
      %676 = vmatmul.mubr.bf16.gmra.mrb[0].mxu0 %v614
      %v677 = vpop.f32.mrb[0].mxu0
      %v678 = vadd.f32 0.0, %v677
      %v679 = vpop.f32.mrb[0].mxu0
      %v680 = vpop.f32.mrb[0].mxu0
      %v681 = vadd.f32 0.0, %v680
      %v682 = vpop.f32.mrb[0].mxu0
      %683 = vmatprep.mubr.bf16.mxu0 %v631
      %684 = vmatmul.mubr.bf16.gmra.mrb[0].mxu0 %v616
      %v685 = vpop.f32.mrb[0].mxu0
      %v686 = vadd.f32 0.0, %v685
      %v687 = vpop.f32.mrb[0].mxu0
      %v688 = vpop.f32.mrb[0].mxu0
      %v689 = vadd.f32 0.0, %v688
      %v690 = vpop.f32.mrb[0].mxu0
      %691 = vmatprep.mubr.bf16.mxu0 %v634
      %692 = vmatmul.mubr.bf16.gmra.mrb[0].mxu0 %v618
      %v693 = vpop.f32.mrb[0].mxu0
      %v694 = vadd.f32 0.0, %v693
      %v695 = vpop.f32.mrb[0].mxu0
      %v696 = vpop.f32.mrb[0].mxu0
      %v697 = vadd.f32 0.0, %v696
      %v698 = vpop.f32.mrb[0].mxu0
      %699 = vmatprep.mubr.bf16.mxu0 %v637
      %700 = vmatmul.mubr.bf16.gmra.mrb[0].mxu0 %v620
      %v701 = vpop.f32.mrb[0].mxu0
      %v702 = vadd.f32 0.0, %v701
      %v703 = vpop.f32.mrb[0].mxu0
      %v704 = vpop.f32.mrb[0].mxu0
      %v705 = vpop.f32.mrb[0].mxu0
      %706 = vdwg.mxu0
      %v707 = vld [vmem:[%s4] sm:$0xff]
      %v708 = vld [vmem:[%s4 + $0x8] sm:$0x3]
      %s709 = scalar_lea.vmem %s3, 56
      %v710 = vld [vmem:[%s709] sm:$0xff]
      %v711 = vld [vmem:[%s709 + $0x8] sm:$0xff]
      %v712 = vld [vmem:[%s709 + $0x10] sm:$0xff]
      %v713 = vld [vmem:[%s709 + $0x18] sm:$0xff]
      %v714 = vld [vmem:[%s709 + $0x20] sm:$0xff]
      %v715 = vld [vmem:[%s709 + $0x28] sm:$0xff]
      %v716 = vld [vmem:[%s709 + $0x30] sm:$0x11]
      %v724 = vunpack.c.l.b16 %v710
      %v725 = vunpack.c.h.b16 %v710
      %v726 = vunpack.c.l.b16 %v711
      %v727 = vunpack.c.h.b16 %v711
      %v728 = vunpack.c.l.b16 %v712
      %v729 = vunpack.c.h.b16 %v712
      %v730 = vunpack.c.l.b16 %v713
      %v731 = vunpack.c.h.b16 %v713
      %v732 = vunpack.c.l.b16 %v714
      %v733 = vunpack.c.h.b16 %v714
      %v734 = vunpack.c.l.b16 %v715
      %v735 = vunpack.c.h.b16 %v715
      %v736 = vunpack.c.l.b16 %v716
      %v737 = vunpack.c.h.b16 %v716
      %v738 = vpack.c.b16 %v726, %v724
      %v739 = vpack.c.b16 %v727, %v725
      %v740 = vpack.c.b16 %v730, %v728
      %v741 = vpack.c.b16 %v731, %v729
      %v742 = vpack.c.b16 %v734, %v732
      %v743 = vpack.c.b16 %v735, %v733
      %v744 = vpack.c.b16 %v736, %v736
      %v745 = vpack.c.b16 %v737, %v737
      %v751 = vsel %vm626, %v739, 0
      %v754 = vsel %vm626, %v741, 0
      %v757 = vsel %vm626, %v743, 0
      %v760 = vsel %vm626, %v745, 0
      %762 = vmatprep.subr.bf16.mxu0 0
      %763 = vmatpush1.bf16.msra.mxu0 %v573
      %764 = vmatprep.subr.bf16.mxu0 0
      %765 = vmatpush1.bf16.msra.mxu0 %v574
      %766 = vmatprep.subr.bf16.mxu0 0
      %767 = vmatpush1.bf16.msra.mxu0 %v575
      %768 = vmatprep.subr.bf16.mxu0 0
      %769 = vmatpush1.bf16.msra.mxu0 %v576
      %770 = vmatprep.subr.bf16.mxu0 0
      %771 = vmatpush1.bf16.msra.mxu0 %v577
      %772 = vmatprep.subr.bf16.mxu0 0
      %773 = vmatpush1.bf16.msra.mxu0 %v578
      %774 = vmatprep.subr.bf16.mxu0 0
      %775 = vmatpush1.bf16.msra.mxu0 %v579
      %776 = vmatprep.subr.bf16.mxu0 0
      %777 = vmatpush1.bf16.msra.mxu0 %v580
      %778 = vmatprep.subr.bf16.mxu0 0
      %779 = vmatpush1.bf16.msra.mxu0 %v581
      %780 = vmatprep.subr.bf16.mxu0 0
      %781 = vmatpush1.bf16.msra.mxu0 %v582
      %782 = vmatprep.subr.bf16.mxu0 0
      %783 = vmatpush1.bf16.msra.mxu0 %v583
      %784 = vmatprep.subr.bf16.mxu0 0
      %785 = vmatpush1.bf16.msra.mxu0 %v584
      %786 = vmatprep.subr.bf16.mxu0 0
      %787 = vmatpush1.bf16.msra.mxu0 %v641
      %788 = vmatprep.subr.bf16.mxu0 0
      %789 = vmatpush1.bf16.msra.mxu0 0
      %790 = vmatprep.subr.bf16.mxu0 0
      %791 = vmatpush1.bf16.msra.mxu0 0
      %792 = vmatprep.subr.bf16.mxu0 0
      %793 = vmatpush1.bf16.msra.mxu0 0
      %794 = vmatprep.mubr.bf16.mxu0 %v751
      %795 = vmatmul.mubr.bf16.gmra.mrb[0].mxu0 %v738
      %v796 = vpop.f32.mrb[0].mxu0
      %v797 = vadd.f32 0.0, %v796
      %v798 = vpop.f32.mrb[0].mxu0
      %v799 = vpop.f32.mrb[0].mxu0
      %v800 = vadd.f32 0.0, %v799
      %v801 = vpop.f32.mrb[0].mxu0
      %802 = vmatprep.mubr.bf16.mxu0 %v754
      %803 = vmatmul.mubr.bf16.gmra.mrb[0].mxu0 %v740
      %v804 = vpop.f32.mrb[0].mxu0
      %v805 = vadd.f32 0.0, %v804
      %v806 = vpop.f32.mrb[0].mxu0
      %v807 = vpop.f32.mrb[0].mxu0
      %v808 = vadd.f32 0.0, %v807
      %v809 = vpop.f32.mrb[0].mxu0
      %810 = vmatprep.mubr.bf16.mxu0 %v757
      %811 = vmatmul.mubr.bf16.gmra.mrb[0].mxu0 %v742
      %v812 = vpop.f32.mrb[0].mxu0
      %v813 = vadd.f32 0.0, %v812
      %v814 = vpop.f32.mrb[0].mxu0
      %v815 = vpop.f32.mrb[0].mxu0
      %v816 = vadd.f32 0.0, %v815
      %v817 = vpop.f32.mrb[0].mxu0
      %818 = vmatprep.mubr.bf16.mxu0 %v760
      %819 = vmatmul.mubr.bf16.gmra.mrb[0].mxu0 %v744
      %v820 = vpop.f32.mrb[0].mxu0
      %v821 = vadd.f32 0.0, %v820
      %v822 = vpop.f32.mrb[0].mxu0
      %v823 = vpop.f32.mrb[0].mxu0
      %v824 = vpop.f32.mrb[0].mxu0
      %825 = vdwg.mxu0
      %s826 = scalar_lea.vmem %s4, 16
      %v827 = vld [vmem:[%s826] sm:$0xff]
      %v828 = vld [vmem:[%s826 + $0x8] sm:$0x3]
      %vm829 = vcmask 80896
      %v831 = vsel %vm829, %v797, 0
      %v834 = vsel %vm829, %v800, 0
      %v837 = vsel %vm829, %v805, 0
      %v840 = vsel %vm829, %v808, 0
      %v843 = vsel %vm829, %v813, 0
      %v846 = vsel %vm829, %v816, 0
      %v849 = vsel %vm829, %v821, 0
      %v852 = vsel %vm639, %v828, 0
      %854 = vmatprep.subr.mxu0 0.0
      %855 = vmatpush1.msra.mxu0 %v827
      %856 = vmatprep.subr.mxu0 0.0
      %857 = vmatpush1.msra.mxu0 %v852
      %858 = vmatprep.subr.mxu0 0.0
      %859 = vmatpush1.msra.mxu0 0.0
      %860 = vmatprep.subr.mxu0 0.0
      %861 = vmatpush1.msra.mxu0 0.0
      %862 = vmatprep.subr.mxu0 0.0
      %863 = vmatpush1.msra.mxu0 0.0
      %864 = vmatprep.subr.mxu0 0.0
      %865 = vmatpush1.msra.mxu0 0.0
      %866 = vmatprep.subr.mxu0 0.0
      %867 = vmatpush1.msra.mxu0 0.0
      %868 = vmatprep.subr.mxu0 0.0
      %869 = vmatpush1.msra.mxu0 0.0
      %870 = vmatprep.subr.mxu0 0.0
      %871 = vmatpush1.msra.mxu0 0.0
      %872 = vmatprep.subr.mxu0 0.0
      %873 = vmatpush1.msra.mxu0 0.0
      %874 = vmatprep.subr.mxu0 0.0
      %875 = vmatpush1.msra.mxu0 0.0
      %876 = vmatprep.subr.mxu0 0.0
      %877 = vmatpush1.msra.mxu0 0.0
      %878 = vmatprep.subr.mxu0 0.0
      %879 = vmatpush1.msra.mxu0 0.0
      %880 = vmatprep.subr.mxu0 0.0
      %881 = vmatpush1.msra.mxu0 0.0
      %882 = vmatprep.subr.mxu0 0.0
      %883 = vmatpush1.msra.mxu0 0.0
      %884 = vmatprep.subr.mxu0 0.0
      %885 = vmatpush1.msra.mxu0 0.0
      %886 = vmatprep.subr.mxu0 0.0
      %887 = vmatpush1.msra.mxu0 0.0
      %888 = vmatprep.subr.mxu0 0.0
      %889 = vmatpush1.msra.mxu0 0.0
      %890 = vmatprep.subr.mxu0 0.0
      %891 = vmatpush1.msra.mxu0 0.0
      %892 = vmatprep.subr.mxu0 0.0
      %893 = vmatpush1.msra.mxu0 0.0
      %894 = vmatprep.subr.mxu0 0.0
      %895 = vmatpush1.msra.mxu0 0.0
      %896 = vmatprep.subr.mxu0 0.0
      %897 = vmatpush1.msra.mxu0 0.0
      %898 = vmatprep.subr.mxu0 0.0
      %899 = vmatpush1.msra.mxu0 0.0
      %900 = vmatprep.subr.mxu0 0.0
      %901 = vmatpush1.msra.mxu0 0.0
      %902 = vmatprep.subr.mxu0 0.0
      %903 = vmatpush1.msra.mxu0 0.0
      %904 = vmatprep.subr.mxu0 0.0
      %905 = vmatpush1.msra.mxu0 0.0
      %906 = vmatprep.subr.mxu0 0.0
      %907 = vmatpush1.msra.mxu0 0.0
      %908 = vmatprep.subr.mxu0 0.0
      %909 = vmatpush1.msra.mxu0 0.0
      %910 = vmatprep.subr.mxu0 0.0
      %911 = vmatpush1.msra.mxu0 0.0
      %912 = vmatprep.subr.mxu0 0.0
      %913 = vmatpush1.msra.mxu0 0.0
      %914 = vmatprep.subr.mxu0 0.0
      %915 = vmatpush1.msra.mxu0 0.0
      %916 = vmatprep.subr.mxu0 0.0
      %917 = vmatpush1.msra.mxu0 0.0
      %918 = vmatprep.mubr.f32.mxu0 0.0
      %919 = vmatmul.mubr.f32.gmra.mrb[0].mxu0 %v831
      %v920 = vpop.f32.mrb[0].mxu0
      %v921 = vadd.f32 0.0, %v920
      %v922 = vpop.f32.mrb[0].mxu0
      %923 = vmatprep.mubr.f32.mxu0 0.0
      %924 = vmatmul.mubr.f32.gmra.mrb[0].mxu0 %v834
      %v925 = vpop.f32.mrb[0].mxu0
      %v926 = vadd.f32 0.0, %v925
      %v927 = vpop.f32.mrb[0].mxu0
      %928 = vmatprep.mubr.f32.mxu0 0.0
      %929 = vmatmul.mubr.f32.gmra.mrb[0].mxu0 %v837
      %v930 = vpop.f32.mrb[0].mxu0
      %v931 = vadd.f32 0.0, %v930
      %v932 = vpop.f32.mrb[0].mxu0
      %933 = vmatprep.mubr.f32.mxu0 0.0
      %934 = vmatmul.mubr.f32.gmra.mrb[0].mxu0 %v840
      %v935 = vpop.f32.mrb[0].mxu0
      %v936 = vadd.f32 0.0, %v935
      %v937 = vpop.f32.mrb[0].mxu0
      %938 = vmatprep.mubr.f32.mxu0 0.0
      %939 = vmatmul.mubr.f32.gmra.mrb[0].mxu0 %v843
      %v940 = vpop.f32.mrb[0].mxu0
      %v941 = vadd.f32 0.0, %v940
      %v942 = vpop.f32.mrb[0].mxu0
      %943 = vmatprep.mubr.f32.mxu0 0.0
      %944 = vmatmul.mubr.f32.gmra.mrb[0].mxu0 %v846
      %v945 = vpop.f32.mrb[0].mxu0
      %v946 = vadd.f32 0.0, %v945
      %v947 = vpop.f32.mrb[0].mxu0
      %948 = vmatprep.mubr.f32.mxu0 0.0
      %949 = vmatmul.mubr.f32.gmra.mrb[0].mxu0 %v849
      %v950 = vpop.f32.mrb[0].mxu0
      %v951 = vadd.f32 0.0, %v950
      %v952 = vpop.f32.mrb[0].mxu0
      %953 = vdwg.mxu0
      %v955 = vsel %vm829, %v678, 0
      %v958 = vsel %vm829, %v681, 0
      %v961 = vsel %vm829, %v686, 0
      %v964 = vsel %vm829, %v689, 0
      %v967 = vsel %vm829, %v694, 0
      %v970 = vsel %vm829, %v697, 0
      %v973 = vsel %vm829, %v702, 0
      %v976 = vsel %vm639, %v708, 0
      %978 = vmatprep.subr.mxu0 0.0
      %979 = vmatpush1.msra.mxu0 %v707
      %980 = vmatprep.subr.mxu0 0.0
      %981 = vmatpush1.msra.mxu0 %v976
      %982 = vmatprep.subr.mxu0 0.0
      %983 = vmatpush1.msra.mxu0 0.0
      %984 = vmatprep.subr.mxu0 0.0
      %985 = vmatpush1.msra.mxu0 0.0
      %986 = vmatprep.subr.mxu0 0.0
      %987 = vmatpush1.msra.mxu0 0.0
      %988 = vmatprep.subr.mxu0 0.0
      %989 = vmatpush1.msra.mxu0 0.0
      %990 = vmatprep.subr.mxu0 0.0
      %991 = vmatpush1.msra.mxu0 0.0
      %992 = vmatprep.subr.mxu0 0.0
      %993 = vmatpush1.msra.mxu0 0.0
      %994 = vmatprep.subr.mxu0 0.0
      %995 = vmatpush1.msra.mxu0 0.0
      %996 = vmatprep.subr.mxu0 0.0
      %997 = vmatpush1.msra.mxu0 0.0
      %998 = vmatprep.subr.mxu0 0.0
      %999 = vmatpush1.msra.mxu0 0.0
      %1000 = vmatprep.subr.mxu0 0.0
      %1001 = vmatpush1.msra.mxu0 0.0
      %1002 = vmatprep.subr.mxu0 0.0
      %1003 = vmatpush1.msra.mxu0 0.0
      %1004 = vmatprep.subr.mxu0 0.0
      %1005 = vmatpush1.msra.mxu0 0.0
      %1006 = vmatprep.subr.mxu0 0.0
      %1007 = vmatpush1.msra.mxu0 0.0
      %1008 = vmatprep.subr.mxu0 0.0
      %1009 = vmatpush1.msra.mxu0 0.0
      %1010 = vmatprep.subr.mxu0 0.0
      %1011 = vmatpush1.msra.mxu0 0.0
      %1012 = vmatprep.subr.mxu0 0.0
      %1013 = vmatpush1.msra.mxu0 0.0
      %1014 = vmatprep.subr.mxu0 0.0
      %1015 = vmatpush1.msra.mxu0 0.0
      %1016 = vmatprep.subr.mxu0 0.0
      %1017 = vmatpush1.msra.mxu0 0.0
      %1018 = vmatprep.subr.mxu0 0.0
      %1019 = vmatpush1.msra.mxu0 0.0
      %1020 = vmatprep.subr.mxu0 0.0
      %1021 = vmatpush1.msra.mxu0 0.0
      %1022 = vmatprep.subr.mxu0 0.0
      %1023 = vmatpush1.msra.mxu0 0.0
      %1024 = vmatprep.subr.mxu0 0.0
      %1025 = vmatpush1.msra.mxu0 0.0
      %1026 = vmatprep.subr.mxu0 0.0
      %1027 = vmatpush1.msra.mxu0 0.0
      %1028 = vmatprep.subr.mxu0 0.0
      %1029 = vmatpush1.msra.mxu0 0.0
      %1030 = vmatprep.subr.mxu0 0.0
      %1031 = vmatpush1.msra.mxu0 0.0
      %1032 = vmatprep.subr.mxu0 0.0
      %1033 = vmatpush1.msra.mxu0 0.0
      %1034 = vmatprep.subr.mxu0 0.0
      %1035 = vmatpush1.msra.mxu0 0.0
      %1036 = vmatprep.subr.mxu0 0.0
      %1037 = vmatpush1.msra.mxu0 0.0
      %1038 = vmatprep.subr.mxu0 0.0
      %1039 = vmatpush1.msra.mxu0 0.0
      %1040 = vmatprep.subr.mxu0 0.0
      %1041 = vmatpush1.msra.mxu0 0.0
      %1042 = vmatprep.mubr.f32.mxu0 0.0
      %1043 = vmatmul.mubr.f32.gmra.mrb[0].mxu0 %v955
      %v1044 = vpop.f32.mrb[0].mxu0
      %v1045 = vadd.f32 %v921, %v1044
      %v1046 = vpop.f32.mrb[0].mxu0
      %1047 = vmatprep.mubr.f32.mxu0 0.0
      %1048 = vmatmul.mubr.f32.gmra.mrb[0].mxu0 %v958
      %v1049 = vpop.f32.mrb[0].mxu0
      %v1050 = vadd.f32 %v926, %v1049
      %v1051 = vpop.f32.mrb[0].mxu0
      %1052 = vmatprep.mubr.f32.mxu0 0.0
      %1053 = vmatmul.mubr.f32.gmra.mrb[0].mxu0 %v961
      %v1054 = vpop.f32.mrb[0].mxu0
      %v1055 = vadd.f32 %v931, %v1054
      %v1056 = vpop.f32.mrb[0].mxu0
      %1057 = vmatprep.mubr.f32.mxu0 0.0
      %1058 = vmatmul.mubr.f32.gmra.mrb[0].mxu0 %v964
      %v1059 = vpop.f32.mrb[0].mxu0
      %v1060 = vadd.f32 %v936, %v1059
      %v1061 = vpop.f32.mrb[0].mxu0
      %1062 = vmatprep.mubr.f32.mxu0 0.0
      %1063 = vmatmul.mubr.f32.gmra.mrb[0].mxu0 %v967
      %v1064 = vpop.f32.mrb[0].mxu0
      %v1065 = vadd.f32 %v941, %v1064
      %v1066 = vpop.f32.mrb[0].mxu0
      %1067 = vmatprep.mubr.f32.mxu0 0.0
      %1068 = vmatmul.mubr.f32.gmra.mrb[0].mxu0 %v970
      %v1069 = vpop.f32.mrb[0].mxu0
      %v1070 = vadd.f32 %v946, %v1069
      %v1071 = vpop.f32.mrb[0].mxu0
      %1072 = vmatprep.mubr.f32.mxu0 0.0
      %1073 = vmatmul.mubr.f32.gmra.mrb[0].mxu0 %v973
      %v1074 = vpop.f32.mrb[0].mxu0
      %v1075 = vadd.f32 %v951, %v1074
      %v1076 = vpop.f32.mrb[0].mxu0
      %1077 = vdwg.mxu0
      %s1078 = scalar_lea.vmem %s3, 112
      %v1079 = vld [vmem:[%s1078] sm:$0xff]
      %v1080 = vld [vmem:[%s1078 + $0x8] sm:$0xff]
      %v1081 = vld [vmem:[%s1078 + $0x10] sm:$0xff]
      %v1082 = vld [vmem:[%s1078 + $0x18] sm:$0xff]
      %v1083 = vld [vmem:[%s1078 + $0x20] sm:$0xff]
      %v1084 = vld [vmem:[%s1078 + $0x28] sm:$0xff]
      %v1085 = vld [vmem:[%s1078 + $0x30] sm:$0x11]
      %v1093 = vunpack.c.l.b16 %v1079
      %v1094 = vunpack.c.h.b16 %v1079
      %v1095 = vunpack.c.l.b16 %v1080
      %v1096 = vunpack.c.h.b16 %v1080
      %v1097 = vunpack.c.l.b16 %v1081
      %v1098 = vunpack.c.h.b16 %v1081
      %v1099 = vunpack.c.l.b16 %v1082
      %v1100 = vunpack.c.h.b16 %v1082
      %v1101 = vunpack.c.l.b16 %v1083
      %v1102 = vunpack.c.h.b16 %v1083
      %v1103 = vunpack.c.l.b16 %v1084
      %v1104 = vunpack.c.h.b16 %v1084
      %v1105 = vunpack.c.l.b16 %v1085
      %v1106 = vunpack.c.h.b16 %v1085
      %v1107 = vpack.c.b16 %v1095, %v1093
      %v1108 = vpack.c.b16 %v1096, %v1094
      %v1109 = vpack.c.b16 %v1099, %v1097
      %v1110 = vpack.c.b16 %v1100, %v1098
      %v1111 = vpack.c.b16 %v1103, %v1101
      %v1112 = vpack.c.b16 %v1104, %v1102
      %v1113 = vpack.c.b16 %v1105, %v1105
      %v1114 = vpack.c.b16 %v1106, %v1106
      %v1120 = vsel %vm626, %v1108, 0
      %v1123 = vsel %vm626, %v1110, 0
      %v1126 = vsel %vm626, %v1112, 0
      %v1129 = vsel %vm626, %v1114, 0
      %1131 = vmatprep.subr.bf16.mxu0 0
      %1132 = vmatpush1.bf16.msra.mxu0 %v573
      %1133 = vmatprep.subr.bf16.mxu0 0
      %1134 = vmatpush1.bf16.msra.mxu0 %v574
      %1135 = vmatprep.subr.bf16.mxu0 0
      %1136 = vmatpush1.bf16.msra.mxu0 %v575
      %1137 = vmatprep.subr.bf16.mxu0 0
      %1138 = vmatpush1.bf16.msra.mxu0 %v576
      %1139 = vmatprep.subr.bf16.mxu0 0
      %1140 = vmatpush1.bf16.msra.mxu0 %v577
      %1141 = vmatprep.subr.bf16.mxu0 0
      %1142 = vmatpush1.bf16.msra.mxu0 %v578
      %1143 = vmatprep.subr.bf16.mxu0 0
      %1144 = vmatpush1.bf16.msra.mxu0 %v579
      %1145 = vmatprep.subr.bf16.mxu0 0
      %1146 = vmatpush1.bf16.msra.mxu0 %v580
      %1147 = vmatprep.subr.bf16.mxu0 0
      %1148 = vmatpush1.bf16.msra.mxu0 %v581
      %1149 = vmatprep.subr.bf16.mxu0 0
      %1150 = vmatpush1.bf16.msra.mxu0 %v582
      %1151 = vmatprep.subr.bf16.mxu0 0
      %1152 = vmatpush1.bf16.msra.mxu0 %v583
      %1153 = vmatprep.subr.bf16.mxu0 0
      %1154 = vmatpush1.bf16.msra.mxu0 %v584
      %1155 = vmatprep.subr.bf16.mxu0 0
      %1156 = vmatpush1.bf16.msra.mxu0 %v641
      %1157 = vmatprep.subr.bf16.mxu0 0
      %1158 = vmatpush1.bf16.msra.mxu0 0
      %1159 = vmatprep.subr.bf16.mxu0 0
      %1160 = vmatpush1.bf16.msra.mxu0 0
      %1161 = vmatprep.subr.bf16.mxu0 0
      %1162 = vmatpush1.bf16.msra.mxu0 0
      %1163 = vmatprep.mubr.bf16.mxu0 %v1120
      %1164 = vmatmul.mubr.bf16.gmra.mrb[0].mxu0 %v1107
      %v1165 = vpop.f32.mrb[0].mxu0
      %v1166 = vadd.f32 0.0, %v1165
      %v1167 = vpop.f32.mrb[0].mxu0
      %v1168 = vpop.f32.mrb[0].mxu0
      %v1169 = vadd.f32 0.0, %v1168
      %v1170 = vpop.f32.mrb[0].mxu0
      %1171 = vmatprep.mubr.bf16.mxu0 %v1123
      %1172 = vmatmul.mubr.bf16.gmra.mrb[0].mxu0 %v1109
      %v1173 = vpop.f32.mrb[0].mxu0
      %v1174 = vadd.f32 0.0, %v1173
      %v1175 = vpop.f32.mrb[0].mxu0
      %v1176 = vpop.f32.mrb[0].mxu0
      %v1177 = vadd.f32 0.0, %v1176
      %v1178 = vpop.f32.mrb[0].mxu0
      %1179 = vmatprep.mubr.bf16.mxu0 %v1126
      %1180 = vmatmul.mubr.bf16.gmra.mrb[0].mxu0 %v1111
      %v1181 = vpop.f32.mrb[0].mxu0
      %v1182 = vadd.f32 0.0, %v1181
      %v1183 = vpop.f32.mrb[0].mxu0
      %v1184 = vpop.f32.mrb[0].mxu0
      %v1185 = vadd.f32 0.0, %v1184
      %v1186 = vpop.f32.mrb[0].mxu0
      %1187 = vmatprep.mubr.bf16.mxu0 %v1129
      %1188 = vmatmul.mubr.bf16.gmra.mrb[0].mxu0 %v1113
      %v1189 = vpop.f32.mrb[0].mxu0
      %v1190 = vadd.f32 0.0, %v1189
      %v1191 = vpop.f32.mrb[0].mxu0
      %v1192 = vpop.f32.mrb[0].mxu0
      %v1193 = vpop.f32.mrb[0].mxu0
      %1194 = vdwg.mxu0
      %s1195 = scalar_lea.vmem %s4, 32
      %v1196 = vld [vmem:[%s1195] sm:$0xff]
      %v1197 = vld [vmem:[%s1195 + $0x8] sm:$0x3]
      %v1199 = vsel %vm829, %v1166, 0
      %v1202 = vsel %vm829, %v1169, 0
      %v1205 = vsel %vm829, %v1174, 0
      %v1208 = vsel %vm829, %v1177, 0
      %v1211 = vsel %vm829, %v1182, 0
      %v1214 = vsel %vm829, %v1185, 0
      %v1217 = vsel %vm829, %v1190, 0
      %v1220 = vsel %vm639, %v1197, 0
      %1222 = vmatprep.subr.mxu0 0.0
      %1223 = vmatpush1.msra.mxu0 %v1196
      %1224 = vmatprep.subr.mxu0 0.0
      %1225 = vmatpush1.msra.mxu0 %v1220
      %1226 = vmatprep.subr.mxu0 0.0
      %1227 = vmatpush1.msra.mxu0 0.0
      %1228 = vmatprep.subr.mxu0 0.0
      %1229 = vmatpush1.msra.mxu0 0.0
      %1230 = vmatprep.subr.mxu0 0.0
      %1231 = vmatpush1.msra.mxu0 0.0
      %1232 = vmatprep.subr.mxu0 0.0
      %1233 = vmatpush1.msra.mxu0 0.0
      %1234 = vmatprep.subr.mxu0 0.0
      %1235 = vmatpush1.msra.mxu0 0.0
      %1236 = vmatprep.subr.mxu0 0.0
      %1237 = vmatpush1.msra.mxu0 0.0
      %1238 = vmatprep.subr.mxu0 0.0
      %1239 = vmatpush1.msra.mxu0 0.0
      %1240 = vmatprep.subr.mxu0 0.0
      %1241 = vmatpush1.msra.mxu0 0.0
      %1242 = vmatprep.subr.mxu0 0.0
      %1243 = vmatpush1.msra.mxu0 0.0
      %1244 = vmatprep.subr.mxu0 0.0
      %1245 = vmatpush1.msra.mxu0 0.0
      %1246 = vmatprep.subr.mxu0 0.0
      %1247 = vmatpush1.msra.mxu0 0.0
      %1248 = vmatprep.subr.mxu0 0.0
      %1249 = vmatpush1.msra.mxu0 0.0
      %1250 = vmatprep.subr.mxu0 0.0
      %1251 = vmatpush1.msra.mxu0 0.0
      %1252 = vmatprep.subr.mxu0 0.0
      %1253 = vmatpush1.msra.mxu0 0.0
      %1254 = vmatprep.subr.mxu0 0.0
      %1255 = vmatpush1.msra.mxu0 0.0
      %1256 = vmatprep.subr.mxu0 0.0
      %1257 = vmatpush1.msra.mxu0 0.0
      %1258 = vmatprep.subr.mxu0 0.0
      %1259 = vmatpush1.msra.mxu0 0.0
      %1260 = vmatprep.subr.mxu0 0.0
      %1261 = vmatpush1.msra.mxu0 0.0
      %1262 = vmatprep.subr.mxu0 0.0
      %1263 = vmatpush1.msra.mxu0 0.0
      %1264 = vmatprep.subr.mxu0 0.0
      %1265 = vmatpush1.msra.mxu0 0.0
      %1266 = vmatprep.subr.mxu0 0.0
      %1267 = vmatpush1.msra.mxu0 0.0
      %1268 = vmatprep.subr.mxu0 0.0
      %1269 = vmatpush1.msra.mxu0 0.0
      %1270 = vmatprep.subr.mxu0 0.0
      %1271 = vmatpush1.msra.mxu0 0.0
      %1272 = vmatprep.subr.mxu0 0.0
      %1273 = vmatpush1.msra.mxu0 0.0
      %1274 = vmatprep.subr.mxu0 0.0
      %1275 = vmatpush1.msra.mxu0 0.0
      %1276 = vmatprep.subr.mxu0 0.0
      %1277 = vmatpush1.msra.mxu0 0.0
      %1278 = vmatprep.subr.mxu0 0.0
      %1279 = vmatpush1.msra.mxu0 0.0
      %1280 = vmatprep.subr.mxu0 0.0
      %1281 = vmatpush1.msra.mxu0 0.0
      %1282 = vmatprep.subr.mxu0 0.0
      %1283 = vmatpush1.msra.mxu0 0.0
      %1284 = vmatprep.subr.mxu0 0.0
      %1285 = vmatpush1.msra.mxu0 0.0
      %1286 = vmatprep.mubr.f32.mxu0 0.0
      %1287 = vmatmul.mubr.f32.gmra.mrb[0].mxu0 %v1199
      %v1288 = vpop.f32.mrb[0].mxu0
      %v1289 = vadd.f32 0.0, %v1288
      %v1290 = vpop.f32.mrb[0].mxu0
      %1291 = vmatprep.mubr.f32.mxu0 0.0
      %1292 = vmatmul.mubr.f32.gmra.mrb[0].mxu0 %v1202
      %v1293 = vpop.f32.mrb[0].mxu0
      %v1294 = vadd.f32 0.0, %v1293
      %v1295 = vpop.f32.mrb[0].mxu0
      %1296 = vmatprep.mubr.f32.mxu0 0.0
      %1297 = vmatmul.mubr.f32.gmra.mrb[0].mxu0 %v1205
      %v1298 = vpop.f32.mrb[0].mxu0
      %v1299 = vadd.f32 0.0, %v1298
      %v1300 = vpop.f32.mrb[0].mxu0
      %1301 = vmatprep.mubr.f32.mxu0 0.0
      %1302 = vmatmul.mubr.f32.gmra.mrb[0].mxu0 %v1208
      %v1303 = vpop.f32.mrb[0].mxu0
      %v1304 = vadd.f32 0.0, %v1303
      %v1305 = vpop.f32.mrb[0].mxu0
      %1306 = vmatprep.mubr.f32.mxu0 0.0
      %1307 = vmatmul.mubr.f32.gmra.mrb[0].mxu0 %v1211
      %v1308 = vpop.f32.mrb[0].mxu0
      %v1309 = vadd.f32 0.0, %v1308
      %v1310 = vpop.f32.mrb[0].mxu0
      %1311 = vmatprep.mubr.f32.mxu0 0.0
      %1312 = vmatmul.mubr.f32.gmra.mrb[0].mxu0 %v1214
      %v1313 = vpop.f32.mrb[0].mxu0
      %v1314 = vadd.f32 0.0, %v1313
      %v1315 = vpop.f32.mrb[0].mxu0
      %1316 = vmatprep.mubr.f32.mxu0 0.0
      %1317 = vmatmul.mubr.f32.gmra.mrb[0].mxu0 %v1217
      %v1318 = vpop.f32.mrb[0].mxu0
      %v1319 = vadd.f32 0.0, %v1318
      %v1320 = vpop.f32.mrb[0].mxu0
      %1321 = vdwg.mxu0
      %v1322 = vadd.f32 %v1045, %v1289
      %v1323 = vadd.f32 %v1050, %v1294
      %v1324 = vadd.f32 %v1055, %v1299
      %v1325 = vadd.f32 %v1060, %v1304
      %v1326 = vadd.f32 %v1065, %v1309
      %v1327 = vadd.f32 %v1070, %v1314
      %v1328 = vadd.f32 %v1075, %v1319
      %s1329 = scalar_lea.vmem %s3, 168
      %v1330 = vld [vmem:[%s1329] sm:$0xff]
      %v1331 = vld [vmem:[%s1329 + $0x8] sm:$0xff]
      %v1332 = vld [vmem:[%s1329 + $0x10] sm:$0xff]
      %v1333 = vld [vmem:[%s1329 + $0x18] sm:$0xff]
      %v1334 = vld [vmem:[%s1329 + $0x20] sm:$0xff]
      %v1335 = vld [vmem:[%s1329 + $0x28] sm:$0xff]
      %v1336 = vld [vmem:[%s1329 + $0x30] sm:$0x11]
      %v1344 = vunpack.c.l.b16 %v1330
      %v1345 = vunpack.c.h.b16 %v1330
      %v1346 = vunpack.c.l.b16 %v1331
      %v1347 = vunpack.c.h.b16 %v1331
      %v1348 = vunpack.c.l.b16 %v1332
      %v1349 = vunpack.c.h.b16 %v1332
      %v1350 = vunpack.c.l.b16 %v1333
      %v1351 = vunpack.c.h.b16 %v1333
      %v1352 = vunpack.c.l.b16 %v1334
      %v1353 = vunpack.c.h.b16 %v1334
      %v1354 = vunpack.c.l.b16 %v1335
      %v1355 = vunpack.c.h.b16 %v1335
      %v1356 = vunpack.c.l.b16 %v1336
      %v1357 = vunpack.c.h.b16 %v1336
      %v1358 = vpack.c.b16 %v1346, %v1344
      %v1359 = vpack.c.b16 %v1347, %v1345
      %v1360 = vpack.c.b16 %v1350, %v1348
      %v1361 = vpack.c.b16 %v1351, %v1349
      %v1362 = vpack.c.b16 %v1354, %v1352
      %v1363 = vpack.c.b16 %v1355, %v1353
      %v1364 = vpack.c.b16 %v1356, %v1356
      %v1365 = vpack.c.b16 %v1357, %v1357
      %v1371 = vsel %vm626, %v1359, 0
      %v1374 = vsel %vm626, %v1361, 0
      %v1377 = vsel %vm626, %v1363, 0
      %v1380 = vsel %vm626, %v1365, 0
      %1382 = vmatprep.subr.bf16.mxu0 0
      %1383 = vmatpush1.bf16.msra.mxu0 %v573
      %1384 = vmatprep.subr.bf16.mxu0 0
      %1385 = vmatpush1.bf16.msra.mxu0 %v574
      %1386 = vmatprep.subr.bf16.mxu0 0
      %1387 = vmatpush1.bf16.msra.mxu0 %v575
      %1388 = vmatprep.subr.bf16.mxu0 0
      %1389 = vmatpush1.bf16.msra.mxu0 %v576
      %1390 = vmatprep.subr.bf16.mxu0 0
      %1391 = vmatpush1.bf16.msra.mxu0 %v577
      %1392 = vmatprep.subr.bf16.mxu0 0
      %1393 = vmatpush1.bf16.msra.mxu0 %v578
      %1394 = vmatprep.subr.bf16.mxu0 0
      %1395 = vmatpush1.bf16.msra.mxu0 %v579
      %1396 = vmatprep.subr.bf16.mxu0 0
      %1397 = vmatpush1.bf16.msra.mxu0 %v580
      %1398 = vmatprep.subr.bf16.mxu0 0
      %1399 = vmatpush1.bf16.msra.mxu0 %v581
      %1400 = vmatprep.subr.bf16.mxu0 0
      %1401 = vmatpush1.bf16.msra.mxu0 %v582
      %1402 = vmatprep.subr.bf16.mxu0 0
      %1403 = vmatpush1.bf16.msra.mxu0 %v583
      %1404 = vmatprep.subr.bf16.mxu0 0
      %1405 = vmatpush1.bf16.msra.mxu0 %v584
      %1406 = vmatprep.subr.bf16.mxu0 0
      %1407 = vmatpush1.bf16.msra.mxu0 %v641
      %1408 = vmatprep.subr.bf16.mxu0 0
      %1409 = vmatpush1.bf16.msra.mxu0 0
      %1410 = vmatprep.subr.bf16.mxu0 0
      %1411 = vmatpush1.bf16.msra.mxu0 0
      %1412 = vmatprep.subr.bf16.mxu0 0
      %1413 = vmatpush1.bf16.msra.mxu0 0
      %1414 = vmatprep.mubr.bf16.mxu0 %v1371
      %1415 = vmatmul.mubr.bf16.gmra.mrb[0].mxu0 %v1358
      %v1416 = vpop.f32.mrb[0].mxu0
      %v1417 = vadd.f32 0.0, %v1416
      %v1418 = vpop.f32.mrb[0].mxu0
      %v1419 = vpop.f32.mrb[0].mxu0
      %v1420 = vadd.f32 0.0, %v1419
      %v1421 = vpop.f32.mrb[0].mxu0
      %1422 = vmatprep.mubr.bf16.mxu0 %v1374
      %1423 = vmatmul.mubr.bf16.gmra.mrb[0].mxu0 %v1360
      %v1424 = vpop.f32.mrb[0].mxu0
      %v1425 = vadd.f32 0.0, %v1424
      %v1426 = vpop.f32.mrb[0].mxu0
      %v1427 = vpop.f32.mrb[0].mxu0
      %v1428 = vadd.f32 0.0, %v1427
      %v1429 = vpop.f32.mrb[0].mxu0
      %1430 = vmatprep.mubr.bf16.mxu0 %v1377
      %1431 = vmatmul.mubr.bf16.gmra.mrb[0].mxu0 %v1362
      %v1432 = vpop.f32.mrb[0].mxu0
      %v1433 = vadd.f32 0.0, %v1432
      %v1434 = vpop.f32.mrb[0].mxu0
      %v1435 = vpop.f32.mrb[0].mxu0
      %v1436 = vadd.f32 0.0, %v1435
      %v1437 = vpop.f32.mrb[0].mxu0
      %1438 = vmatprep.mubr.bf16.mxu0 %v1380
      %1439 = vmatmul.mubr.bf16.gmra.mrb[0].mxu0 %v1364
      %v1440 = vpop.f32.mrb[0].mxu0
      %v1441 = vadd.f32 0.0, %v1440
      %v1442 = vpop.f32.mrb[0].mxu0
      %v1443 = vpop.f32.mrb[0].mxu0
      %v1444 = vpop.f32.mrb[0].mxu0
      %1445 = vdwg.mxu0
      %s1446 = scalar_lea.vmem %s4, 48
      %v1447 = vld [vmem:[%s1446] sm:$0xff]
      %v1448 = vld [vmem:[%s1446 + $0x8] sm:$0x3]
      %v1450 = vsel %vm829, %v1417, 0
      %v1453 = vsel %vm829, %v1420, 0
      %v1456 = vsel %vm829, %v1425, 0
      %v1459 = vsel %vm829, %v1428, 0
      %v1462 = vsel %vm829, %v1433, 0
      %v1465 = vsel %vm829, %v1436, 0
      %v1468 = vsel %vm829, %v1441, 0
      %v1471 = vsel %vm639, %v1448, 0
      %1473 = vmatprep.subr.mxu0 0.0
      %1474 = vmatpush1.msra.mxu0 %v1447
      %1475 = vmatprep.subr.mxu0 0.0
      %1476 = vmatpush1.msra.mxu0 %v1471
      %1477 = vmatprep.subr.mxu0 0.0
      %1478 = vmatpush1.msra.mxu0 0.0
      %1479 = vmatprep.subr.mxu0 0.0
      %1480 = vmatpush1.msra.mxu0 0.0
      %1481 = vmatprep.subr.mxu0 0.0
      %1482 = vmatpush1.msra.mxu0 0.0
      %1483 = vmatprep.subr.mxu0 0.0
      %1484 = vmatpush1.msra.mxu0 0.0
      %1485 = vmatprep.subr.mxu0 0.0
      %1486 = vmatpush1.msra.mxu0 0.0
      %1487 = vmatprep.subr.mxu0 0.0
      %1488 = vmatpush1.msra.mxu0 0.0
      %1489 = vmatprep.subr.mxu0 0.0
      %1490 = vmatpush1.msra.mxu0 0.0
      %1491 = vmatprep.subr.mxu0 0.0
      %1492 = vmatpush1.msra.mxu0 0.0
      %1493 = vmatprep.subr.mxu0 0.0
      %1494 = vmatpush1.msra.mxu0 0.0
      %1495 = vmatprep.subr.mxu0 0.0
      %1496 = vmatpush1.msra.mxu0 0.0
      %1497 = vmatprep.subr.mxu0 0.0
      %1498 = vmatpush1.msra.mxu0 0.0
      %1499 = vmatprep.subr.mxu0 0.0
      %1500 = vmatpush1.msra.mxu0 0.0
      %1501 = vmatprep.subr.mxu0 0.0
      %1502 = vmatpush1.msra.mxu0 0.0
      %1503 = vmatprep.subr.mxu0 0.0
      %1504 = vmatpush1.msra.mxu0 0.0
      %1505 = vmatprep.subr.mxu0 0.0
      %1506 = vmatpush1.msra.mxu0 0.0
      %1507 = vmatprep.subr.mxu0 0.0
      %1508 = vmatpush1.msra.mxu0 0.0
      %1509 = vmatprep.subr.mxu0 0.0
      %1510 = vmatpush1.msra.mxu0 0.0
      %1511 = vmatprep.subr.mxu0 0.0
      %1512 = vmatpush1.msra.mxu0 0.0
      %1513 = vmatprep.subr.mxu0 0.0
      %1514 = vmatpush1.msra.mxu0 0.0
      %1515 = vmatprep.subr.mxu0 0.0
      %1516 = vmatpush1.msra.mxu0 0.0
      %1517 = vmatprep.subr.mxu0 0.0
      %1518 = vmatpush1.msra.mxu0 0.0
      %1519 = vmatprep.subr.mxu0 0.0
      %1520 = vmatpush1.msra.mxu0 0.0
      %1521 = vmatprep.subr.mxu0 0.0
      %1522 = vmatpush1.msra.mxu0 0.0
      %1523 = vmatprep.subr.mxu0 0.0
      %1524 = vmatpush1.msra.mxu0 0.0
      %1525 = vmatprep.subr.mxu0 0.0
      %1526 = vmatpush1.msra.mxu0 0.0
      %1527 = vmatprep.subr.mxu0 0.0
      %1528 = vmatpush1.msra.mxu0 0.0
      %1529 = vmatprep.subr.mxu0 0.0
      %1530 = vmatpush1.msra.mxu0 0.0
      %1531 = vmatprep.subr.mxu0 0.0
      %1532 = vmatpush1.msra.mxu0 0.0
      %1533 = vmatprep.subr.mxu0 0.0
      %1534 = vmatpush1.msra.mxu0 0.0
      %1535 = vmatprep.subr.mxu0 0.0
      %1536 = vmatpush1.msra.mxu0 0.0
      %1537 = vmatprep.mubr.f32.mxu0 0.0
      %1538 = vmatmul.mubr.f32.gmra.mrb[0].mxu0 %v1450
      %v1539 = vpop.f32.mrb[0].mxu0
      %v1540 = vadd.f32 0.0, %v1539
      %v1541 = vpop.f32.mrb[0].mxu0
      %1542 = vmatprep.mubr.f32.mxu0 0.0
      %1543 = vmatmul.mubr.f32.gmra.mrb[0].mxu0 %v1453
      %v1544 = vpop.f32.mrb[0].mxu0
      %v1545 = vadd.f32 0.0, %v1544
      %v1546 = vpop.f32.mrb[0].mxu0
      %1547 = vmatprep.mubr.f32.mxu0 0.0
      %1548 = vmatmul.mubr.f32.gmra.mrb[0].mxu0 %v1456
      %v1549 = vpop.f32.mrb[0].mxu0
      %v1550 = vadd.f32 0.0, %v1549
      %v1551 = vpop.f32.mrb[0].mxu0
      %1552 = vmatprep.mubr.f32.mxu0 0.0
      %1553 = vmatmul.mubr.f32.gmra.mrb[0].mxu0 %v1459
      %v1554 = vpop.f32.mrb[0].mxu0
      %v1555 = vadd.f32 0.0, %v1554
      %v1556 = vpop.f32.mrb[0].mxu0
      %1557 = vmatprep.mubr.f32.mxu0 0.0
      %1558 = vmatmul.mubr.f32.gmra.mrb[0].mxu0 %v1462
      %v1559 = vpop.f32.mrb[0].mxu0
      %v1560 = vadd.f32 0.0, %v1559
      %v1561 = vpop.f32.mrb[0].mxu0
      %1562 = vmatprep.mubr.f32.mxu0 0.0
      %1563 = vmatmul.mubr.f32.gmra.mrb[0].mxu0 %v1465
      %v1564 = vpop.f32.mrb[0].mxu0
      %v1565 = vadd.f32 0.0, %v1564
      %v1566 = vpop.f32.mrb[0].mxu0
      %1567 = vmatprep.mubr.f32.mxu0 0.0
      %1568 = vmatmul.mubr.f32.gmra.mrb[0].mxu0 %v1468
      %v1569 = vpop.f32.mrb[0].mxu0
      %v1570 = vadd.f32 0.0, %v1569
      %v1571 = vpop.f32.mrb[0].mxu0
      %1572 = vdwg.mxu0
      %v1573 = vadd.f32 %v1322, %v1540
      %v1574 = vadd.f32 %v1323, %v1545
      %v1575 = vadd.f32 %v1324, %v1550
      %v1576 = vadd.f32 %v1325, %v1555
      %v1577 = vadd.f32 %v1326, %v1560
      %v1578 = vadd.f32 %v1327, %v1565
      %v1579 = vadd.f32 %v1328, %v1570
      %s1580 = scalar_lea.vmem %s3, 224
      %v1581 = vld [vmem:[%s1580] sm:$0xff]
      %v1582 = vld [vmem:[%s1580 + $0x8] sm:$0xff]
      %v1583 = vld [vmem:[%s1580 + $0x10] sm:$0xff]
      %v1584 = vld [vmem:[%s1580 + $0x18] sm:$0xff]
      %v1585 = vld [vmem:[%s1580 + $0x20] sm:$0xff]
      %v1586 = vld [vmem:[%s1580 + $0x28] sm:$0xff]
      %v1587 = vld [vmem:[%s1580 + $0x30] sm:$0x11]
      %v1595 = vunpack.c.l.b16 %v1581
      %v1596 = vunpack.c.h.b16 %v1581
      %v1597 = vunpack.c.l.b16 %v1582
      %v1598 = vunpack.c.h.b16 %v1582
      %v1599 = vunpack.c.l.b16 %v1583
      %v1600 = vunpack.c.h.b16 %v1583
      %v1601 = vunpack.c.l.b16 %v1584
      %v1602 = vunpack.c.h.b16 %v1584
      %v1603 = vunpack.c.l.b16 %v1585
      %v1604 = vunpack.c.h.b16 %v1585
      %v1605 = vunpack.c.l.b16 %v1586
      %v1606 = vunpack.c.h.b16 %v1586
      %v1607 = vunpack.c.l.b16 %v1587
      %v1608 = vunpack.c.h.b16 %v1587
      %v1609 = vpack.c.b16 %v1597, %v1595
      %v1610 = vpack.c.b16 %v1598, %v1596
      %v1611 = vpack.c.b16 %v1601, %v1599
      %v1612 = vpack.c.b16 %v1602, %v1600
      %v1613 = vpack.c.b16 %v1605, %v1603
      %v1614 = vpack.c.b16 %v1606, %v1604
      %v1615 = vpack.c.b16 %v1607, %v1607
      %v1616 = vpack.c.b16 %v1608, %v1608
      %v1622 = vsel %vm626, %v1610, 0
      %v1625 = vsel %vm626, %v1612, 0
      %v1628 = vsel %vm626, %v1614, 0
      %v1631 = vsel %vm626, %v1616, 0
      %1633 = vmatprep.subr.bf16.mxu0 0
      %1634 = vmatpush1.bf16.msra.mxu0 %v573
      %1635 = vmatprep.subr.bf16.mxu0 0
      %1636 = vmatpush1.bf16.msra.mxu0 %v574
      %1637 = vmatprep.subr.bf16.mxu0 0
      %1638 = vmatpush1.bf16.msra.mxu0 %v575
      %1639 = vmatprep.subr.bf16.mxu0 0
      %1640 = vmatpush1.bf16.msra.mxu0 %v576
      %1641 = vmatprep.subr.bf16.mxu0 0
      %1642 = vmatpush1.bf16.msra.mxu0 %v577
      %1643 = vmatprep.subr.bf16.mxu0 0
      %1644 = vmatpush1.bf16.msra.mxu0 %v578
      %1645 = vmatprep.subr.bf16.mxu0 0
      %1646 = vmatpush1.bf16.msra.mxu0 %v579
      %1647 = vmatprep.subr.bf16.mxu0 0
      %1648 = vmatpush1.bf16.msra.mxu0 %v580
      %1649 = vmatprep.subr.bf16.mxu0 0
      %1650 = vmatpush1.bf16.msra.mxu0 %v581
      %1651 = vmatprep.subr.bf16.mxu0 0
      %1652 = vmatpush1.bf16.msra.mxu0 %v582
      %1653 = vmatprep.subr.bf16.mxu0 0
      %1654 = vmatpush1.bf16.msra.mxu0 %v583
      %1655 = vmatprep.subr.bf16.mxu0 0
      %1656 = vmatpush1.bf16.msra.mxu0 %v584
      %1657 = vmatprep.subr.bf16.mxu0 0
      %1658 = vmatpush1.bf16.msra.mxu0 %v641
      %1659 = vmatprep.subr.bf16.mxu0 0
      %1660 = vmatpush1.bf16.msra.mxu0 0
      %1661 = vmatprep.subr.bf16.mxu0 0
      %1662 = vmatpush1.bf16.msra.mxu0 0
      %1663 = vmatprep.subr.bf16.mxu0 0
      %1664 = vmatpush1.bf16.msra.mxu0 0
      %1665 = vmatprep.mubr.bf16.mxu0 %v1622
      %1666 = vmatmul.mubr.bf16.gmra.mrb[0].mxu0 %v1609
      %v1667 = vpop.f32.mrb[0].mxu0
      %v1668 = vadd.f32 0.0, %v1667
      %v1669 = vpop.f32.mrb[0].mxu0
      %v1670 = vpop.f32.mrb[0].mxu0
      %v1671 = vadd.f32 0.0, %v1670
      %v1672 = vpop.f32.mrb[0].mxu0
      %1673 = vmatprep.mubr.bf16.mxu0 %v1625
      %1674 = vmatmul.mubr.bf16.gmra.mrb[0].mxu0 %v1611
      %v1675 = vpop.f32.mrb[0].mxu0
      %v1676 = vadd.f32 0.0, %v1675
      %v1677 = vpop.f32.mrb[0].mxu0
      %v1678 = vpop.f32.mrb[0].mxu0
      %v1679 = vadd.f32 0.0, %v1678
      %v1680 = vpop.f32.mrb[0].mxu0
      %1681 = vmatprep.mubr.bf16.mxu0 %v1628
      %1682 = vmatmul.mubr.bf16.gmra.mrb[0].mxu0 %v1613
      %v1683 = vpop.f32.mrb[0].mxu0
      %v1684 = vadd.f32 0.0, %v1683
      %v1685 = vpop.f32.mrb[0].mxu0
      %v1686 = vpop.f32.mrb[0].mxu0
      %v1687 = vadd.f32 0.0, %v1686
      %v1688 = vpop.f32.mrb[0].mxu0
      %1689 = vmatprep.mubr.bf16.mxu0 %v1631
      %1690 = vmatmul.mubr.bf16.gmra.mrb[0].mxu0 %v1615
      %v1691 = vpop.f32.mrb[0].mxu0
      %v1692 = vadd.f32 0.0, %v1691
      %v1693 = vpop.f32.mrb[0].mxu0
      %v1694 = vpop.f32.mrb[0].mxu0
      %v1695 = vpop.f32.mrb[0].mxu0
      %1696 = vdwg.mxu0
      %s1697 = scalar_lea.vmem %s4, 64
      %v1698 = vld [vmem:[%s1697] sm:$0xff]
      %v1699 = vld [vmem:[%s1697 + $0x8] sm:$0x3]
      %v1701 = vsel %vm829, %v1668, 0
      %v1704 = vsel %vm829, %v1671, 0
      %v1707 = vsel %vm829, %v1676, 0
      %v1710 = vsel %vm829, %v1679, 0
      %v1713 = vsel %vm829, %v1684, 0
      %v1716 = vsel %vm829, %v1687, 0
      %v1719 = vsel %vm829, %v1692, 0
      %v1722 = vsel %vm639, %v1699, 0
      %1724 = vmatprep.subr.mxu0 0.0
      %1725 = vmatpush1.msra.mxu0 %v1698
      %1726 = vmatprep.subr.mxu0 0.0
      %1727 = vmatpush1.msra.mxu0 %v1722
      %1728 = vmatprep.subr.mxu0 0.0
      %1729 = vmatpush1.msra.mxu0 0.0
      %1730 = vmatprep.subr.mxu0 0.0
      %1731 = vmatpush1.msra.mxu0 0.0
      %1732 = vmatprep.subr.mxu0 0.0
      %1733 = vmatpush1.msra.mxu0 0.0
      %1734 = vmatprep.subr.mxu0 0.0
      %1735 = vmatpush1.msra.mxu0 0.0
      %1736 = vmatprep.subr.mxu0 0.0
      %1737 = vmatpush1.msra.mxu0 0.0
      %1738 = vmatprep.subr.mxu0 0.0
      %1739 = vmatpush1.msra.mxu0 0.0
      %1740 = vmatprep.subr.mxu0 0.0
      %1741 = vmatpush1.msra.mxu0 0.0
      %1742 = vmatprep.subr.mxu0 0.0
      %1743 = vmatpush1.msra.mxu0 0.0
      %1744 = vmatprep.subr.mxu0 0.0
      %1745 = vmatpush1.msra.mxu0 0.0
      %1746 = vmatprep.subr.mxu0 0.0
      %1747 = vmatpush1.msra.mxu0 0.0
      %1748 = vmatprep.subr.mxu0 0.0
      %1749 = vmatpush1.msra.mxu0 0.0
      %1750 = vmatprep.subr.mxu0 0.0
      %1751 = vmatpush1.msra.mxu0 0.0
      %1752 = vmatprep.subr.mxu0 0.0
      %1753 = vmatpush1.msra.mxu0 0.0
      %1754 = vmatprep.subr.mxu0 0.0
      %1755 = vmatpush1.msra.mxu0 0.0
      %1756 = vmatprep.subr.mxu0 0.0
      %1757 = vmatpush1.msra.mxu0 0.0
      %1758 = vmatprep.subr.mxu0 0.0
      %1759 = vmatpush1.msra.mxu0 0.0
      %1760 = vmatprep.subr.mxu0 0.0
      %1761 = vmatpush1.msra.mxu0 0.0
      %1762 = vmatprep.subr.mxu0 0.0
      %1763 = vmatpush1.msra.mxu0 0.0
      %1764 = vmatprep.subr.mxu0 0.0
      %1765 = vmatpush1.msra.mxu0 0.0
      %1766 = vmatprep.subr.mxu0 0.0
      %1767 = vmatpush1.msra.mxu0 0.0
      %1768 = vmatprep.subr.mxu0 0.0
      %1769 = vmatpush1.msra.mxu0 0.0
      %1770 = vmatprep.subr.mxu0 0.0
      %1771 = vmatpush1.msra.mxu0 0.0
      %1772 = vmatprep.subr.mxu0 0.0
      %1773 = vmatpush1.msra.mxu0 0.0
      %1774 = vmatprep.subr.mxu0 0.0
      %1775 = vmatpush1.msra.mxu0 0.0
      %1776 = vmatprep.subr.mxu0 0.0
      %1777 = vmatpush1.msra.mxu0 0.0
      %1778 = vmatprep.subr.mxu0 0.0
      %1779 = vmatpush1.msra.mxu0 0.0
      %1780 = vmatprep.subr.mxu0 0.0
      %1781 = vmatpush1.msra.mxu0 0.0
      %1782 = vmatprep.subr.mxu0 0.0
      %1783 = vmatpush1.msra.mxu0 0.0
      %1784 = vmatprep.subr.mxu0 0.0
      %1785 = vmatpush1.msra.mxu0 0.0
      %1786 = vmatprep.subr.mxu0 0.0
      %1787 = vmatpush1.msra.mxu0 0.0
      %1788 = vmatprep.mubr.f32.mxu0 0.0
      %1789 = vmatmul.mubr.f32.gmra.mrb[0].mxu0 %v1701
      %v1790 = vpop.f32.mrb[0].mxu0
      %v1791 = vadd.f32 0.0, %v1790
      %v1792 = vpop.f32.mrb[0].mxu0
      %1793 = vmatprep.mubr.f32.mxu0 0.0
      %1794 = vmatmul.mubr.f32.gmra.mrb[0].mxu0 %v1704
      %v1795 = vpop.f32.mrb[0].mxu0
      %v1796 = vadd.f32 0.0, %v1795
      %v1797 = vpop.f32.mrb[0].mxu0
      %1798 = vmatprep.mubr.f32.mxu0 0.0
      %1799 = vmatmul.mubr.f32.gmra.mrb[0].mxu0 %v1707
      %v1800 = vpop.f32.mrb[0].mxu0
      %v1801 = vadd.f32 0.0, %v1800
      %v1802 = vpop.f32.mrb[0].mxu0
      %1803 = vmatprep.mubr.f32.mxu0 0.0
      %1804 = vmatmul.mubr.f32.gmra.mrb[0].mxu0 %v1710
      %v1805 = vpop.f32.mrb[0].mxu0
      %v1806 = vadd.f32 0.0, %v1805
      %v1807 = vpop.f32.mrb[0].mxu0
      %1808 = vmatprep.mubr.f32.mxu0 0.0
      %1809 = vmatmul.mubr.f32.gmra.mrb[0].mxu0 %v1713
      %v1810 = vpop.f32.mrb[0].mxu0
      %v1811 = vadd.f32 0.0, %v1810
      %v1812 = vpop.f32.mrb[0].mxu0
      %1813 = vmatprep.mubr.f32.mxu0 0.0
      %1814 = vmatmul.mubr.f32.gmra.mrb[0].mxu0 %v1716
      %v1815 = vpop.f32.mrb[0].mxu0
      %v1816 = vadd.f32 0.0, %v1815
      %v1817 = vpop.f32.mrb[0].mxu0
      %1818 = vmatprep.mubr.f32.mxu0 0.0
      %1819 = vmatmul.mubr.f32.gmra.mrb[0].mxu0 %v1719
      %v1820 = vpop.f32.mrb[0].mxu0
      %v1821 = vadd.f32 0.0, %v1820
      %v1822 = vpop.f32.mrb[0].mxu0
      %1823 = vdwg.mxu0
      %v1824 = vadd.f32 %v1573, %v1791
      %v1825 = vadd.f32 %v1574, %v1796
      %v1826 = vadd.f32 %v1575, %v1801
      %v1827 = vadd.f32 %v1576, %v1806
      %v1828 = vadd.f32 %v1577, %v1811
      %v1829 = vadd.f32 %v1578, %v1816
      %v1830 = vadd.f32 %v1579, %v1821
      %s1831 = scalar_lea.vmem %s3, 280
      %v1832 = vld [vmem:[%s1831] sm:$0xff]
      %v1833 = vld [vmem:[%s1831 + $0x8] sm:$0xff]
      %v1834 = vld [vmem:[%s1831 + $0x10] sm:$0xff]
      %v1835 = vld [vmem:[%s1831 + $0x18] sm:$0xff]
      %v1836 = vld [vmem:[%s1831 + $0x20] sm:$0xff]
      %v1837 = vld [vmem:[%s1831 + $0x28] sm:$0xff]
      %v1838 = vld [vmem:[%s1831 + $0x30] sm:$0x11]
      %v1846 = vunpack.c.l.b16 %v1832
      %v1847 = vunpack.c.h.b16 %v1832
      %v1848 = vunpack.c.l.b16 %v1833
      %v1849 = vunpack.c.h.b16 %v1833
      %v1850 = vunpack.c.l.b16 %v1834
      %v1851 = vunpack.c.h.b16 %v1834
      %v1852 = vunpack.c.l.b16 %v1835
      %v1853 = vunpack.c.h.b16 %v1835
      %v1854 = vunpack.c.l.b16 %v1836
      %v1855 = vunpack.c.h.b16 %v1836
      %v1856 = vunpack.c.l.b16 %v1837
      %v1857 = vunpack.c.h.b16 %v1837
      %v1858 = vunpack.c.l.b16 %v1838
      %v1859 = vunpack.c.h.b16 %v1838
      %v1860 = vpack.c.b16 %v1848, %v1846
      %v1861 = vpack.c.b16 %v1849, %v1847
      %v1862 = vpack.c.b16 %v1852, %v1850
      %v1863 = vpack.c.b16 %v1853, %v1851
      %v1864 = vpack.c.b16 %v1856, %v1854
      %v1865 = vpack.c.b16 %v1857, %v1855
      %v1866 = vpack.c.b16 %v1858, %v1858
      %v1867 = vpack.c.b16 %v1859, %v1859
      %v1873 = vsel %vm626, %v1861, 0
      %v1876 = vsel %vm626, %v1863, 0
      %v1879 = vsel %vm626, %v1865, 0
      %v1882 = vsel %vm626, %v1867, 0
      %1884 = vmatprep.subr.bf16.mxu0 0
      %1885 = vmatpush1.bf16.msra.mxu0 %v573
      %1886 = vmatprep.subr.bf16.mxu0 0
      %1887 = vmatpush1.bf16.msra.mxu0 %v574
      %1888 = vmatprep.subr.bf16.mxu0 0
      %1889 = vmatpush1.bf16.msra.mxu0 %v575
      %1890 = vmatprep.subr.bf16.mxu0 0
      %1891 = vmatpush1.bf16.msra.mxu0 %v576
      %1892 = vmatprep.subr.bf16.mxu0 0
      %1893 = vmatpush1.bf16.msra.mxu0 %v577
      %1894 = vmatprep.subr.bf16.mxu0 0
      %1895 = vmatpush1.bf16.msra.mxu0 %v578
      %1896 = vmatprep.subr.bf16.mxu0 0
      %1897 = vmatpush1.bf16.msra.mxu0 %v579
      %1898 = vmatprep.subr.bf16.mxu0 0
      %1899 = vmatpush1.bf16.msra.mxu0 %v580
      %1900 = vmatprep.subr.bf16.mxu0 0
      %1901 = vmatpush1.bf16.msra.mxu0 %v581
      %1902 = vmatprep.subr.bf16.mxu0 0
      %1903 = vmatpush1.bf16.msra.mxu0 %v582
      %1904 = vmatprep.subr.bf16.mxu0 0
      %1905 = vmatpush1.bf16.msra.mxu0 %v583
      %1906 = vmatprep.subr.bf16.mxu0 0
      %1907 = vmatpush1.bf16.msra.mxu0 %v584
      %1908 = vmatprep.subr.bf16.mxu0 0
      %1909 = vmatpush1.bf16.msra.mxu0 %v641
      %1910 = vmatprep.subr.bf16.mxu0 0
      %1911 = vmatpush1.bf16.msra.mxu0 0
      %1912 = vmatprep.subr.bf16.mxu0 0
      %1913 = vmatpush1.bf16.msra.mxu0 0
      %1914 = vmatprep.subr.bf16.mxu0 0
      %1915 = vmatpush1.bf16.msra.mxu0 0
      %1916 = vmatprep.mubr.bf16.mxu0 %v1873
      %1917 = vmatmul.mubr.bf16.gmra.mrb[0].mxu0 %v1860
      %v1918 = vpop.f32.mrb[0].mxu0
      %v1919 = vadd.f32 0.0, %v1918
      %v1920 = vpop.f32.mrb[0].mxu0
      %v1921 = vpop.f32.mrb[0].mxu0
      %v1922 = vadd.f32 0.0, %v1921
      %v1923 = vpop.f32.mrb[0].mxu0
      %1924 = vmatprep.mubr.bf16.mxu0 %v1876
      %1925 = vmatmul.mubr.bf16.gmra.mrb[0].mxu0 %v1862
      %v1926 = vpop.f32.mrb[0].mxu0
      %v1927 = vadd.f32 0.0, %v1926
      %v1928 = vpop.f32.mrb[0].mxu0
      %v1929 = vpop.f32.mrb[0].mxu0
      %v1930 = vadd.f32 0.0, %v1929
      %v1931 = vpop.f32.mrb[0].mxu0
      %1932 = vmatprep.mubr.bf16.mxu0 %v1879
      %1933 = vmatmul.mubr.bf16.gmra.mrb[0].mxu0 %v1864
      %v1934 = vpop.f32.mrb[0].mxu0
      %v1935 = vadd.f32 0.0, %v1934
      %v1936 = vpop.f32.mrb[0].mxu0
      %v1937 = vpop.f32.mrb[0].mxu0
      %v1938 = vadd.f32 0.0, %v1937
      %v1939 = vpop.f32.mrb[0].mxu0
      %1940 = vmatprep.mubr.bf16.mxu0 %v1882
      %1941 = vmatmul.mubr.bf16.gmra.mrb[0].mxu0 %v1866
      %v1942 = vpop.f32.mrb[0].mxu0
      %v1943 = vadd.f32 0.0, %v1942
      %v1944 = vpop.f32.mrb[0].mxu0
      %v1945 = vpop.f32.mrb[0].mxu0
      %v1946 = vpop.f32.mrb[0].mxu0
      %1947 = vdwg.mxu0
      %s1948 = scalar_lea.vmem %s4, 80
      %v1949 = vld [vmem:[%s1948] sm:$0xff]
      %v1950 = vld [vmem:[%s1948 + $0x8] sm:$0x3]
      %v1952 = vsel %vm829, %v1919, 0
      %v1955 = vsel %vm829, %v1922, 0
      %v1958 = vsel %vm829, %v1927, 0
      %v1961 = vsel %vm829, %v1930, 0
      %v1964 = vsel %vm829, %v1935, 0
      %v1967 = vsel %vm829, %v1938, 0
      %v1970 = vsel %vm829, %v1943, 0
      %v1973 = vsel %vm639, %v1950, 0
      %1975 = vmatprep.subr.mxu0 0.0
      %1976 = vmatpush1.msra.mxu0 %v1949
      %1977 = vmatprep.subr.mxu0 0.0
      %1978 = vmatpush1.msra.mxu0 %v1973
      %1979 = vmatprep.subr.mxu0 0.0
      %1980 = vmatpush1.msra.mxu0 0.0
      %1981 = vmatprep.subr.mxu0 0.0
      %1982 = vmatpush1.msra.mxu0 0.0
      %1983 = vmatprep.subr.mxu0 0.0
      %1984 = vmatpush1.msra.mxu0 0.0
      %1985 = vmatprep.subr.mxu0 0.0
      %1986 = vmatpush1.msra.mxu0 0.0
      %1987 = vmatprep.subr.mxu0 0.0
      %1988 = vmatpush1.msra.mxu0 0.0
      %1989 = vmatprep.subr.mxu0 0.0
      %1990 = vmatpush1.msra.mxu0 0.0
      %1991 = vmatprep.subr.mxu0 0.0
      %1992 = vmatpush1.msra.mxu0 0.0
      %1993 = vmatprep.subr.mxu0 0.0
      %1994 = vmatpush1.msra.mxu0 0.0
      %1995 = vmatprep.subr.mxu0 0.0
      %1996 = vmatpush1.msra.mxu0 0.0
      %1997 = vmatprep.subr.mxu0 0.0
      %1998 = vmatpush1.msra.mxu0 0.0
      %1999 = vmatprep.subr.mxu0 0.0
      %2000 = vmatpush1.msra.mxu0 0.0
      %2001 = vmatprep.subr.mxu0 0.0
      %2002 = vmatpush1.msra.mxu0 0.0
      %2003 = vmatprep.subr.mxu0 0.0
      %2004 = vmatpush1.msra.mxu0 0.0
      %2005 = vmatprep.subr.mxu0 0.0
      %2006 = vmatpush1.msra.mxu0 0.0
      %2007 = vmatprep.subr.mxu0 0.0
      %2008 = vmatpush1.msra.mxu0 0.0
      %2009 = vmatprep.subr.mxu0 0.0
      %2010 = vmatpush1.msra.mxu0 0.0
      %2011 = vmatprep.subr.mxu0 0.0
      %2012 = vmatpush1.msra.mxu0 0.0
      %2013 = vmatprep.subr.mxu0 0.0
      %2014 = vmatpush1.msra.mxu0 0.0
      %2015 = vmatprep.subr.mxu0 0.0
      %2016 = vmatpush1.msra.mxu0 0.0
      %2017 = vmatprep.subr.mxu0 0.0
      %2018 = vmatpush1.msra.mxu0 0.0
      %2019 = vmatprep.subr.mxu0 0.0
      %2020 = vmatpush1.msra.mxu0 0.0
      %2021 = vmatprep.subr.mxu0 0.0
      %2022 = vmatpush1.msra.mxu0 0.0
      %2023 = vmatprep.subr.mxu0 0.0
      %2024 = vmatpush1.msra.mxu0 0.0
      %2025 = vmatprep.subr.mxu0 0.0
      %2026 = vmatpush1.msra.mxu0 0.0
      %2027 = vmatprep.subr.mxu0 0.0
      %2028 = vmatpush1.msra.mxu0 0.0
      %2029 = vmatprep.subr.mxu0 0.0
      %2030 = vmatpush1.msra.mxu0 0.0
      %2031 = vmatprep.subr.mxu0 0.0
      %2032 = vmatpush1.msra.mxu0 0.0
      %2033 = vmatprep.subr.mxu0 0.0
      %2034 = vmatpush1.msra.mxu0 0.0
      %2035 = vmatprep.subr.mxu0 0.0
      %2036 = vmatpush1.msra.mxu0 0.0
      %2037 = vmatprep.subr.mxu0 0.0
      %2038 = vmatpush1.msra.mxu0 0.0
      %2039 = vmatprep.mubr.f32.mxu0 0.0
      %2040 = vmatmul.mubr.f32.gmra.mrb[0].mxu0 %v1952
      %v2041 = vpop.f32.mrb[0].mxu0
      %v2042 = vadd.f32 0.0, %v2041
      %v2043 = vpop.f32.mrb[0].mxu0
      %2044 = vmatprep.mubr.f32.mxu0 0.0
      %2045 = vmatmul.mubr.f32.gmra.mrb[0].mxu0 %v1955
      %v2046 = vpop.f32.mrb[0].mxu0
      %v2047 = vadd.f32 0.0, %v2046
      %v2048 = vpop.f32.mrb[0].mxu0
      %2049 = vmatprep.mubr.f32.mxu0 0.0
      %2050 = vmatmul.mubr.f32.gmra.mrb[0].mxu0 %v1958
      %v2051 = vpop.f32.mrb[0].mxu0
      %v2052 = vadd.f32 0.0, %v2051
      %v2053 = vpop.f32.mrb[0].mxu0
      %2054 = vmatprep.mubr.f32.mxu0 0.0
      %2055 = vmatmul.mubr.f32.gmra.mrb[0].mxu0 %v1961
      %v2056 = vpop.f32.mrb[0].mxu0
      %v2057 = vadd.f32 0.0, %v2056
      %v2058 = vpop.f32.mrb[0].mxu0
      %2059 = vmatprep.mubr.f32.mxu0 0.0
      %2060 = vmatmul.mubr.f32.gmra.mrb[0].mxu0 %v1964
      %v2061 = vpop.f32.mrb[0].mxu0
      %v2062 = vadd.f32 0.0, %v2061
      %v2063 = vpop.f32.mrb[0].mxu0
      %2064 = vmatprep.mubr.f32.mxu0 0.0
      %2065 = vmatmul.mubr.f32.gmra.mrb[0].mxu0 %v1967
      %v2066 = vpop.f32.mrb[0].mxu0
      %v2067 = vadd.f32 0.0, %v2066
      %v2068 = vpop.f32.mrb[0].mxu0
      %2069 = vmatprep.mubr.f32.mxu0 0.0
      %2070 = vmatmul.mubr.f32.gmra.mrb[0].mxu0 %v1970
      %v2071 = vpop.f32.mrb[0].mxu0
      %v2072 = vadd.f32 0.0, %v2071
      %v2073 = vpop.f32.mrb[0].mxu0
      %2074 = vdwg.mxu0
      %v2075 = vadd.f32 %v1824, %v2042
      %v2076 = vadd.f32 %v1825, %v2047
      %v2077 = vadd.f32 %v1826, %v2052
      %v2078 = vadd.f32 %v1827, %v2057
      %v2079 = vadd.f32 %v1828, %v2062
      %v2080 = vadd.f32 %v1829, %v2067
      %v2081 = vadd.f32 %v1830, %v2072
      %s2082 = scalar_lea.vmem %s3, 336
      %v2083 = vld [vmem:[%s2082] sm:$0xff]
      %v2084 = vld [vmem:[%s2082 + $0x8] sm:$0xff]
      %v2085 = vld [vmem:[%s2082 + $0x10] sm:$0xff]
      %v2086 = vld [vmem:[%s2082 + $0x18] sm:$0xff]
      %v2087 = vld [vmem:[%s2082 + $0x20] sm:$0xff]
      %v2088 = vld [vmem:[%s2082 + $0x28] sm:$0xff]
      %v2089 = vld [vmem:[%s2082 + $0x30] sm:$0x11]
      %v2097 = vunpack.c.l.b16 %v2083
      %v2098 = vunpack.c.h.b16 %v2083
      %v2099 = vunpack.c.l.b16 %v2084
      %v2100 = vunpack.c.h.b16 %v2084
      %v2101 = vunpack.c.l.b16 %v2085
      %v2102 = vunpack.c.h.b16 %v2085
      %v2103 = vunpack.c.l.b16 %v2086
      %v2104 = vunpack.c.h.b16 %v2086
      %v2105 = vunpack.c.l.b16 %v2087
      %v2106 = vunpack.c.h.b16 %v2087
      %v2107 = vunpack.c.l.b16 %v2088
      %v2108 = vunpack.c.h.b16 %v2088
      %v2109 = vunpack.c.l.b16 %v2089
      %v2110 = vunpack.c.h.b16 %v2089
      %v2111 = vpack.c.b16 %v2099, %v2097
      %v2112 = vpack.c.b16 %v2100, %v2098
      %v2113 = vpack.c.b16 %v2103, %v2101
      %v2114 = vpack.c.b16 %v2104, %v2102
      %v2115 = vpack.c.b16 %v2107, %v2105
      %v2116 = vpack.c.b16 %v2108, %v2106
      %v2117 = vpack.c.b16 %v2109, %v2109
      %v2118 = vpack.c.b16 %v2110, %v2110
      %v2124 = vsel %vm626, %v2112, 0
      %v2127 = vsel %vm626, %v2114, 0
      %v2130 = vsel %vm626, %v2116, 0
      %v2133 = vsel %vm626, %v2118, 0
      %2135 = vmatprep.subr.bf16.mxu0 0
      %2136 = vmatpush1.bf16.msra.mxu0 %v573
      %2137 = vmatprep.subr.bf16.mxu0 0
      %2138 = vmatpush1.bf16.msra.mxu0 %v574
      %2139 = vmatprep.subr.bf16.mxu0 0
      %2140 = vmatpush1.bf16.msra.mxu0 %v575
      %2141 = vmatprep.subr.bf16.mxu0 0
      %2142 = vmatpush1.bf16.msra.mxu0 %v576
      %2143 = vmatprep.subr.bf16.mxu0 0
      %2144 = vmatpush1.bf16.msra.mxu0 %v577
      %2145 = vmatprep.subr.bf16.mxu0 0
      %2146 = vmatpush1.bf16.msra.mxu0 %v578
      %2147 = vmatprep.subr.bf16.mxu0 0
      %2148 = vmatpush1.bf16.msra.mxu0 %v579
      %2149 = vmatprep.subr.bf16.mxu0 0
      %2150 = vmatpush1.bf16.msra.mxu0 %v580
      %2151 = vmatprep.subr.bf16.mxu0 0
      %2152 = vmatpush1.bf16.msra.mxu0 %v581
      %2153 = vmatprep.subr.bf16.mxu0 0
      %2154 = vmatpush1.bf16.msra.mxu0 %v582
      %2155 = vmatprep.subr.bf16.mxu0 0
      %2156 = vmatpush1.bf16.msra.mxu0 %v583
      %2157 = vmatprep.subr.bf16.mxu0 0
      %2158 = vmatpush1.bf16.msra.mxu0 %v584
      %2159 = vmatprep.subr.bf16.mxu0 0
      %2160 = vmatpush1.bf16.msra.mxu0 %v641
      %2161 = vmatprep.subr.bf16.mxu0 0
      %2162 = vmatpush1.bf16.msra.mxu0 0
      %2163 = vmatprep.subr.bf16.mxu0 0
      %2164 = vmatpush1.bf16.msra.mxu0 0
      %2165 = vmatprep.subr.bf16.mxu0 0
      %2166 = vmatpush1.bf16.msra.mxu0 0
      %2167 = vmatprep.mubr.bf16.mxu0 %v2124
      %2168 = vmatmul.mubr.bf16.gmra.mrb[0].mxu0 %v2111
      %v2169 = vpop.f32.mrb[0].mxu0
      %v2170 = vadd.f32 0.0, %v2169
      %v2171 = vpop.f32.mrb[0].mxu0
      %v2172 = vpop.f32.mrb[0].mxu0
      %v2173 = vadd.f32 0.0, %v2172
      %v2174 = vpop.f32.mrb[0].mxu0
      %2175 = vmatprep.mubr.bf16.mxu0 %v2127
      %2176 = vmatmul.mubr.bf16.gmra.mrb[0].mxu0 %v2113
      %v2177 = vpop.f32.mrb[0].mxu0
      %v2178 = vadd.f32 0.0, %v2177
      %v2179 = vpop.f32.mrb[0].mxu0
      %v2180 = vpop.f32.mrb[0].mxu0
      %v2181 = vadd.f32 0.0, %v2180
      %v2182 = vpop.f32.mrb[0].mxu0
      %2183 = vmatprep.mubr.bf16.mxu0 %v2130
      %2184 = vmatmul.mubr.bf16.gmra.mrb[0].mxu0 %v2115
      %v2185 = vpop.f32.mrb[0].mxu0
      %v2186 = vadd.f32 0.0, %v2185
      %v2187 = vpop.f32.mrb[0].mxu0
      %v2188 = vpop.f32.mrb[0].mxu0
      %v2189 = vadd.f32 0.0, %v2188
      %v2190 = vpop.f32.mrb[0].mxu0
      %2191 = vmatprep.mubr.bf16.mxu0 %v2133
      %2192 = vmatmul.mubr.bf16.gmra.mrb[0].mxu0 %v2117
      %v2193 = vpop.f32.mrb[0].mxu0
      %v2194 = vadd.f32 0.0, %v2193
      %v2195 = vpop.f32.mrb[0].mxu0
      %v2196 = vpop.f32.mrb[0].mxu0
      %v2197 = vpop.f32.mrb[0].mxu0
      %2198 = vdwg.mxu0
      %s2199 = scalar_lea.vmem %s4, 96
      %v2200 = vld [vmem:[%s2199] sm:$0xff]
      %v2201 = vld [vmem:[%s2199 + $0x8] sm:$0x3]
      %v2203 = vsel %vm829, %v2170, 0
      %v2206 = vsel %vm829, %v2173, 0
      %v2209 = vsel %vm829, %v2178, 0
      %v2212 = vsel %vm829, %v2181, 0
      %v2215 = vsel %vm829, %v2186, 0
      %v2218 = vsel %vm829, %v2189, 0
      %v2221 = vsel %vm829, %v2194, 0
      %v2224 = vsel %vm639, %v2201, 0
      %2226 = vmatprep.subr.mxu0 0.0
      %2227 = vmatpush1.msra.mxu0 %v2200
      %2228 = vmatprep.subr.mxu0 0.0
      %2229 = vmatpush1.msra.mxu0 %v2224
      %2230 = vmatprep.subr.mxu0 0.0
      %2231 = vmatpush1.msra.mxu0 0.0
      %2232 = vmatprep.subr.mxu0 0.0
      %2233 = vmatpush1.msra.mxu0 0.0
      %2234 = vmatprep.subr.mxu0 0.0
      %2235 = vmatpush1.msra.mxu0 0.0
      %2236 = vmatprep.subr.mxu0 0.0
      %2237 = vmatpush1.msra.mxu0 0.0
      %2238 = vmatprep.subr.mxu0 0.0
      %2239 = vmatpush1.msra.mxu0 0.0
      %2240 = vmatprep.subr.mxu0 0.0
      %2241 = vmatpush1.msra.mxu0 0.0
      %2242 = vmatprep.subr.mxu0 0.0
      %2243 = vmatpush1.msra.mxu0 0.0
      %2244 = vmatprep.subr.mxu0 0.0
      %2245 = vmatpush1.msra.mxu0 0.0
      %2246 = vmatprep.subr.mxu0 0.0
      %2247 = vmatpush1.msra.mxu0 0.0
      %2248 = vmatprep.subr.mxu0 0.0
      %2249 = vmatpush1.msra.mxu0 0.0
      %2250 = vmatprep.subr.mxu0 0.0
      %2251 = vmatpush1.msra.mxu0 0.0
      %2252 = vmatprep.subr.mxu0 0.0
      %2253 = vmatpush1.msra.mxu0 0.0
      %2254 = vmatprep.subr.mxu0 0.0
      %2255 = vmatpush1.msra.mxu0 0.0
      %2256 = vmatprep.subr.mxu0 0.0
      %2257 = vmatpush1.msra.mxu0 0.0
      %2258 = vmatprep.subr.mxu0 0.0
      %2259 = vmatpush1.msra.mxu0 0.0
      %2260 = vmatprep.subr.mxu0 0.0
      %2261 = vmatpush1.msra.mxu0 0.0
      %2262 = vmatprep.subr.mxu0 0.0
      %2263 = vmatpush1.msra.mxu0 0.0
      %2264 = vmatprep.subr.mxu0 0.0
      %2265 = vmatpush1.msra.mxu0 0.0
      %2266 = vmatprep.subr.mxu0 0.0
      %2267 = vmatpush1.msra.mxu0 0.0
      %2268 = vmatprep.subr.mxu0 0.0
      %2269 = vmatpush1.msra.mxu0 0.0
      %2270 = vmatprep.subr.mxu0 0.0
      %2271 = vmatpush1.msra.mxu0 0.0
      %2272 = vmatprep.subr.mxu0 0.0
      %2273 = vmatpush1.msra.mxu0 0.0
      %2274 = vmatprep.subr.mxu0 0.0
      %2275 = vmatpush1.msra.mxu0 0.0
      %2276 = vmatprep.subr.mxu0 0.0
      %2277 = vmatpush1.msra.mxu0 0.0
      %2278 = vmatprep.subr.mxu0 0.0
      %2279 = vmatpush1.msra.mxu0 0.0
      %2280 = vmatprep.subr.mxu0 0.0
      %2281 = vmatpush1.msra.mxu0 0.0
      %2282 = vmatprep.subr.mxu0 0.0
      %2283 = vmatpush1.msra.mxu0 0.0
      %2284 = vmatprep.subr.mxu0 0.0
      %2285 = vmatpush1.msra.mxu0 0.0
      %2286 = vmatprep.subr.mxu0 0.0
      %2287 = vmatpush1.msra.mxu0 0.0
      %2288 = vmatprep.subr.mxu0 0.0
      %2289 = vmatpush1.msra.mxu0 0.0
      %2290 = vmatprep.mubr.f32.mxu0 0.0
      %2291 = vmatmul.mubr.f32.gmra.mrb[0].mxu0 %v2203
      %v2292 = vpop.f32.mrb[0].mxu0
      %v2293 = vadd.f32 0.0, %v2292
      %v2294 = vpop.f32.mrb[0].mxu0
      %2295 = vmatprep.mubr.f32.mxu0 0.0
      %2296 = vmatmul.mubr.f32.gmra.mrb[0].mxu0 %v2206
      %v2297 = vpop.f32.mrb[0].mxu0
      %v2298 = vadd.f32 0.0, %v2297
      %v2299 = vpop.f32.mrb[0].mxu0
      %2300 = vmatprep.mubr.f32.mxu0 0.0
      %2301 = vmatmul.mubr.f32.gmra.mrb[0].mxu0 %v2209
      %v2302 = vpop.f32.mrb[0].mxu0
      %v2303 = vadd.f32 0.0, %v2302
      %v2304 = vpop.f32.mrb[0].mxu0
      %2305 = vmatprep.mubr.f32.mxu0 0.0
      %2306 = vmatmul.mubr.f32.gmra.mrb[0].mxu0 %v2212
      %v2307 = vpop.f32.mrb[0].mxu0
      %v2308 = vadd.f32 0.0, %v2307
      %v2309 = vpop.f32.mrb[0].mxu0
      %2310 = vmatprep.mubr.f32.mxu0 0.0
      %2311 = vmatmul.mubr.f32.gmra.mrb[0].mxu0 %v2215
      %v2312 = vpop.f32.mrb[0].mxu0
      %v2313 = vadd.f32 0.0, %v2312
      %v2314 = vpop.f32.mrb[0].mxu0
      %2315 = vmatprep.mubr.f32.mxu0 0.0
      %2316 = vmatmul.mubr.f32.gmra.mrb[0].mxu0 %v2218
      %v2317 = vpop.f32.mrb[0].mxu0
      %v2318 = vadd.f32 0.0, %v2317
      %v2319 = vpop.f32.mrb[0].mxu0
      %2320 = vmatprep.mubr.f32.mxu0 0.0
      %2321 = vmatmul.mubr.f32.gmra.mrb[0].mxu0 %v2221
      %v2322 = vpop.f32.mrb[0].mxu0
      %v2323 = vadd.f32 0.0, %v2322
      %v2324 = vpop.f32.mrb[0].mxu0
      %2325 = vdwg.mxu0
      %v2326 = vadd.f32 %v2075, %v2293
      %v2327 = vadd.f32 %v2076, %v2298
      %v2328 = vadd.f32 %v2077, %v2303
      %v2329 = vadd.f32 %v2078, %v2308
      %v2330 = vadd.f32 %v2079, %v2313
      %v2331 = vadd.f32 %v2080, %v2318
      %v2332 = vadd.f32 %v2081, %v2323
      %s2333 = scalar_lea.vmem %s3, 392
      %v2334 = vld [vmem:[%s2333] sm:$0xff]
      %v2335 = vld [vmem:[%s2333 + $0x8] sm:$0xff]
      %v2336 = vld [vmem:[%s2333 + $0x10] sm:$0xff]
      %v2337 = vld [vmem:[%s2333 + $0x18] sm:$0xff]
      %v2338 = vld [vmem:[%s2333 + $0x20] sm:$0xff]
      %v2339 = vld [vmem:[%s2333 + $0x28] sm:$0xff]
      %v2340 = vld [vmem:[%s2333 + $0x30] sm:$0x11]
      %v2348 = vunpack.c.l.b16 %v2334
      %v2349 = vunpack.c.h.b16 %v2334
      %v2350 = vunpack.c.l.b16 %v2335
      %v2351 = vunpack.c.h.b16 %v2335
      %v2352 = vunpack.c.l.b16 %v2336
      %v2353 = vunpack.c.h.b16 %v2336
      %v2354 = vunpack.c.l.b16 %v2337
      %v2355 = vunpack.c.h.b16 %v2337
      %v2356 = vunpack.c.l.b16 %v2338
      %v2357 = vunpack.c.h.b16 %v2338
      %v2358 = vunpack.c.l.b16 %v2339
      %v2359 = vunpack.c.h.b16 %v2339
      %v2360 = vunpack.c.l.b16 %v2340
      %v2361 = vunpack.c.h.b16 %v2340
      %v2362 = vpack.c.b16 %v2350, %v2348
      %v2363 = vpack.c.b16 %v2351, %v2349
      %v2364 = vpack.c.b16 %v2354, %v2352
      %v2365 = vpack.c.b16 %v2355, %v2353
      %v2366 = vpack.c.b16 %v2358, %v2356
      %v2367 = vpack.c.b16 %v2359, %v2357
      %v2368 = vpack.c.b16 %v2360, %v2360
      %v2369 = vpack.c.b16 %v2361, %v2361
      %v2375 = vsel %vm626, %v2363, 0
      %v2378 = vsel %vm626, %v2365, 0
      %v2381 = vsel %vm626, %v2367, 0
      %v2384 = vsel %vm626, %v2369, 0
      %2386 = vmatprep.subr.bf16.mxu0 0
      %2387 = vmatpush1.bf16.msra.mxu0 %v573
      %2388 = vmatprep.subr.bf16.mxu0 0
      %2389 = vmatpush1.bf16.msra.mxu0 %v574
      %2390 = vmatprep.subr.bf16.mxu0 0
      %2391 = vmatpush1.bf16.msra.mxu0 %v575
      %2392 = vmatprep.subr.bf16.mxu0 0
      %2393 = vmatpush1.bf16.msra.mxu0 %v576
      %2394 = vmatprep.subr.bf16.mxu0 0
      %2395 = vmatpush1.bf16.msra.mxu0 %v577
      %2396 = vmatprep.subr.bf16.mxu0 0
      %2397 = vmatpush1.bf16.msra.mxu0 %v578
      %2398 = vmatprep.subr.bf16.mxu0 0
      %2399 = vmatpush1.bf16.msra.mxu0 %v579
      %2400 = vmatprep.subr.bf16.mxu0 0
      %2401 = vmatpush1.bf16.msra.mxu0 %v580
      %2402 = vmatprep.subr.bf16.mxu0 0
      %2403 = vmatpush1.bf16.msra.mxu0 %v581
      %2404 = vmatprep.subr.bf16.mxu0 0
      %2405 = vmatpush1.bf16.msra.mxu0 %v582
      %2406 = vmatprep.subr.bf16.mxu0 0
      %2407 = vmatpush1.bf16.msra.mxu0 %v583
      %2408 = vmatprep.subr.bf16.mxu0 0
      %2409 = vmatpush1.bf16.msra.mxu0 %v584
      %2410 = vmatprep.subr.bf16.mxu0 0
      %2411 = vmatpush1.bf16.msra.mxu0 %v641
      %2412 = vmatprep.subr.bf16.mxu0 0
      %2413 = vmatpush1.bf16.msra.mxu0 0
      %2414 = vmatprep.subr.bf16.mxu0 0
      %2415 = vmatpush1.bf16.msra.mxu0 0
      %2416 = vmatprep.subr.bf16.mxu0 0
      %2417 = vmatpush1.bf16.msra.mxu0 0
      %2418 = vmatprep.mubr.bf16.mxu0 %v2375
      %2419 = vmatmul.mubr.bf16.gmra.mrb[0].mxu0 %v2362
      %v2420 = vpop.f32.mrb[0].mxu0
      %v2421 = vadd.f32 0.0, %v2420
      %v2422 = vpop.f32.mrb[0].mxu0
      %v2423 = vpop.f32.mrb[0].mxu0
      %v2424 = vadd.f32 0.0, %v2423
      %v2425 = vpop.f32.mrb[0].mxu0
      %2426 = vmatprep.mubr.bf16.mxu0 %v2378
      %2427 = vmatmul.mubr.bf16.gmra.mrb[0].mxu0 %v2364
      %v2428 = vpop.f32.mrb[0].mxu0
      %v2429 = vadd.f32 0.0, %v2428
      %v2430 = vpop.f32.mrb[0].mxu0
      %v2431 = vpop.f32.mrb[0].mxu0
      %v2432 = vadd.f32 0.0, %v2431
      %v2433 = vpop.f32.mrb[0].mxu0
      %2434 = vmatprep.mubr.bf16.mxu0 %v2381
      %2435 = vmatmul.mubr.bf16.gmra.mrb[0].mxu0 %v2366
      %v2436 = vpop.f32.mrb[0].mxu0
      %v2437 = vadd.f32 0.0, %v2436
      %v2438 = vpop.f32.mrb[0].mxu0
      %v2439 = vpop.f32.mrb[0].mxu0
      %v2440 = vadd.f32 0.0, %v2439
      %v2441 = vpop.f32.mrb[0].mxu0
      %2442 = vmatprep.mubr.bf16.mxu0 %v2384
      %2443 = vmatmul.mubr.bf16.gmra.mrb[0].mxu0 %v2368
      %v2444 = vpop.f32.mrb[0].mxu0
      %v2445 = vadd.f32 0.0, %v2444
      %v2446 = vpop.f32.mrb[0].mxu0
      %v2447 = vpop.f32.mrb[0].mxu0
      %v2448 = vpop.f32.mrb[0].mxu0
      %2449 = vdwg.mxu0
      %s2450 = scalar_lea.vmem %s4, 112
      %v2451 = vld [vmem:[%s2450] sm:$0xff]
      %v2452 = vld [vmem:[%s2450 + $0x8] sm:$0x3]
      %v2454 = vsel %vm829, %v2421, 0
      %v2457 = vsel %vm829, %v2424, 0
      %v2460 = vsel %vm829, %v2429, 0
      %v2463 = vsel %vm829, %v2432, 0
      %v2466 = vsel %vm829, %v2437, 0
      %v2469 = vsel %vm829, %v2440, 0
      %v2472 = vsel %vm829, %v2445, 0
      %v2475 = vsel %vm639, %v2452, 0
      %2477 = vmatprep.subr.mxu0 0.0
      %2478 = vmatpush1.msra.mxu0 %v2451
      %2479 = vmatprep.subr.mxu0 0.0
      %2480 = vmatpush1.msra.mxu0 %v2475
      %2481 = vmatprep.subr.mxu0 0.0
      %2482 = vmatpush1.msra.mxu0 0.0
      %2483 = vmatprep.subr.mxu0 0.0
      %2484 = vmatpush1.msra.mxu0 0.0
      %2485 = vmatprep.subr.mxu0 0.0
      %2486 = vmatpush1.msra.mxu0 0.0
      %2487 = vmatprep.subr.mxu0 0.0
      %2488 = vmatpush1.msra.mxu0 0.0
      %2489 = vmatprep.subr.mxu0 0.0
      %2490 = vmatpush1.msra.mxu0 0.0
      %2491 = vmatprep.subr.mxu0 0.0
      %2492 = vmatpush1.msra.mxu0 0.0
      %2493 = vmatprep.subr.mxu0 0.0
      %2494 = vmatpush1.msra.mxu0 0.0
      %2495 = vmatprep.subr.mxu0 0.0
      %2496 = vmatpush1.msra.mxu0 0.0
      %2497 = vmatprep.subr.mxu0 0.0
      %2498 = vmatpush1.msra.mxu0 0.0
      %2499 = vmatprep.subr.mxu0 0.0
      %2500 = vmatpush1.msra.mxu0 0.0
      %2501 = vmatprep.subr.mxu0 0.0
      %2502 = vmatpush1.msra.mxu0 0.0
      %2503 = vmatprep.subr.mxu0 0.0
      %2504 = vmatpush1.msra.mxu0 0.0
      %2505 = vmatprep.subr.mxu0 0.0
      %2506 = vmatpush1.msra.mxu0 0.0
      %2507 = vmatprep.subr.mxu0 0.0
      %2508 = vmatpush1.msra.mxu0 0.0
      %2509 = vmatprep.subr.mxu0 0.0
      %2510 = vmatpush1.msra.mxu0 0.0
      %2511 = vmatprep.subr.mxu0 0.0
      %2512 = vmatpush1.msra.mxu0 0.0
      %2513 = vmatprep.subr.mxu0 0.0
      %2514 = vmatpush1.msra.mxu0 0.0
      %2515 = vmatprep.subr.mxu0 0.0
      %2516 = vmatpush1.msra.mxu0 0.0
      %2517 = vmatprep.subr.mxu0 0.0
      %2518 = vmatpush1.msra.mxu0 0.0
      %2519 = vmatprep.subr.mxu0 0.0
      %2520 = vmatpush1.msra.mxu0 0.0
      %2521 = vmatprep.subr.mxu0 0.0
      %2522 = vmatpush1.msra.mxu0 0.0
      %2523 = vmatprep.subr.mxu0 0.0
      %2524 = vmatpush1.msra.mxu0 0.0
      %2525 = vmatprep.subr.mxu0 0.0
      %2526 = vmatpush1.msra.mxu0 0.0
      %2527 = vmatprep.subr.mxu0 0.0
      %2528 = vmatpush1.msra.mxu0 0.0
      %2529 = vmatprep.subr.mxu0 0.0
      %2530 = vmatpush1.msra.mxu0 0.0
      %2531 = vmatprep.subr.mxu0 0.0
      %2532 = vmatpush1.msra.mxu0 0.0
      %2533 = vmatprep.subr.mxu0 0.0
      %2534 = vmatpush1.msra.mxu0 0.0
      %2535 = vmatprep.subr.mxu0 0.0
      %2536 = vmatpush1.msra.mxu0 0.0
      %2537 = vmatprep.subr.mxu0 0.0
      %2538 = vmatpush1.msra.mxu0 0.0
      %2539 = vmatprep.subr.mxu0 0.0
      %2540 = vmatpush1.msra.mxu0 0.0
      %2541 = vmatprep.mubr.f32.mxu0 0.0
      %2542 = vmatmul.mubr.f32.gmra.mrb[0].mxu0 %v2454
      %v2543 = vpop.f32.mrb[0].mxu0
      %v2544 = vadd.f32 0.0, %v2543
      %v2545 = vpop.f32.mrb[0].mxu0
      %2546 = vmatprep.mubr.f32.mxu0 0.0
      %2547 = vmatmul.mubr.f32.gmra.mrb[0].mxu0 %v2457
      %v2548 = vpop.f32.mrb[0].mxu0
      %v2549 = vadd.f32 0.0, %v2548
      %v2550 = vpop.f32.mrb[0].mxu0
      %2551 = vmatprep.mubr.f32.mxu0 0.0
      %2552 = vmatmul.mubr.f32.gmra.mrb[0].mxu0 %v2460
      %v2553 = vpop.f32.mrb[0].mxu0
      %v2554 = vadd.f32 0.0, %v2553
      %v2555 = vpop.f32.mrb[0].mxu0
      %2556 = vmatprep.mubr.f32.mxu0 0.0
      %2557 = vmatmul.mubr.f32.gmra.mrb[0].mxu0 %v2463
      %v2558 = vpop.f32.mrb[0].mxu0
      %v2559 = vadd.f32 0.0, %v2558
      %v2560 = vpop.f32.mrb[0].mxu0
      %2561 = vmatprep.mubr.f32.mxu0 0.0
      %2562 = vmatmul.mubr.f32.gmra.mrb[0].mxu0 %v2466
      %v2563 = vpop.f32.mrb[0].mxu0
      %v2564 = vadd.f32 0.0, %v2563
      %v2565 = vpop.f32.mrb[0].mxu0
      %2566 = vmatprep.mubr.f32.mxu0 0.0
      %2567 = vmatmul.mubr.f32.gmra.mrb[0].mxu0 %v2469
      %v2568 = vpop.f32.mrb[0].mxu0
      %v2569 = vadd.f32 0.0, %v2568
      %v2570 = vpop.f32.mrb[0].mxu0
      %2571 = vmatprep.mubr.f32.mxu0 0.0
      %2572 = vmatmul.mubr.f32.gmra.mrb[0].mxu0 %v2472
      %v2573 = vpop.f32.mrb[0].mxu0
      %v2574 = vadd.f32 0.0, %v2573
      %v2575 = vpop.f32.mrb[0].mxu0
      %2576 = vdwg.mxu0
      %v2577 = vadd.f32 %v2326, %v2544
      %v2578 = vadd.f32 %v2327, %v2549
      %v2579 = vadd.f32 %v2328, %v2554
      %v2580 = vadd.f32 %v2329, %v2559
      %v2581 = vadd.f32 %v2330, %v2564
      %v2582 = vadd.f32 %v2331, %v2569
      %v2583 = vadd.f32 %v2332, %v2574
      %s2584 = scalar_lea.vmem %s3, 448
      %v2585 = vld [vmem:[%s2584] sm:$0xff]
      %v2586 = vld [vmem:[%s2584 + $0x8] sm:$0xff]
      %v2587 = vld [vmem:[%s2584 + $0x10] sm:$0xff]
      %v2588 = vld [vmem:[%s2584 + $0x18] sm:$0xff]
      %v2589 = vld [vmem:[%s2584 + $0x20] sm:$0xff]
      %v2590 = vld [vmem:[%s2584 + $0x28] sm:$0xff]
      %v2591 = vld [vmem:[%s2584 + $0x30] sm:$0x11]
      %v2599 = vunpack.c.l.b16 %v2585
      %v2600 = vunpack.c.h.b16 %v2585
      %v2601 = vunpack.c.l.b16 %v2586
      %v2602 = vunpack.c.h.b16 %v2586
      %v2603 = vunpack.c.l.b16 %v2587
      %v2604 = vunpack.c.h.b16 %v2587
      %v2605 = vunpack.c.l.b16 %v2588
      %v2606 = vunpack.c.h.b16 %v2588
      %v2607 = vunpack.c.l.b16 %v2589
      %v2608 = vunpack.c.h.b16 %v2589
      %v2609 = vunpack.c.l.b16 %v2590
      %v2610 = vunpack.c.h.b16 %v2590
      %v2611 = vunpack.c.l.b16 %v2591
      %v2612 = vunpack.c.h.b16 %v2591
      %v2613 = vpack.c.b16 %v2601, %v2599
      %v2614 = vpack.c.b16 %v2602, %v2600
      %v2615 = vpack.c.b16 %v2605, %v2603
      %v2616 = vpack.c.b16 %v2606, %v2604
      %v2617 = vpack.c.b16 %v2609, %v2607
      %v2618 = vpack.c.b16 %v2610, %v2608
      %v2619 = vpack.c.b16 %v2611, %v2611
      %v2620 = vpack.c.b16 %v2612, %v2612
      %v2626 = vsel %vm626, %v2614, 0
      %v2629 = vsel %vm626, %v2616, 0
      %v2632 = vsel %vm626, %v2618, 0
      %v2635 = vsel %vm626, %v2620, 0
      %2637 = vmatprep.subr.bf16.mxu0 0
      %2638 = vmatpush1.bf16.msra.mxu0 %v573
      %2639 = vmatprep.subr.bf16.mxu0 0
      %2640 = vmatpush1.bf16.msra.mxu0 %v574
      %2641 = vmatprep.subr.bf16.mxu0 0
      %2642 = vmatpush1.bf16.msra.mxu0 %v575
      %2643 = vmatprep.subr.bf16.mxu0 0
      %2644 = vmatpush1.bf16.msra.mxu0 %v576
      %2645 = vmatprep.subr.bf16.mxu0 0
      %2646 = vmatpush1.bf16.msra.mxu0 %v577
      %2647 = vmatprep.subr.bf16.mxu0 0
      %2648 = vmatpush1.bf16.msra.mxu0 %v578
      %2649 = vmatprep.subr.bf16.mxu0 0
      %2650 = vmatpush1.bf16.msra.mxu0 %v579
      %2651 = vmatprep.subr.bf16.mxu0 0
      %2652 = vmatpush1.bf16.msra.mxu0 %v580
      %2653 = vmatprep.subr.bf16.mxu0 0
      %2654 = vmatpush1.bf16.msra.mxu0 %v581
      %2655 = vmatprep.subr.bf16.mxu0 0
      %2656 = vmatpush1.bf16.msra.mxu0 %v582
      %2657 = vmatprep.subr.bf16.mxu0 0
      %2658 = vmatpush1.bf16.msra.mxu0 %v583
      %2659 = vmatprep.subr.bf16.mxu0 0
      %2660 = vmatpush1.bf16.msra.mxu0 %v584
      %2661 = vmatprep.subr.bf16.mxu0 0
      %2662 = vmatpush1.bf16.msra.mxu0 %v641
      %2663 = vmatprep.subr.bf16.mxu0 0
      %2664 = vmatpush1.bf16.msra.mxu0 0
      %2665 = vmatprep.subr.bf16.mxu0 0
      %2666 = vmatpush1.bf16.msra.mxu0 0
      %2667 = vmatprep.subr.bf16.mxu0 0
      %2668 = vmatpush1.bf16.msra.mxu0 0
      %2669 = vmatprep.mubr.bf16.mxu0 %v2626
      %2670 = vmatmul.mubr.bf16.gmra.mrb[0].mxu0 %v2613
      %v2671 = vpop.f32.mrb[0].mxu0
      %v2672 = vadd.f32 0.0, %v2671
      %v2673 = vpop.f32.mrb[0].mxu0
      %v2674 = vpop.f32.mrb[0].mxu0
      %v2675 = vadd.f32 0.0, %v2674
      %v2676 = vpop.f32.mrb[0].mxu0
      %2677 = vmatprep.mubr.bf16.mxu0 %v2629
      %2678 = vmatmul.mubr.bf16.gmra.mrb[0].mxu0 %v2615
      %v2679 = vpop.f32.mrb[0].mxu0
      %v2680 = vadd.f32 0.0, %v2679
      %v2681 = vpop.f32.mrb[0].mxu0
      %v2682 = vpop.f32.mrb[0].mxu0
      %v2683 = vadd.f32 0.0, %v2682
      %v2684 = vpop.f32.mrb[0].mxu0
      %2685 = vmatprep.mubr.bf16.mxu0 %v2632
      %2686 = vmatmul.mubr.bf16.gmra.mrb[0].mxu0 %v2617
      %v2687 = vpop.f32.mrb[0].mxu0
      %v2688 = vadd.f32 0.0, %v2687
      %v2689 = vpop.f32.mrb[0].mxu0
      %v2690 = vpop.f32.mrb[0].mxu0
      %v2691 = vadd.f32 0.0, %v2690
      %v2692 = vpop.f32.mrb[0].mxu0
      %2693 = vmatprep.mubr.bf16.mxu0 %v2635
      %2694 = vmatmul.mubr.bf16.gmra.mrb[0].mxu0 %v2619
      %v2695 = vpop.f32.mrb[0].mxu0
      %v2696 = vadd.f32 0.0, %v2695
      %v2697 = vpop.f32.mrb[0].mxu0
      %v2698 = vpop.f32.mrb[0].mxu0
      %v2699 = vpop.f32.mrb[0].mxu0
      %2700 = vdwg.mxu0
      %s2701 = scalar_lea.vmem %s4, 128
      %v2702 = vld [vmem:[%s2701] sm:$0xff]
      %v2703 = vld [vmem:[%s2701 + $0x8] sm:$0x3]
      %v2705 = vsel %vm829, %v2672, 0
      %v2708 = vsel %vm829, %v2675, 0
      %v2711 = vsel %vm829, %v2680, 0
      %v2714 = vsel %vm829, %v2683, 0
      %v2717 = vsel %vm829, %v2688, 0
      %v2720 = vsel %vm829, %v2691, 0
      %v2723 = vsel %vm829, %v2696, 0
      %v2726 = vsel %vm639, %v2703, 0
      %2728 = vmatprep.subr.mxu0 0.0
      %2729 = vmatpush1.msra.mxu0 %v2702
      %2730 = vmatprep.subr.mxu0 0.0
      %2731 = vmatpush1.msra.mxu0 %v2726
      %2732 = vmatprep.subr.mxu0 0.0
      %2733 = vmatpush1.msra.mxu0 0.0
      %2734 = vmatprep.subr.mxu0 0.0
      %2735 = vmatpush1.msra.mxu0 0.0
      %2736 = vmatprep.subr.mxu0 0.0
      %2737 = vmatpush1.msra.mxu0 0.0
      %2738 = vmatprep.subr.mxu0 0.0
      %2739 = vmatpush1.msra.mxu0 0.0
      %2740 = vmatprep.subr.mxu0 0.0
      %2741 = vmatpush1.msra.mxu0 0.0
      %2742 = vmatprep.subr.mxu0 0.0
      %2743 = vmatpush1.msra.mxu0 0.0
      %2744 = vmatprep.subr.mxu0 0.0
      %2745 = vmatpush1.msra.mxu0 0.0
      %2746 = vmatprep.subr.mxu0 0.0
      %2747 = vmatpush1.msra.mxu0 0.0
      %2748 = vmatprep.subr.mxu0 0.0
      %2749 = vmatpush1.msra.mxu0 0.0
      %2750 = vmatprep.subr.mxu0 0.0
      %2751 = vmatpush1.msra.mxu0 0.0
      %2752 = vmatprep.subr.mxu0 0.0
      %2753 = vmatpush1.msra.mxu0 0.0
      %2754 = vmatprep.subr.mxu0 0.0
      %2755 = vmatpush1.msra.mxu0 0.0
      %2756 = vmatprep.subr.mxu0 0.0
      %2757 = vmatpush1.msra.mxu0 0.0
      %2758 = vmatprep.subr.mxu0 0.0
      %2759 = vmatpush1.msra.mxu0 0.0
      %2760 = vmatprep.subr.mxu0 0.0
      %2761 = vmatpush1.msra.mxu0 0.0
      %2762 = vmatprep.subr.mxu0 0.0
      %2763 = vmatpush1.msra.mxu0 0.0
      %2764 = vmatprep.subr.mxu0 0.0
      %2765 = vmatpush1.msra.mxu0 0.0
      %2766 = vmatprep.subr.mxu0 0.0
      %2767 = vmatpush1.msra.mxu0 0.0
      %2768 = vmatprep.subr.mxu0 0.0
      %2769 = vmatpush1.msra.mxu0 0.0
      %2770 = vmatprep.subr.mxu0 0.0
      %2771 = vmatpush1.msra.mxu0 0.0
      %2772 = vmatprep.subr.mxu0 0.0
      %2773 = vmatpush1.msra.mxu0 0.0
      %2774 = vmatprep.subr.mxu0 0.0
      %2775 = vmatpush1.msra.mxu0 0.0
      %2776 = vmatprep.subr.mxu0 0.0
      %2777 = vmatpush1.msra.mxu0 0.0
      %2778 = vmatprep.subr.mxu0 0.0
      %2779 = vmatpush1.msra.mxu0 0.0
      %2780 = vmatprep.subr.mxu0 0.0
      %2781 = vmatpush1.msra.mxu0 0.0
      %2782 = vmatprep.subr.mxu0 0.0
      %2783 = vmatpush1.msra.mxu0 0.0
      %2784 = vmatprep.subr.mxu0 0.0
      %2785 = vmatpush1.msra.mxu0 0.0
      %2786 = vmatprep.subr.mxu0 0.0
      %2787 = vmatpush1.msra.mxu0 0.0
      %2788 = vmatprep.subr.mxu0 0.0
      %2789 = vmatpush1.msra.mxu0 0.0
      %2790 = vmatprep.subr.mxu0 0.0
      %2791 = vmatpush1.msra.mxu0 0.0
      %2792 = vmatprep.mubr.f32.mxu0 0.0
      %2793 = vmatmul.mubr.f32.gmra.mrb[0].mxu0 %v2705
      %v2794 = vpop.f32.mrb[0].mxu0
      %v2795 = vadd.f32 0.0, %v2794
      %v2796 = vpop.f32.mrb[0].mxu0
      %2797 = vmatprep.mubr.f32.mxu0 0.0
      %2798 = vmatmul.mubr.f32.gmra.mrb[0].mxu0 %v2708
      %v2799 = vpop.f32.mrb[0].mxu0
      %v2800 = vadd.f32 0.0, %v2799
      %v2801 = vpop.f32.mrb[0].mxu0
      %2802 = vmatprep.mubr.f32.mxu0 0.0
      %2803 = vmatmul.mubr.f32.gmra.mrb[0].mxu0 %v2711
      %v2804 = vpop.f32.mrb[0].mxu0
      %v2805 = vadd.f32 0.0, %v2804
      %v2806 = vpop.f32.mrb[0].mxu0
      %2807 = vmatprep.mubr.f32.mxu0 0.0
      %2808 = vmatmul.mubr.f32.gmra.mrb[0].mxu0 %v2714
      %v2809 = vpop.f32.mrb[0].mxu0
      %v2810 = vadd.f32 0.0, %v2809
      %v2811 = vpop.f32.mrb[0].mxu0
      %2812 = vmatprep.mubr.f32.mxu0 0.0
      %2813 = vmatmul.mubr.f32.gmra.mrb[0].mxu0 %v2717
      %v2814 = vpop.f32.mrb[0].mxu0
      %v2815 = vadd.f32 0.0, %v2814
      %v2816 = vpop.f32.mrb[0].mxu0
      %2817 = vmatprep.mubr.f32.mxu0 0.0
      %2818 = vmatmul.mubr.f32.gmra.mrb[0].mxu0 %v2720
      %v2819 = vpop.f32.mrb[0].mxu0
      %v2820 = vadd.f32 0.0, %v2819
      %v2821 = vpop.f32.mrb[0].mxu0
      %2822 = vmatprep.mubr.f32.mxu0 0.0
      %2823 = vmatmul.mubr.f32.gmra.mrb[0].mxu0 %v2723
      %v2824 = vpop.f32.mrb[0].mxu0
      %v2825 = vadd.f32 0.0, %v2824
      %v2826 = vpop.f32.mrb[0].mxu0
      %2827 = vdwg.mxu0
      %v2828 = vadd.f32 %v2577, %v2795
      %v2829 = vadd.f32 %v2578, %v2800
      %v2830 = vadd.f32 %v2579, %v2805
      %v2831 = vadd.f32 %v2580, %v2810
      %v2832 = vadd.f32 %v2581, %v2815
      %v2833 = vadd.f32 %v2582, %v2820
      %v2834 = vadd.f32 %v2583, %v2825
      %s2835 = scalar_lea.vmem %s3, 504
      %v2836 = vld [vmem:[%s2835] sm:$0xff]
      %v2837 = vld [vmem:[%s2835 + $0x8] sm:$0xff]
      %v2838 = vld [vmem:[%s2835 + $0x10] sm:$0xff]
      %v2839 = vld [vmem:[%s2835 + $0x18] sm:$0xff]
      %v2840 = vld [vmem:[%s2835 + $0x20] sm:$0xff]
      %v2841 = vld [vmem:[%s2835 + $0x28] sm:$0xff]
      %v2842 = vld [vmem:[%s2835 + $0x30] sm:$0x11]
      %v2850 = vunpack.c.l.b16 %v2836
      %v2851 = vunpack.c.h.b16 %v2836
      %v2852 = vunpack.c.l.b16 %v2837
      %v2853 = vunpack.c.h.b16 %v2837
      %v2854 = vunpack.c.l.b16 %v2838
      %v2855 = vunpack.c.h.b16 %v2838
      %v2856 = vunpack.c.l.b16 %v2839
      %v2857 = vunpack.c.h.b16 %v2839
      %v2858 = vunpack.c.l.b16 %v2840
      %v2859 = vunpack.c.h.b16 %v2840
      %v2860 = vunpack.c.l.b16 %v2841
      %v2861 = vunpack.c.h.b16 %v2841
      %v2862 = vunpack.c.l.b16 %v2842
      %v2863 = vunpack.c.h.b16 %v2842
      %v2864 = vpack.c.b16 %v2852, %v2850
      %v2865 = vpack.c.b16 %v2853, %v2851
      %v2866 = vpack.c.b16 %v2856, %v2854
      %v2867 = vpack.c.b16 %v2857, %v2855
      %v2868 = vpack.c.b16 %v2860, %v2858
      %v2869 = vpack.c.b16 %v2861, %v2859
      %v2870 = vpack.c.b16 %v2862, %v2862
      %v2871 = vpack.c.b16 %v2863, %v2863
      %v2877 = vsel %vm626, %v2865, 0
      %v2880 = vsel %vm626, %v2867, 0
      %v2883 = vsel %vm626, %v2869, 0
      %v2886 = vsel %vm626, %v2871, 0
      %2888 = vmatprep.subr.bf16.mxu0 0
      %2889 = vmatpush1.bf16.msra.mxu0 %v573
      %2890 = vmatprep.subr.bf16.mxu0 0
      %2891 = vmatpush1.bf16.msra.mxu0 %v574
      %2892 = vmatprep.subr.bf16.mxu0 0
      %2893 = vmatpush1.bf16.msra.mxu0 %v575
      %2894 = vmatprep.subr.bf16.mxu0 0
      %2895 = vmatpush1.bf16.msra.mxu0 %v576
      %2896 = vmatprep.subr.bf16.mxu0 0
      %2897 = vmatpush1.bf16.msra.mxu0 %v577
      %2898 = vmatprep.subr.bf16.mxu0 0
      %2899 = vmatpush1.bf16.msra.mxu0 %v578
      %2900 = vmatprep.subr.bf16.mxu0 0
      %2901 = vmatpush1.bf16.msra.mxu0 %v579
      %2902 = vmatprep.subr.bf16.mxu0 0
      %2903 = vmatpush1.bf16.msra.mxu0 %v580
      %2904 = vmatprep.subr.bf16.mxu0 0
      %2905 = vmatpush1.bf16.msra.mxu0 %v581
      %2906 = vmatprep.subr.bf16.mxu0 0
      %2907 = vmatpush1.bf16.msra.mxu0 %v582
      %2908 = vmatprep.subr.bf16.mxu0 0
      %2909 = vmatpush1.bf16.msra.mxu0 %v583
      %2910 = vmatprep.subr.bf16.mxu0 0
      %2911 = vmatpush1.bf16.msra.mxu0 %v584
      %2912 = vmatprep.subr.bf16.mxu0 0
      %2913 = vmatpush1.bf16.msra.mxu0 %v641
      %2914 = vmatprep.subr.bf16.mxu0 0
      %2915 = vmatpush1.bf16.msra.mxu0 0
      %2916 = vmatprep.subr.bf16.mxu0 0
      %2917 = vmatpush1.bf16.msra.mxu0 0
      %2918 = vmatprep.subr.bf16.mxu0 0
      %2919 = vmatpush1.bf16.msra.mxu0 0
      %2920 = vmatprep.mubr.bf16.mxu0 %v2877
      %2921 = vmatmul.mubr.bf16.gmra.mrb[0].mxu0 %v2864
      %v2922 = vpop.f32.mrb[0].mxu0
      %v2923 = vadd.f32 0.0, %v2922
      %v2924 = vpop.f32.mrb[0].mxu0
      %v2925 = vpop.f32.mrb[0].mxu0
      %v2926 = vadd.f32 0.0, %v2925
      %v2927 = vpop.f32.mrb[0].mxu0
      %2928 = vmatprep.mubr.bf16.mxu0 %v2880
      %2929 = vmatmul.mubr.bf16.gmra.mrb[0].mxu0 %v2866
      %v2930 = vpop.f32.mrb[0].mxu0
      %v2931 = vadd.f32 0.0, %v2930
      %v2932 = vpop.f32.mrb[0].mxu0
      %v2933 = vpop.f32.mrb[0].mxu0
      %v2934 = vadd.f32 0.0, %v2933
      %v2935 = vpop.f32.mrb[0].mxu0
      %2936 = vmatprep.mubr.bf16.mxu0 %v2883
      %2937 = vmatmul.mubr.bf16.gmra.mrb[0].mxu0 %v2868
      %v2938 = vpop.f32.mrb[0].mxu0
      %v2939 = vadd.f32 0.0, %v2938
      %v2940 = vpop.f32.mrb[0].mxu0
      %v2941 = vpop.f32.mrb[0].mxu0
      %v2942 = vadd.f32 0.0, %v2941
      %v2943 = vpop.f32.mrb[0].mxu0
      %2944 = vmatprep.mubr.bf16.mxu0 %v2886
      %2945 = vmatmul.mubr.bf16.gmra.mrb[0].mxu0 %v2870
      %v2946 = vpop.f32.mrb[0].mxu0
      %v2947 = vadd.f32 0.0, %v2946
      %v2948 = vpop.f32.mrb[0].mxu0
      %v2949 = vpop.f32.mrb[0].mxu0
      %v2950 = vpop.f32.mrb[0].mxu0
      %2951 = vdwg.mxu0
      %s2952 = scalar_lea.vmem %s4, 144
      %v2953 = vld [vmem:[%s2952] sm:$0xff]
      %v2954 = vld [vmem:[%s2952 + $0x8] sm:$0x3]
      %v2956 = vsel %vm829, %v2923, 0
      %v2959 = vsel %vm829, %v2926, 0
      %v2962 = vsel %vm829, %v2931, 0
      %v2965 = vsel %vm829, %v2934, 0
      %v2968 = vsel %vm829, %v2939, 0
      %v2971 = vsel %vm829, %v2942, 0
      %v2974 = vsel %vm829, %v2947, 0
      %v2977 = vsel %vm639, %v2954, 0
      %2979 = vmatprep.subr.mxu0 0.0
      %2980 = vmatpush1.msra.mxu0 %v2953
      %2981 = vmatprep.subr.mxu0 0.0
      %2982 = vmatpush1.msra.mxu0 %v2977
      %2983 = vmatprep.subr.mxu0 0.0
      %2984 = vmatpush1.msra.mxu0 0.0
      %2985 = vmatprep.subr.mxu0 0.0
      %2986 = vmatpush1.msra.mxu0 0.0
      %2987 = vmatprep.subr.mxu0 0.0
      %2988 = vmatpush1.msra.mxu0 0.0
      %2989 = vmatprep.subr.mxu0 0.0
      %2990 = vmatpush1.msra.mxu0 0.0
      %2991 = vmatprep.subr.mxu0 0.0
      %2992 = vmatpush1.msra.mxu0 0.0
      %2993 = vmatprep.subr.mxu0 0.0
      %2994 = vmatpush1.msra.mxu0 0.0
      %2995 = vmatprep.subr.mxu0 0.0
      %2996 = vmatpush1.msra.mxu0 0.0
      %2997 = vmatprep.subr.mxu0 0.0
      %2998 = vmatpush1.msra.mxu0 0.0
      %2999 = vmatprep.subr.mxu0 0.0
      %3000 = vmatpush1.msra.mxu0 0.0
      %3001 = vmatprep.subr.mxu0 0.0
      %3002 = vmatpush1.msra.mxu0 0.0
      %3003 = vmatprep.subr.mxu0 0.0
      %3004 = vmatpush1.msra.mxu0 0.0
      %3005 = vmatprep.subr.mxu0 0.0
      %3006 = vmatpush1.msra.mxu0 0.0
      %3007 = vmatprep.subr.mxu0 0.0
      %3008 = vmatpush1.msra.mxu0 0.0
      %3009 = vmatprep.subr.mxu0 0.0
      %3010 = vmatpush1.msra.mxu0 0.0
      %3011 = vmatprep.subr.mxu0 0.0
      %3012 = vmatpush1.msra.mxu0 0.0
      %3013 = vmatprep.subr.mxu0 0.0
      %3014 = vmatpush1.msra.mxu0 0.0
      %3015 = vmatprep.subr.mxu0 0.0
      %3016 = vmatpush1.msra.mxu0 0.0
      %3017 = vmatprep.subr.mxu0 0.0
      %3018 = vmatpush1.msra.mxu0 0.0
      %3019 = vmatprep.subr.mxu0 0.0
      %3020 = vmatpush1.msra.mxu0 0.0
      %3021 = vmatprep.subr.mxu0 0.0
      %3022 = vmatpush1.msra.mxu0 0.0
      %3023 = vmatprep.subr.mxu0 0.0
      %3024 = vmatpush1.msra.mxu0 0.0
      %3025 = vmatprep.subr.mxu0 0.0
      %3026 = vmatpush1.msra.mxu0 0.0
      %3027 = vmatprep.subr.mxu0 0.0
      %3028 = vmatpush1.msra.mxu0 0.0
      %3029 = vmatprep.subr.mxu0 0.0
      %3030 = vmatpush1.msra.mxu0 0.0
      %3031 = vmatprep.subr.mxu0 0.0
      %3032 = vmatpush1.msra.mxu0 0.0
      %3033 = vmatprep.subr.mxu0 0.0
      %3034 = vmatpush1.msra.mxu0 0.0
      %3035 = vmatprep.subr.mxu0 0.0
      %3036 = vmatpush1.msra.mxu0 0.0
      %3037 = vmatprep.subr.mxu0 0.0
      %3038 = vmatpush1.msra.mxu0 0.0
      %3039 = vmatprep.subr.mxu0 0.0
      %3040 = vmatpush1.msra.mxu0 0.0
      %3041 = vmatprep.subr.mxu0 0.0
      %3042 = vmatpush1.msra.mxu0 0.0
      %3043 = vmatprep.mubr.f32.mxu0 0.0
      %3044 = vmatmul.mubr.f32.gmra.mrb[0].mxu0 %v2956
      %v3045 = vpop.f32.mrb[0].mxu0
      %v3046 = vadd.f32 0.0, %v3045
      %v3047 = vpop.f32.mrb[0].mxu0
      %3048 = vmatprep.mubr.f32.mxu0 0.0
      %3049 = vmatmul.mubr.f32.gmra.mrb[0].mxu0 %v2959
      %v3050 = vpop.f32.mrb[0].mxu0
      %v3051 = vadd.f32 0.0, %v3050
      %v3052 = vpop.f32.mrb[0].mxu0
      %3053 = vmatprep.mubr.f32.mxu0 0.0
      %3054 = vmatmul.mubr.f32.gmra.mrb[0].mxu0 %v2962
      %v3055 = vpop.f32.mrb[0].mxu0
      %v3056 = vadd.f32 0.0, %v3055
      %v3057 = vpop.f32.mrb[0].mxu0
      %3058 = vmatprep.mubr.f32.mxu0 0.0
      %3059 = vmatmul.mubr.f32.gmra.mrb[0].mxu0 %v2965
      %v3060 = vpop.f32.mrb[0].mxu0
      %v3061 = vadd.f32 0.0, %v3060
      %v3062 = vpop.f32.mrb[0].mxu0
      %3063 = vmatprep.mubr.f32.mxu0 0.0
      %3064 = vmatmul.mubr.f32.gmra.mrb[0].mxu0 %v2968
      %v3065 = vpop.f32.mrb[0].mxu0
      %v3066 = vadd.f32 0.0, %v3065
      %v3067 = vpop.f32.mrb[0].mxu0
      %3068 = vmatprep.mubr.f32.mxu0 0.0
      %3069 = vmatmul.mubr.f32.gmra.mrb[0].mxu0 %v2971
      %v3070 = vpop.f32.mrb[0].mxu0
      %v3071 = vadd.f32 0.0, %v3070
      %v3072 = vpop.f32.mrb[0].mxu0
      %3073 = vmatprep.mubr.f32.mxu0 0.0
      %3074 = vmatmul.mubr.f32.gmra.mrb[0].mxu0 %v2974
      %v3075 = vpop.f32.mrb[0].mxu0
      %v3076 = vadd.f32 0.0, %v3075
      %v3077 = vpop.f32.mrb[0].mxu0
      %3078 = vdwg.mxu0
      %v3079 = vadd.f32 %v2828, %v3046
      %v3080 = vadd.f32 %v2829, %v3051
      %v3081 = vadd.f32 %v2830, %v3056
      %v3082 = vadd.f32 %v2831, %v3061
      %v3083 = vadd.f32 %v2832, %v3066
      %v3084 = vadd.f32 %v2833, %v3071
      %v3085 = vadd.f32 %v2834, %v3076
      %s3086 = scalar_lea.vmem %s3, 560
      %v3087 = vld [vmem:[%s3086] sm:$0xff]
      %v3088 = vld [vmem:[%s3086 + $0x8] sm:$0xff]
      %v3089 = vld [vmem:[%s3086 + $0x10] sm:$0xff]
      %v3090 = vld [vmem:[%s3086 + $0x18] sm:$0xff]
      %v3091 = vld [vmem:[%s3086 + $0x20] sm:$0xff]
      %v3092 = vld [vmem:[%s3086 + $0x28] sm:$0xff]
      %v3093 = vld [vmem:[%s3086 + $0x30] sm:$0x11]
      %v3101 = vunpack.c.l.b16 %v3087
      %v3102 = vunpack.c.h.b16 %v3087
      %v3103 = vunpack.c.l.b16 %v3088
      %v3104 = vunpack.c.h.b16 %v3088
      %v3105 = vunpack.c.l.b16 %v3089
      %v3106 = vunpack.c.h.b16 %v3089
      %v3107 = vunpack.c.l.b16 %v3090
      %v3108 = vunpack.c.h.b16 %v3090
      %v3109 = vunpack.c.l.b16 %v3091
      %v3110 = vunpack.c.h.b16 %v3091
      %v3111 = vunpack.c.l.b16 %v3092
      %v3112 = vunpack.c.h.b16 %v3092
      %v3113 = vunpack.c.l.b16 %v3093
      %v3114 = vunpack.c.h.b16 %v3093
      %v3115 = vpack.c.b16 %v3103, %v3101
      %v3116 = vpack.c.b16 %v3104, %v3102
      %v3117 = vpack.c.b16 %v3107, %v3105
      %v3118 = vpack.c.b16 %v3108, %v3106
      %v3119 = vpack.c.b16 %v3111, %v3109
      %v3120 = vpack.c.b16 %v3112, %v3110
      %v3121 = vpack.c.b16 %v3113, %v3113
      %v3122 = vpack.c.b16 %v3114, %v3114
      %v3128 = vsel %vm626, %v3116, 0
      %v3131 = vsel %vm626, %v3118, 0
      %v3134 = vsel %vm626, %v3120, 0
      %v3137 = vsel %vm626, %v3122, 0
      %3139 = vmatprep.subr.bf16.mxu0 0
      %3140 = vmatpush1.bf16.msra.mxu0 %v573
      %3141 = vmatprep.subr.bf16.mxu0 0
      %3142 = vmatpush1.bf16.msra.mxu0 %v574
      %3143 = vmatprep.subr.bf16.mxu0 0
      %3144 = vmatpush1.bf16.msra.mxu0 %v575
      %3145 = vmatprep.subr.bf16.mxu0 0
      %3146 = vmatpush1.bf16.msra.mxu0 %v576
      %3147 = vmatprep.subr.bf16.mxu0 0
      %3148 = vmatpush1.bf16.msra.mxu0 %v577
      %3149 = vmatprep.subr.bf16.mxu0 0
      %3150 = vmatpush1.bf16.msra.mxu0 %v578
      %3151 = vmatprep.subr.bf16.mxu0 0
      %3152 = vmatpush1.bf16.msra.mxu0 %v579
      %3153 = vmatprep.subr.bf16.mxu0 0
      %3154 = vmatpush1.bf16.msra.mxu0 %v580
      %3155 = vmatprep.subr.bf16.mxu0 0
      %3156 = vmatpush1.bf16.msra.mxu0 %v581
      %3157 = vmatprep.subr.bf16.mxu0 0
      %3158 = vmatpush1.bf16.msra.mxu0 %v582
      %3159 = vmatprep.subr.bf16.mxu0 0
      %3160 = vmatpush1.bf16.msra.mxu0 %v583
      %3161 = vmatprep.subr.bf16.mxu0 0
      %3162 = vmatpush1.bf16.msra.mxu0 %v584
      %3163 = vmatprep.subr.bf16.mxu0 0
      %3164 = vmatpush1.bf16.msra.mxu0 %v641
      %3165 = vmatprep.subr.bf16.mxu0 0
      %3166 = vmatpush1.bf16.msra.mxu0 0
      %3167 = vmatprep.subr.bf16.mxu0 0
      %3168 = vmatpush1.bf16.msra.mxu0 0
      %3169 = vmatprep.subr.bf16.mxu0 0
      %3170 = vmatpush1.bf16.msra.mxu0 0
      %3171 = vmatprep.mubr.bf16.mxu0 %v3128
      %3172 = vmatmul.mubr.bf16.gmra.mrb[0].mxu0 %v3115
      %v3173 = vpop.f32.mrb[0].mxu0
      %v3174 = vadd.f32 0.0, %v3173
      %v3175 = vpop.f32.mrb[0].mxu0
      %v3176 = vpop.f32.mrb[0].mxu0
      %v3177 = vadd.f32 0.0, %v3176
      %v3178 = vpop.f32.mrb[0].mxu0
      %3179 = vmatprep.mubr.bf16.mxu0 %v3131
      %3180 = vmatmul.mubr.bf16.gmra.mrb[0].mxu0 %v3117
      %v3181 = vpop.f32.mrb[0].mxu0
      %v3182 = vadd.f32 0.0, %v3181
      %v3183 = vpop.f32.mrb[0].mxu0
      %v3184 = vpop.f32.mrb[0].mxu0
      %v3185 = vadd.f32 0.0, %v3184
      %v3186 = vpop.f32.mrb[0].mxu0
      %3187 = vmatprep.mubr.bf16.mxu0 %v3134
      %3188 = vmatmul.mubr.bf16.gmra.mrb[0].mxu0 %v3119
      %v3189 = vpop.f32.mrb[0].mxu0
      %v3190 = vadd.f32 0.0, %v3189
      %v3191 = vpop.f32.mrb[0].mxu0
      %v3192 = vpop.f32.mrb[0].mxu0
      %v3193 = vadd.f32 0.0, %v3192
      %v3194 = vpop.f32.mrb[0].mxu0
      %3195 = vmatprep.mubr.bf16.mxu0 %v3137
      %3196 = vmatmul.mubr.bf16.gmra.mrb[0].mxu0 %v3121
      %v3197 = vpop.f32.mrb[0].mxu0
      %v3198 = vadd.f32 0.0, %v3197
      %v3199 = vpop.f32.mrb[0].mxu0
      %v3200 = vpop.f32.mrb[0].mxu0
      %v3201 = vpop.f32.mrb[0].mxu0
      %3202 = vdwg.mxu0
      %s3203 = scalar_lea.vmem %s4, 160
      %v3204 = vld [vmem:[%s3203] sm:$0xff]
      %v3205 = vld [vmem:[%s3203 + $0x8] sm:$0x3]
      %v3207 = vsel %vm829, %v3174, 0
      %v3210 = vsel %vm829, %v3177, 0
      %v3213 = vsel %vm829, %v3182, 0
      %v3216 = vsel %vm829, %v3185, 0
      %v3219 = vsel %vm829, %v3190, 0
      %v3222 = vsel %vm829, %v3193, 0
      %v3225 = vsel %vm829, %v3198, 0
      %v3228 = vsel %vm639, %v3205, 0
      %3230 = vmatprep.subr.mxu0 0.0
      %3231 = vmatpush1.msra.mxu0 %v3204
      %3232 = vmatprep.subr.mxu0 0.0
      %3233 = vmatpush1.msra.mxu0 %v3228
      %3234 = vmatprep.subr.mxu0 0.0
      %3235 = vmatpush1.msra.mxu0 0.0
      %3236 = vmatprep.subr.mxu0 0.0
      %3237 = vmatpush1.msra.mxu0 0.0
      %3238 = vmatprep.subr.mxu0 0.0
      %3239 = vmatpush1.msra.mxu0 0.0
      %3240 = vmatprep.subr.mxu0 0.0
      %3241 = vmatpush1.msra.mxu0 0.0
      %3242 = vmatprep.subr.mxu0 0.0
      %3243 = vmatpush1.msra.mxu0 0.0
      %3244 = vmatprep.subr.mxu0 0.0
      %3245 = vmatpush1.msra.mxu0 0.0
      %3246 = vmatprep.subr.mxu0 0.0
      %3247 = vmatpush1.msra.mxu0 0.0
      %3248 = vmatprep.subr.mxu0 0.0
      %3249 = vmatpush1.msra.mxu0 0.0
      %3250 = vmatprep.subr.mxu0 0.0
      %3251 = vmatpush1.msra.mxu0 0.0
      %3252 = vmatprep.subr.mxu0 0.0
      %3253 = vmatpush1.msra.mxu0 0.0
      %3254 = vmatprep.subr.mxu0 0.0
      %3255 = vmatpush1.msra.mxu0 0.0
      %3256 = vmatprep.subr.mxu0 0.0
      %3257 = vmatpush1.msra.mxu0 0.0
      %3258 = vmatprep.subr.mxu0 0.0
      %3259 = vmatpush1.msra.mxu0 0.0
      %3260 = vmatprep.subr.mxu0 0.0
      %3261 = vmatpush1.msra.mxu0 0.0
      %3262 = vmatprep.subr.mxu0 0.0
      %3263 = vmatpush1.msra.mxu0 0.0
      %3264 = vmatprep.subr.mxu0 0.0
      %3265 = vmatpush1.msra.mxu0 0.0
      %3266 = vmatprep.subr.mxu0 0.0
      %3267 = vmatpush1.msra.mxu0 0.0
      %3268 = vmatprep.subr.mxu0 0.0
      %3269 = vmatpush1.msra.mxu0 0.0
      %3270 = vmatprep.subr.mxu0 0.0
      %3271 = vmatpush1.msra.mxu0 0.0
      %3272 = vmatprep.subr.mxu0 0.0
      %3273 = vmatpush1.msra.mxu0 0.0
      %3274 = vmatprep.subr.mxu0 0.0
      %3275 = vmatpush1.msra.mxu0 0.0
      %3276 = vmatprep.subr.mxu0 0.0
      %3277 = vmatpush1.msra.mxu0 0.0
      %3278 = vmatprep.subr.mxu0 0.0
      %3279 = vmatpush1.msra.mxu0 0.0
      %3280 = vmatprep.subr.mxu0 0.0
      %3281 = vmatpush1.msra.mxu0 0.0
      %3282 = vmatprep.subr.mxu0 0.0
      %3283 = vmatpush1.msra.mxu0 0.0
      %3284 = vmatprep.subr.mxu0 0.0
      %3285 = vmatpush1.msra.mxu0 0.0
      %3286 = vmatprep.subr.mxu0 0.0
      %3287 = vmatpush1.msra.mxu0 0.0
      %3288 = vmatprep.subr.mxu0 0.0
      %3289 = vmatpush1.msra.mxu0 0.0
      %3290 = vmatprep.subr.mxu0 0.0
      %3291 = vmatpush1.msra.mxu0 0.0
      %3292 = vmatprep.subr.mxu0 0.0
      %3293 = vmatpush1.msra.mxu0 0.0
      %3294 = vmatprep.mubr.f32.mxu0 0.0
      %3295 = vmatmul.mubr.f32.gmra.mrb[0].mxu0 %v3207
      %v3296 = vpop.f32.mrb[0].mxu0
      %v3297 = vadd.f32 0.0, %v3296
      %v3298 = vpop.f32.mrb[0].mxu0
      %3299 = vmatprep.mubr.f32.mxu0 0.0
      %3300 = vmatmul.mubr.f32.gmra.mrb[0].mxu0 %v3210
      %v3301 = vpop.f32.mrb[0].mxu0
      %v3302 = vadd.f32 0.0, %v3301
      %v3303 = vpop.f32.mrb[0].mxu0
      %3304 = vmatprep.mubr.f32.mxu0 0.0
      %3305 = vmatmul.mubr.f32.gmra.mrb[0].mxu0 %v3213
      %v3306 = vpop.f32.mrb[0].mxu0
      %v3307 = vadd.f32 0.0, %v3306
      %v3308 = vpop.f32.mrb[0].mxu0
      %3309 = vmatprep.mubr.f32.mxu0 0.0
      %3310 = vmatmul.mubr.f32.gmra.mrb[0].mxu0 %v3216
      %v3311 = vpop.f32.mrb[0].mxu0
      %v3312 = vadd.f32 0.0, %v3311
      %v3313 = vpop.f32.mrb[0].mxu0
      %3314 = vmatprep.mubr.f32.mxu0 0.0
      %3315 = vmatmul.mubr.f32.gmra.mrb[0].mxu0 %v3219
      %v3316 = vpop.f32.mrb[0].mxu0
      %v3317 = vadd.f32 0.0, %v3316
      %v3318 = vpop.f32.mrb[0].mxu0
      %3319 = vmatprep.mubr.f32.mxu0 0.0
      %3320 = vmatmul.mubr.f32.gmra.mrb[0].mxu0 %v3222
      %v3321 = vpop.f32.mrb[0].mxu0
      %v3322 = vadd.f32 0.0, %v3321
      %v3323 = vpop.f32.mrb[0].mxu0
      %3324 = vmatprep.mubr.f32.mxu0 0.0
      %3325 = vmatmul.mubr.f32.gmra.mrb[0].mxu0 %v3225
      %v3326 = vpop.f32.mrb[0].mxu0
      %v3327 = vadd.f32 0.0, %v3326
      %v3328 = vpop.f32.mrb[0].mxu0
      %3329 = vdwg.mxu0
      %v3330 = vadd.f32 %v3079, %v3297
      %v3331 = vadd.f32 %v3080, %v3302
      %v3332 = vadd.f32 %v3081, %v3307
      %v3333 = vadd.f32 %v3082, %v3312
      %v3334 = vadd.f32 %v3083, %v3317
      %v3335 = vadd.f32 %v3084, %v3322
      %v3336 = vadd.f32 %v3085, %v3327
      %s3337 = scalar_lea.vmem %s3, 616
      %v3338 = vld [vmem:[%s3337] sm:$0xff]
      %v3339 = vld [vmem:[%s3337 + $0x8] sm:$0xff]
      %v3340 = vld [vmem:[%s3337 + $0x10] sm:$0xff]
      %v3341 = vld [vmem:[%s3337 + $0x18] sm:$0xff]
      %v3342 = vld [vmem:[%s3337 + $0x20] sm:$0xff]
      %v3343 = vld [vmem:[%s3337 + $0x28] sm:$0xff]
      %v3344 = vld [vmem:[%s3337 + $0x30] sm:$0x11]
      %v3352 = vunpack.c.l.b16 %v3338
      %v3353 = vunpack.c.h.b16 %v3338
      %v3354 = vunpack.c.l.b16 %v3339
      %v3355 = vunpack.c.h.b16 %v3339
      %v3356 = vunpack.c.l.b16 %v3340
      %v3357 = vunpack.c.h.b16 %v3340
      %v3358 = vunpack.c.l.b16 %v3341
      %v3359 = vunpack.c.h.b16 %v3341
      %v3360 = vunpack.c.l.b16 %v3342
      %v3361 = vunpack.c.h.b16 %v3342
      %v3362 = vunpack.c.l.b16 %v3343
      %v3363 = vunpack.c.h.b16 %v3343
      %v3364 = vunpack.c.l.b16 %v3344
      %v3365 = vunpack.c.h.b16 %v3344
      %v3366 = vpack.c.b16 %v3354, %v3352
      %v3367 = vpack.c.b16 %v3355, %v3353
      %v3368 = vpack.c.b16 %v3358, %v3356
      %v3369 = vpack.c.b16 %v3359, %v3357
      %v3370 = vpack.c.b16 %v3362, %v3360
      %v3371 = vpack.c.b16 %v3363, %v3361
      %v3372 = vpack.c.b16 %v3364, %v3364
      %v3373 = vpack.c.b16 %v3365, %v3365
      %v3379 = vsel %vm626, %v3367, 0
      %v3382 = vsel %vm626, %v3369, 0
      %v3385 = vsel %vm626, %v3371, 0
      %v3388 = vsel %vm626, %v3373, 0
      %3390 = vmatprep.subr.bf16.mxu0 0
      %3391 = vmatpush1.bf16.msra.mxu0 %v573
      %3392 = vmatprep.subr.bf16.mxu0 0
      %3393 = vmatpush1.bf16.msra.mxu0 %v574
      %3394 = vmatprep.subr.bf16.mxu0 0
      %3395 = vmatpush1.bf16.msra.mxu0 %v575
      %3396 = vmatprep.subr.bf16.mxu0 0
      %3397 = vmatpush1.bf16.msra.mxu0 %v576
      %3398 = vmatprep.subr.bf16.mxu0 0
      %3399 = vmatpush1.bf16.msra.mxu0 %v577
      %3400 = vmatprep.subr.bf16.mxu0 0
      %3401 = vmatpush1.bf16.msra.mxu0 %v578
      %3402 = vmatprep.subr.bf16.mxu0 0
      %3403 = vmatpush1.bf16.msra.mxu0 %v579
      %3404 = vmatprep.subr.bf16.mxu0 0
      %3405 = vmatpush1.bf16.msra.mxu0 %v580
      %3406 = vmatprep.subr.bf16.mxu0 0
      %3407 = vmatpush1.bf16.msra.mxu0 %v581
      %3408 = vmatprep.subr.bf16.mxu0 0
      %3409 = vmatpush1.bf16.msra.mxu0 %v582
      %3410 = vmatprep.subr.bf16.mxu0 0
      %3411 = vmatpush1.bf16.msra.mxu0 %v583
      %3412 = vmatprep.subr.bf16.mxu0 0
      %3413 = vmatpush1.bf16.msra.mxu0 %v584
      %3414 = vmatprep.subr.bf16.mxu0 0
      %3415 = vmatpush1.bf16.msra.mxu0 %v641
      %3416 = vmatprep.subr.bf16.mxu0 0
      %3417 = vmatpush1.bf16.msra.mxu0 0
      %3418 = vmatprep.subr.bf16.mxu0 0
      %3419 = vmatpush1.bf16.msra.mxu0 0
      %3420 = vmatprep.subr.bf16.mxu0 0
      %3421 = vmatpush1.bf16.msra.mxu0 0
      %3422 = vmatprep.mubr.bf16.mxu0 %v3379
      %3423 = vmatmul.mubr.bf16.gmra.mrb[0].mxu0 %v3366
      %v3424 = vpop.f32.mrb[0].mxu0
      %v3425 = vadd.f32 0.0, %v3424
      %v3426 = vpop.f32.mrb[0].mxu0
      %v3427 = vpop.f32.mrb[0].mxu0
      %v3428 = vadd.f32 0.0, %v3427
      %v3429 = vpop.f32.mrb[0].mxu0
      %3430 = vmatprep.mubr.bf16.mxu0 %v3382
      %3431 = vmatmul.mubr.bf16.gmra.mrb[0].mxu0 %v3368
      %v3432 = vpop.f32.mrb[0].mxu0
      %v3433 = vadd.f32 0.0, %v3432
      %v3434 = vpop.f32.mrb[0].mxu0
      %v3435 = vpop.f32.mrb[0].mxu0
      %v3436 = vadd.f32 0.0, %v3435
      %v3437 = vpop.f32.mrb[0].mxu0
      %3438 = vmatprep.mubr.bf16.mxu0 %v3385
      %3439 = vmatmul.mubr.bf16.gmra.mrb[0].mxu0 %v3370
      %v3440 = vpop.f32.mrb[0].mxu0
      %v3441 = vadd.f32 0.0, %v3440
      %v3442 = vpop.f32.mrb[0].mxu0
      %v3443 = vpop.f32.mrb[0].mxu0
      %v3444 = vadd.f32 0.0, %v3443
      %v3445 = vpop.f32.mrb[0].mxu0
      %3446 = vmatprep.mubr.bf16.mxu0 %v3388
      %3447 = vmatmul.mubr.bf16.gmra.mrb[0].mxu0 %v3372
      %v3448 = vpop.f32.mrb[0].mxu0
      %v3449 = vadd.f32 0.0, %v3448
      %v3450 = vpop.f32.mrb[0].mxu0
      %v3451 = vpop.f32.mrb[0].mxu0
      %v3452 = vpop.f32.mrb[0].mxu0
      %3453 = vdwg.mxu0
      %s3454 = scalar_lea.vmem %s4, 176
      %v3455 = vld [vmem:[%s3454] sm:$0xff]
      %v3456 = vld [vmem:[%s3454 + $0x8] sm:$0x3]
      %v3458 = vsel %vm829, %v3425, 0
      %v3461 = vsel %vm829, %v3428, 0
      %v3464 = vsel %vm829, %v3433, 0
      %v3467 = vsel %vm829, %v3436, 0
      %v3470 = vsel %vm829, %v3441, 0
      %v3473 = vsel %vm829, %v3444, 0
      %v3476 = vsel %vm829, %v3449, 0
      %v3479 = vsel %vm639, %v3456, 0
      %3481 = vmatprep.subr.mxu0 0.0
      %3482 = vmatpush1.msra.mxu0 %v3455
      %3483 = vmatprep.subr.mxu0 0.0
      %3484 = vmatpush1.msra.mxu0 %v3479
      %3485 = vmatprep.subr.mxu0 0.0
      %3486 = vmatpush1.msra.mxu0 0.0
      %3487 = vmatprep.subr.mxu0 0.0
      %3488 = vmatpush1.msra.mxu0 0.0
      %3489 = vmatprep.subr.mxu0 0.0
      %3490 = vmatpush1.msra.mxu0 0.0
      %3491 = vmatprep.subr.mxu0 0.0
      %3492 = vmatpush1.msra.mxu0 0.0
      %3493 = vmatprep.subr.mxu0 0.0
      %3494 = vmatpush1.msra.mxu0 0.0
      %3495 = vmatprep.subr.mxu0 0.0
      %3496 = vmatpush1.msra.mxu0 0.0
      %3497 = vmatprep.subr.mxu0 0.0
      %3498 = vmatpush1.msra.mxu0 0.0
      %3499 = vmatprep.subr.mxu0 0.0
      %3500 = vmatpush1.msra.mxu0 0.0
      %3501 = vmatprep.subr.mxu0 0.0
      %3502 = vmatpush1.msra.mxu0 0.0
      %3503 = vmatprep.subr.mxu0 0.0
      %3504 = vmatpush1.msra.mxu0 0.0
      %3505 = vmatprep.subr.mxu0 0.0
      %3506 = vmatpush1.msra.mxu0 0.0
      %3507 = vmatprep.subr.mxu0 0.0
      %3508 = vmatpush1.msra.mxu0 0.0
      %3509 = vmatprep.subr.mxu0 0.0
      %3510 = vmatpush1.msra.mxu0 0.0
      %3511 = vmatprep.subr.mxu0 0.0
      %3512 = vmatpush1.msra.mxu0 0.0
      %3513 = vmatprep.subr.mxu0 0.0
      %3514 = vmatpush1.msra.mxu0 0.0
      %3515 = vmatprep.subr.mxu0 0.0
      %3516 = vmatpush1.msra.mxu0 0.0
      %3517 = vmatprep.subr.mxu0 0.0
      %3518 = vmatpush1.msra.mxu0 0.0
      %3519 = vmatprep.subr.mxu0 0.0
      %3520 = vmatpush1.msra.mxu0 0.0
      %3521 = vmatprep.subr.mxu0 0.0
      %3522 = vmatpush1.msra.mxu0 0.0
      %3523 = vmatprep.subr.mxu0 0.0
      %3524 = vmatpush1.msra.mxu0 0.0
      %3525 = vmatprep.subr.mxu0 0.0
      %3526 = vmatpush1.msra.mxu0 0.0
      %3527 = vmatprep.subr.mxu0 0.0
      %3528 = vmatpush1.msra.mxu0 0.0
      %3529 = vmatprep.subr.mxu0 0.0
      %3530 = vmatpush1.msra.mxu0 0.0
      %3531 = vmatprep.subr.mxu0 0.0
      %3532 = vmatpush1.msra.mxu0 0.0
      %3533 = vmatprep.subr.mxu0 0.0
      %3534 = vmatpush1.msra.mxu0 0.0
      %3535 = vmatprep.subr.mxu0 0.0
      %3536 = vmatpush1.msra.mxu0 0.0
      %3537 = vmatprep.subr.mxu0 0.0
      %3538 = vmatpush1.msra.mxu0 0.0
      %3539 = vmatprep.subr.mxu0 0.0
      %3540 = vmatpush1.msra.mxu0 0.0
      %3541 = vmatprep.subr.mxu0 0.0
      %3542 = vmatpush1.msra.mxu0 0.0
      %3543 = vmatprep.subr.mxu0 0.0
      %3544 = vmatpush1.msra.mxu0 0.0
      %3545 = vmatprep.mubr.f32.mxu0 0.0
      %3546 = vmatmul.mubr.f32.gmra.mrb[0].mxu0 %v3458
      %v3547 = vpop.f32.mrb[0].mxu0
      %v3548 = vadd.f32 0.0, %v3547
      %v3549 = vpop.f32.mrb[0].mxu0
      %3550 = vmatprep.mubr.f32.mxu0 0.0
      %3551 = vmatmul.mubr.f32.gmra.mrb[0].mxu0 %v3461
      %v3552 = vpop.f32.mrb[0].mxu0
      %v3553 = vadd.f32 0.0, %v3552
      %v3554 = vpop.f32.mrb[0].mxu0
      %3555 = vmatprep.mubr.f32.mxu0 0.0
      %3556 = vmatmul.mubr.f32.gmra.mrb[0].mxu0 %v3464
      %v3557 = vpop.f32.mrb[0].mxu0
      %v3558 = vadd.f32 0.0, %v3557
      %v3559 = vpop.f32.mrb[0].mxu0
      %3560 = vmatprep.mubr.f32.mxu0 0.0
      %3561 = vmatmul.mubr.f32.gmra.mrb[0].mxu0 %v3467
      %v3562 = vpop.f32.mrb[0].mxu0
      %v3563 = vadd.f32 0.0, %v3562
      %v3564 = vpop.f32.mrb[0].mxu0
      %3565 = vmatprep.mubr.f32.mxu0 0.0
      %3566 = vmatmul.mubr.f32.gmra.mrb[0].mxu0 %v3470
      %v3567 = vpop.f32.mrb[0].mxu0
      %v3568 = vadd.f32 0.0, %v3567
      %v3569 = vpop.f32.mrb[0].mxu0
      %3570 = vmatprep.mubr.f32.mxu0 0.0
      %3571 = vmatmul.mubr.f32.gmra.mrb[0].mxu0 %v3473
      %v3572 = vpop.f32.mrb[0].mxu0
      %v3573 = vadd.f32 0.0, %v3572
      %v3574 = vpop.f32.mrb[0].mxu0
      %3575 = vmatprep.mubr.f32.mxu0 0.0
      %3576 = vmatmul.mubr.f32.gmra.mrb[0].mxu0 %v3476
      %v3577 = vpop.f32.mrb[0].mxu0
      %v3578 = vadd.f32 0.0, %v3577
      %v3579 = vpop.f32.mrb[0].mxu0
      %3580 = vdwg.mxu0
      %v3581 = vadd.f32 %v3330, %v3548
      %v3582 = vadd.f32 %v3331, %v3553
      %v3583 = vadd.f32 %v3332, %v3558
      %v3584 = vadd.f32 %v3333, %v3563
      %v3585 = vadd.f32 %v3334, %v3568
      %v3586 = vadd.f32 %v3335, %v3573
      %v3587 = vadd.f32 %v3336, %v3578
      %s3588 = scalar_lea.vmem %s3, 672
      %v3589 = vld [vmem:[%s3588] sm:$0xff]
      %v3590 = vld [vmem:[%s3588 + $0x8] sm:$0xff]
      %v3591 = vld [vmem:[%s3588 + $0x10] sm:$0xff]
      %v3592 = vld [vmem:[%s3588 + $0x18] sm:$0xff]
      %v3593 = vld [vmem:[%s3588 + $0x20] sm:$0xff]
      %v3594 = vld [vmem:[%s3588 + $0x28] sm:$0xff]
      %v3595 = vld [vmem:[%s3588 + $0x30] sm:$0x11]
      %v3603 = vunpack.c.l.b16 %v3589
      %v3604 = vunpack.c.h.b16 %v3589
      %v3605 = vunpack.c.l.b16 %v3590
      %v3606 = vunpack.c.h.b16 %v3590
      %v3607 = vunpack.c.l.b16 %v3591
      %v3608 = vunpack.c.h.b16 %v3591
      %v3609 = vunpack.c.l.b16 %v3592
      %v3610 = vunpack.c.h.b16 %v3592
      %v3611 = vunpack.c.l.b16 %v3593
      %v3612 = vunpack.c.h.b16 %v3593
      %v3613 = vunpack.c.l.b16 %v3594
      %v3614 = vunpack.c.h.b16 %v3594
      %v3615 = vunpack.c.l.b16 %v3595
      %v3616 = vunpack.c.h.b16 %v3595
      %v3617 = vpack.c.b16 %v3605, %v3603
      %v3618 = vpack.c.b16 %v3606, %v3604
      %v3619 = vpack.c.b16 %v3609, %v3607
      %v3620 = vpack.c.b16 %v3610, %v3608
      %v3621 = vpack.c.b16 %v3613, %v3611
      %v3622 = vpack.c.b16 %v3614, %v3612
      %v3623 = vpack.c.b16 %v3615, %v3615
      %v3624 = vpack.c.b16 %v3616, %v3616
      %v3630 = vsel %vm626, %v3618, 0
      %v3633 = vsel %vm626, %v3620, 0
      %v3636 = vsel %vm626, %v3622, 0
      %v3639 = vsel %vm626, %v3624, 0
      %3641 = vmatprep.subr.bf16.mxu0 0
      %3642 = vmatpush1.bf16.msra.mxu0 %v573
      %3643 = vmatprep.subr.bf16.mxu0 0
      %3644 = vmatpush1.bf16.msra.mxu0 %v574
      %3645 = vmatprep.subr.bf16.mxu0 0
      %3646 = vmatpush1.bf16.msra.mxu0 %v575
      %3647 = vmatprep.subr.bf16.mxu0 0
      %3648 = vmatpush1.bf16.msra.mxu0 %v576
      %3649 = vmatprep.subr.bf16.mxu0 0
      %3650 = vmatpush1.bf16.msra.mxu0 %v577
      %3651 = vmatprep.subr.bf16.mxu0 0
      %3652 = vmatpush1.bf16.msra.mxu0 %v578
      %3653 = vmatprep.subr.bf16.mxu0 0
      %3654 = vmatpush1.bf16.msra.mxu0 %v579
      %3655 = vmatprep.subr.bf16.mxu0 0
      %3656 = vmatpush1.bf16.msra.mxu0 %v580
      %3657 = vmatprep.subr.bf16.mxu0 0
      %3658 = vmatpush1.bf16.msra.mxu0 %v581
      %3659 = vmatprep.subr.bf16.mxu0 0
      %3660 = vmatpush1.bf16.msra.mxu0 %v582
      %3661 = vmatprep.subr.bf16.mxu0 0
      %3662 = vmatpush1.bf16.msra.mxu0 %v583
      %3663 = vmatprep.subr.bf16.mxu0 0
      %3664 = vmatpush1.bf16.msra.mxu0 %v584
      %3665 = vmatprep.subr.bf16.mxu0 0
      %3666 = vmatpush1.bf16.msra.mxu0 %v641
      %3667 = vmatprep.subr.bf16.mxu0 0
      %3668 = vmatpush1.bf16.msra.mxu0 0
      %3669 = vmatprep.subr.bf16.mxu0 0
      %3670 = vmatpush1.bf16.msra.mxu0 0
      %3671 = vmatprep.subr.bf16.mxu0 0
      %3672 = vmatpush1.bf16.msra.mxu0 0
      %3673 = vmatprep.mubr.bf16.mxu0 %v3630
      %3674 = vmatmul.mubr.bf16.gmra.mrb[0].mxu0 %v3617
      %v3675 = vpop.f32.mrb[0].mxu0
      %v3676 = vadd.f32 0.0, %v3675
      %v3677 = vpop.f32.mrb[0].mxu0
      %v3678 = vpop.f32.mrb[0].mxu0
      %v3679 = vadd.f32 0.0, %v3678
      %v3680 = vpop.f32.mrb[0].mxu0
      %3681 = vmatprep.mubr.bf16.mxu0 %v3633
      %3682 = vmatmul.mubr.bf16.gmra.mrb[0].mxu0 %v3619
      %v3683 = vpop.f32.mrb[0].mxu0
      %v3684 = vadd.f32 0.0, %v3683
      %v3685 = vpop.f32.mrb[0].mxu0
      %v3686 = vpop.f32.mrb[0].mxu0
      %v3687 = vadd.f32 0.0, %v3686
      %v3688 = vpop.f32.mrb[0].mxu0
      %3689 = vmatprep.mubr.bf16.mxu0 %v3636
      %3690 = vmatmul.mubr.bf16.gmra.mrb[0].mxu0 %v3621
      %v3691 = vpop.f32.mrb[0].mxu0
      %v3692 = vadd.f32 0.0, %v3691
      %v3693 = vpop.f32.mrb[0].mxu0
      %v3694 = vpop.f32.mrb[0].mxu0
      %v3695 = vadd.f32 0.0, %v3694
      %v3696 = vpop.f32.mrb[0].mxu0
      %3697 = vmatprep.mubr.bf16.mxu0 %v3639
      %3698 = vmatmul.mubr.bf16.gmra.mrb[0].mxu0 %v3623
      %v3699 = vpop.f32.mrb[0].mxu0
      %v3700 = vadd.f32 0.0, %v3699
      %v3701 = vpop.f32.mrb[0].mxu0
      %v3702 = vpop.f32.mrb[0].mxu0
      %v3703 = vpop.f32.mrb[0].mxu0
      %3704 = vdwg.mxu0
      %s3705 = scalar_lea.vmem %s4, 192
      %v3706 = vld [vmem:[%s3705] sm:$0xff]
      %v3707 = vld [vmem:[%s3705 + $0x8] sm:$0x3]
      %v3709 = vsel %vm829, %v3676, 0
      %v3712 = vsel %vm829, %v3679, 0
      %v3715 = vsel %vm829, %v3684, 0
      %v3718 = vsel %vm829, %v3687, 0
      %v3721 = vsel %vm829, %v3692, 0
      %v3724 = vsel %vm829, %v3695, 0
      %v3727 = vsel %vm829, %v3700, 0
      %v3730 = vsel %vm639, %v3707, 0
      %3732 = vmatprep.subr.mxu0 0.0
      %3733 = vmatpush1.msra.mxu0 %v3706
      %3734 = vmatprep.subr.mxu0 0.0
      %3735 = vmatpush1.msra.mxu0 %v3730
      %3736 = vmatprep.subr.mxu0 0.0
      %3737 = vmatpush1.msra.mxu0 0.0
      %3738 = vmatprep.subr.mxu0 0.0
      %3739 = vmatpush1.msra.mxu0 0.0
      %3740 = vmatprep.subr.mxu0 0.0
      %3741 = vmatpush1.msra.mxu0 0.0
      %3742 = vmatprep.subr.mxu0 0.0
      %3743 = vmatpush1.msra.mxu0 0.0
      %3744 = vmatprep.subr.mxu0 0.0
      %3745 = vmatpush1.msra.mxu0 0.0
      %3746 = vmatprep.subr.mxu0 0.0
      %3747 = vmatpush1.msra.mxu0 0.0
      %3748 = vmatprep.subr.mxu0 0.0
      %3749 = vmatpush1.msra.mxu0 0.0
      %3750 = vmatprep.subr.mxu0 0.0
      %3751 = vmatpush1.msra.mxu0 0.0
      %3752 = vmatprep.subr.mxu0 0.0
      %3753 = vmatpush1.msra.mxu0 0.0
      %3754 = vmatprep.subr.mxu0 0.0
      %3755 = vmatpush1.msra.mxu0 0.0
      %3756 = vmatprep.subr.mxu0 0.0
      %3757 = vmatpush1.msra.mxu0 0.0
      %3758 = vmatprep.subr.mxu0 0.0
      %3759 = vmatpush1.msra.mxu0 0.0
      %3760 = vmatprep.subr.mxu0 0.0
      %3761 = vmatpush1.msra.mxu0 0.0
      %3762 = vmatprep.subr.mxu0 0.0
      %3763 = vmatpush1.msra.mxu0 0.0
      %3764 = vmatprep.subr.mxu0 0.0
      %3765 = vmatpush1.msra.mxu0 0.0
      %3766 = vmatprep.subr.mxu0 0.0
      %3767 = vmatpush1.msra.mxu0 0.0
      %3768 = vmatprep.subr.mxu0 0.0
      %3769 = vmatpush1.msra.mxu0 0.0
      %3770 = vmatprep.subr.mxu0 0.0
      %3771 = vmatpush1.msra.mxu0 0.0
      %3772 = vmatprep.subr.mxu0 0.0
      %3773 = vmatpush1.msra.mxu0 0.0
      %3774 = vmatprep.subr.mxu0 0.0
      %3775 = vmatpush1.msra.mxu0 0.0
      %3776 = vmatprep.subr.mxu0 0.0
      %3777 = vmatpush1.msra.mxu0 0.0
      %3778 = vmatprep.subr.mxu0 0.0
      %3779 = vmatpush1.msra.mxu0 0.0
      %3780 = vmatprep.subr.mxu0 0.0
      %3781 = vmatpush1.msra.mxu0 0.0
      %3782 = vmatprep.subr.mxu0 0.0
      %3783 = vmatpush1.msra.mxu0 0.0
      %3784 = vmatprep.subr.mxu0 0.0
      %3785 = vmatpush1.msra.mxu0 0.0
      %3786 = vmatprep.subr.mxu0 0.0
      %3787 = vmatpush1.msra.mxu0 0.0
      %3788 = vmatprep.subr.mxu0 0.0
      %3789 = vmatpush1.msra.mxu0 0.0
      %3790 = vmatprep.subr.mxu0 0.0
      %3791 = vmatpush1.msra.mxu0 0.0
      %3792 = vmatprep.subr.mxu0 0.0
      %3793 = vmatpush1.msra.mxu0 0.0
      %3794 = vmatprep.subr.mxu0 0.0
      %3795 = vmatpush1.msra.mxu0 0.0
      %3796 = vmatprep.mubr.f32.mxu0 0.0
      %3797 = vmatmul.mubr.f32.gmra.mrb[0].mxu0 %v3709
      %v3798 = vpop.f32.mrb[0].mxu0
      %v3799 = vadd.f32 0.0, %v3798
      %v3800 = vpop.f32.mrb[0].mxu0
      %3801 = vmatprep.mubr.f32.mxu0 0.0
      %3802 = vmatmul.mubr.f32.gmra.mrb[0].mxu0 %v3712
      %v3803 = vpop.f32.mrb[0].mxu0
      %v3804 = vadd.f32 0.0, %v3803
      %v3805 = vpop.f32.mrb[0].mxu0
      %3806 = vmatprep.mubr.f32.mxu0 0.0
      %3807 = vmatmul.mubr.f32.gmra.mrb[0].mxu0 %v3715
      %v3808 = vpop.f32.mrb[0].mxu0
      %v3809 = vadd.f32 0.0, %v3808
      %v3810 = vpop.f32.mrb[0].mxu0
      %3811 = vmatprep.mubr.f32.mxu0 0.0
      %3812 = vmatmul.mubr.f32.gmra.mrb[0].mxu0 %v3718
      %v3813 = vpop.f32.mrb[0].mxu0
      %v3814 = vadd.f32 0.0, %v3813
      %v3815 = vpop.f32.mrb[0].mxu0
      %3816 = vmatprep.mubr.f32.mxu0 0.0
      %3817 = vmatmul.mubr.f32.gmra.mrb[0].mxu0 %v3721
      %v3818 = vpop.f32.mrb[0].mxu0
      %v3819 = vadd.f32 0.0, %v3818
      %v3820 = vpop.f32.mrb[0].mxu0
      %3821 = vmatprep.mubr.f32.mxu0 0.0
      %3822 = vmatmul.mubr.f32.gmra.mrb[0].mxu0 %v3724
      %v3823 = vpop.f32.mrb[0].mxu0
      %v3824 = vadd.f32 0.0, %v3823
      %v3825 = vpop.f32.mrb[0].mxu0
      %3826 = vmatprep.mubr.f32.mxu0 0.0
      %3827 = vmatmul.mubr.f32.gmra.mrb[0].mxu0 %v3727
      %v3828 = vpop.f32.mrb[0].mxu0
      %v3829 = vadd.f32 0.0, %v3828
      %v3830 = vpop.f32.mrb[0].mxu0
      %3831 = vdwg.mxu0
      %v3832 = vadd.f32 %v3581, %v3799
      %v3833 = vadd.f32 %v3582, %v3804
      %v3834 = vadd.f32 %v3583, %v3809
      %v3835 = vadd.f32 %v3584, %v3814
      %v3836 = vadd.f32 %v3585, %v3819
      %v3837 = vadd.f32 %v3586, %v3824
      %v3838 = vadd.f32 %v3587, %v3829
      %s3839 = scalar_lea.vmem %s3, 728
      %v3840 = vld [vmem:[%s3839] sm:$0xff]
      %v3841 = vld [vmem:[%s3839 + $0x8] sm:$0xff]
      %v3842 = vld [vmem:[%s3839 + $0x10] sm:$0xff]
      %v3843 = vld [vmem:[%s3839 + $0x18] sm:$0xff]
      %v3844 = vld [vmem:[%s3839 + $0x20] sm:$0xff]
      %v3845 = vld [vmem:[%s3839 + $0x28] sm:$0xff]
      %v3846 = vld [vmem:[%s3839 + $0x30] sm:$0x11]
      %v3854 = vunpack.c.l.b16 %v3840
      %v3855 = vunpack.c.h.b16 %v3840
      %v3856 = vunpack.c.l.b16 %v3841
      %v3857 = vunpack.c.h.b16 %v3841
      %v3858 = vunpack.c.l.b16 %v3842
      %v3859 = vunpack.c.h.b16 %v3842
      %v3860 = vunpack.c.l.b16 %v3843
      %v3861 = vunpack.c.h.b16 %v3843
      %v3862 = vunpack.c.l.b16 %v3844
      %v3863 = vunpack.c.h.b16 %v3844
      %v3864 = vunpack.c.l.b16 %v3845
      %v3865 = vunpack.c.h.b16 %v3845
      %v3866 = vunpack.c.l.b16 %v3846
      %v3867 = vunpack.c.h.b16 %v3846
      %v3868 = vpack.c.b16 %v3856, %v3854
      %v3869 = vpack.c.b16 %v3857, %v3855
      %v3870 = vpack.c.b16 %v3860, %v3858
      %v3871 = vpack.c.b16 %v3861, %v3859
      %v3872 = vpack.c.b16 %v3864, %v3862
      %v3873 = vpack.c.b16 %v3865, %v3863
      %v3874 = vpack.c.b16 %v3866, %v3866
      %v3875 = vpack.c.b16 %v3867, %v3867
      %v3881 = vsel %vm626, %v3869, 0
      %v3884 = vsel %vm626, %v3871, 0
      %v3887 = vsel %vm626, %v3873, 0
      %v3890 = vsel %vm626, %v3875, 0
      %3892 = vmatprep.subr.bf16.mxu0 0
      %3893 = vmatpush1.bf16.msra.mxu0 %v573
      %3894 = vmatprep.subr.bf16.mxu0 0
      %3895 = vmatpush1.bf16.msra.mxu0 %v574
      %3896 = vmatprep.subr.bf16.mxu0 0
      %3897 = vmatpush1.bf16.msra.mxu0 %v575
      %3898 = vmatprep.subr.bf16.mxu0 0
      %3899 = vmatpush1.bf16.msra.mxu0 %v576
      %3900 = vmatprep.subr.bf16.mxu0 0
      %3901 = vmatpush1.bf16.msra.mxu0 %v577
      %3902 = vmatprep.subr.bf16.mxu0 0
      %3903 = vmatpush1.bf16.msra.mxu0 %v578
      %3904 = vmatprep.subr.bf16.mxu0 0
      %3905 = vmatpush1.bf16.msra.mxu0 %v579
      %3906 = vmatprep.subr.bf16.mxu0 0
      %3907 = vmatpush1.bf16.msra.mxu0 %v580
      %3908 = vmatprep.subr.bf16.mxu0 0
      %3909 = vmatpush1.bf16.msra.mxu0 %v581
      %3910 = vmatprep.subr.bf16.mxu0 0
      %3911 = vmatpush1.bf16.msra.mxu0 %v582
      %3912 = vmatprep.subr.bf16.mxu0 0
      %3913 = vmatpush1.bf16.msra.mxu0 %v583
      %3914 = vmatprep.subr.bf16.mxu0 0
      %3915 = vmatpush1.bf16.msra.mxu0 %v584
      %3916 = vmatprep.subr.bf16.mxu0 0
      %3917 = vmatpush1.bf16.msra.mxu0 %v641
      %3918 = vmatprep.subr.bf16.mxu0 0
      %3919 = vmatpush1.bf16.msra.mxu0 0
      %3920 = vmatprep.subr.bf16.mxu0 0
      %3921 = vmatpush1.bf16.msra.mxu0 0
      %3922 = vmatprep.subr.bf16.mxu0 0
      %3923 = vmatpush1.bf16.msra.mxu0 0
      %3924 = vmatprep.mubr.bf16.mxu0 %v3881
      %3925 = vmatmul.mubr.bf16.gmra.mrb[0].mxu0 %v3868
      %v3926 = vpop.f32.mrb[0].mxu0
      %v3927 = vadd.f32 0.0, %v3926
      %v3928 = vpop.f32.mrb[0].mxu0
      %v3929 = vpop.f32.mrb[0].mxu0
      %v3930 = vadd.f32 0.0, %v3929
      %v3931 = vpop.f32.mrb[0].mxu0
      %3932 = vmatprep.mubr.bf16.mxu0 %v3884
      %3933 = vmatmul.mubr.bf16.gmra.mrb[0].mxu0 %v3870
      %v3934 = vpop.f32.mrb[0].mxu0
      %v3935 = vadd.f32 0.0, %v3934
      %v3936 = vpop.f32.mrb[0].mxu0
      %v3937 = vpop.f32.mrb[0].mxu0
      %v3938 = vadd.f32 0.0, %v3937
      %v3939 = vpop.f32.mrb[0].mxu0
      %3940 = vmatprep.mubr.bf16.mxu0 %v3887
      %3941 = vmatmul.mubr.bf16.gmra.mrb[0].mxu0 %v3872
      %v3942 = vpop.f32.mrb[0].mxu0
      %v3943 = vadd.f32 0.0, %v3942
      %v3944 = vpop.f32.mrb[0].mxu0
      %v3945 = vpop.f32.mrb[0].mxu0
      %v3946 = vadd.f32 0.0, %v3945
      %v3947 = vpop.f32.mrb[0].mxu0
      %3948 = vmatprep.mubr.bf16.mxu0 %v3890
      %3949 = vmatmul.mubr.bf16.gmra.mrb[0].mxu0 %v3874
      %v3950 = vpop.f32.mrb[0].mxu0
      %v3951 = vadd.f32 0.0, %v3950
      %v3952 = vpop.f32.mrb[0].mxu0
      %v3953 = vpop.f32.mrb[0].mxu0
      %v3954 = vpop.f32.mrb[0].mxu0
      %3955 = vdwg.mxu0
      %s3956 = scalar_lea.vmem %s4, 208
      %v3957 = vld [vmem:[%s3956] sm:$0xff]
      %v3958 = vld [vmem:[%s3956 + $0x8] sm:$0x3]
      %v3960 = vsel %vm829, %v3927, 0
      %v3963 = vsel %vm829, %v3930, 0
      %v3966 = vsel %vm829, %v3935, 0
      %v3969 = vsel %vm829, %v3938, 0
      %v3972 = vsel %vm829, %v3943, 0
      %v3975 = vsel %vm829, %v3946, 0
      %v3978 = vsel %vm829, %v3951, 0
      %v3981 = vsel %vm639, %v3958, 0
      %3983 = vmatprep.subr.mxu0 0.0
      %3984 = vmatpush1.msra.mxu0 %v3957
      %3985 = vmatprep.subr.mxu0 0.0
      %3986 = vmatpush1.msra.mxu0 %v3981
      %3987 = vmatprep.subr.mxu0 0.0
      %3988 = vmatpush1.msra.mxu0 0.0
      %3989 = vmatprep.subr.mxu0 0.0
      %3990 = vmatpush1.msra.mxu0 0.0
      %3991 = vmatprep.subr.mxu0 0.0
      %3992 = vmatpush1.msra.mxu0 0.0
      %3993 = vmatprep.subr.mxu0 0.0
      %3994 = vmatpush1.msra.mxu0 0.0
      %3995 = vmatprep.subr.mxu0 0.0
      %3996 = vmatpush1.msra.mxu0 0.0
      %3997 = vmatprep.subr.mxu0 0.0
      %3998 = vmatpush1.msra.mxu0 0.0
      %3999 = vmatprep.subr.mxu0 0.0
      %4000 = vmatpush1.msra.mxu0 0.0
      %4001 = vmatprep.subr.mxu0 0.0
      %4002 = vmatpush1.msra.mxu0 0.0
      %4003 = vmatprep.subr.mxu0 0.0
      %4004 = vmatpush1.msra.mxu0 0.0
      %4005 = vmatprep.subr.mxu0 0.0
      %4006 = vmatpush1.msra.mxu0 0.0
      %4007 = vmatprep.subr.mxu0 0.0
      %4008 = vmatpush1.msra.mxu0 0.0
      %4009 = vmatprep.subr.mxu0 0.0
      %4010 = vmatpush1.msra.mxu0 0.0
      %4011 = vmatprep.subr.mxu0 0.0
      %4012 = vmatpush1.msra.mxu0 0.0
      %4013 = vmatprep.subr.mxu0 0.0
      %4014 = vmatpush1.msra.mxu0 0.0
      %4015 = vmatprep.subr.mxu0 0.0
      %4016 = vmatpush1.msra.mxu0 0.0
      %4017 = vmatprep.subr.mxu0 0.0
      %4018 = vmatpush1.msra.mxu0 0.0
      %4019 = vmatprep.subr.mxu0 0.0
      %4020 = vmatpush1.msra.mxu0 0.0
      %4021 = vmatprep.subr.mxu0 0.0
      %4022 = vmatpush1.msra.mxu0 0.0
      %4023 = vmatprep.subr.mxu0 0.0
      %4024 = vmatpush1.msra.mxu0 0.0
      %4025 = vmatprep.subr.mxu0 0.0
      %4026 = vmatpush1.msra.mxu0 0.0
      %4027 = vmatprep.subr.mxu0 0.0
      %4028 = vmatpush1.msra.mxu0 0.0
      %4029 = vmatprep.subr.mxu0 0.0
      %4030 = vmatpush1.msra.mxu0 0.0
      %4031 = vmatprep.subr.mxu0 0.0
      %4032 = vmatpush1.msra.mxu0 0.0
      %4033 = vmatprep.subr.mxu0 0.0
      %4034 = vmatpush1.msra.mxu0 0.0
      %4035 = vmatprep.subr.mxu0 0.0
      %4036 = vmatpush1.msra.mxu0 0.0
      %4037 = vmatprep.subr.mxu0 0.0
      %4038 = vmatpush1.msra.mxu0 0.0
      %4039 = vmatprep.subr.mxu0 0.0
      %4040 = vmatpush1.msra.mxu0 0.0
      %4041 = vmatprep.subr.mxu0 0.0
      %4042 = vmatpush1.msra.mxu0 0.0
      %4043 = vmatprep.subr.mxu0 0.0
      %4044 = vmatpush1.msra.mxu0 0.0
      %4045 = vmatprep.subr.mxu0 0.0
      %4046 = vmatpush1.msra.mxu0 0.0
      %4047 = vmatprep.mubr.f32.mxu0 0.0
      %4048 = vmatmul.mubr.f32.gmra.mrb[0].mxu0 %v3960
      %v4049 = vpop.f32.mrb[0].mxu0
      %v4050 = vadd.f32 0.0, %v4049
      %v4051 = vpop.f32.mrb[0].mxu0
      %4052 = vmatprep.mubr.f32.mxu0 0.0
      %4053 = vmatmul.mubr.f32.gmra.mrb[0].mxu0 %v3963
      %v4054 = vpop.f32.mrb[0].mxu0
      %v4055 = vadd.f32 0.0, %v4054
      %v4056 = vpop.f32.mrb[0].mxu0
      %4057 = vmatprep.mubr.f32.mxu0 0.0
      %4058 = vmatmul.mubr.f32.gmra.mrb[0].mxu0 %v3966
      %v4059 = vpop.f32.mrb[0].mxu0
      %v4060 = vadd.f32 0.0, %v4059
      %v4061 = vpop.f32.mrb[0].mxu0
      %4062 = vmatprep.mubr.f32.mxu0 0.0
      %4063 = vmatmul.mubr.f32.gmra.mrb[0].mxu0 %v3969
      %v4064 = vpop.f32.mrb[0].mxu0
      %v4065 = vadd.f32 0.0, %v4064
      %v4066 = vpop.f32.mrb[0].mxu0
      %4067 = vmatprep.mubr.f32.mxu0 0.0
      %4068 = vmatmul.mubr.f32.gmra.mrb[0].mxu0 %v3972
      %v4069 = vpop.f32.mrb[0].mxu0
      %v4070 = vadd.f32 0.0, %v4069
      %v4071 = vpop.f32.mrb[0].mxu0
      %4072 = vmatprep.mubr.f32.mxu0 0.0
      %4073 = vmatmul.mubr.f32.gmra.mrb[0].mxu0 %v3975
      %v4074 = vpop.f32.mrb[0].mxu0
      %v4075 = vadd.f32 0.0, %v4074
      %v4076 = vpop.f32.mrb[0].mxu0
      %4077 = vmatprep.mubr.f32.mxu0 0.0
      %4078 = vmatmul.mubr.f32.gmra.mrb[0].mxu0 %v3978
      %v4079 = vpop.f32.mrb[0].mxu0
      %v4080 = vadd.f32 0.0, %v4079
      %v4081 = vpop.f32.mrb[0].mxu0
      %4082 = vdwg.mxu0
      %v4083 = vadd.f32 %v3832, %v4050
      %v4084 = vadd.f32 %v3833, %v4055
      %v4085 = vadd.f32 %v3834, %v4060
      %v4086 = vadd.f32 %v3835, %v4065
      %v4087 = vadd.f32 %v3836, %v4070
      %v4088 = vadd.f32 %v3837, %v4075
      %v4089 = vadd.f32 %v3838, %v4080
      %s4090 = scalar_lea.vmem %s3, 784
      %v4091 = vld [vmem:[%s4090] sm:$0xff]
      %v4092 = vld [vmem:[%s4090 + $0x8] sm:$0xff]
      %v4093 = vld [vmem:[%s4090 + $0x10] sm:$0xff]
      %v4094 = vld [vmem:[%s4090 + $0x18] sm:$0xff]
      %v4095 = vld [vmem:[%s4090 + $0x20] sm:$0xff]
      %v4096 = vld [vmem:[%s4090 + $0x28] sm:$0xff]
      %v4097 = vld [vmem:[%s4090 + $0x30] sm:$0x11]
      %v4105 = vunpack.c.l.b16 %v4091
      %v4106 = vunpack.c.h.b16 %v4091
      %v4107 = vunpack.c.l.b16 %v4092
      %v4108 = vunpack.c.h.b16 %v4092
      %v4109 = vunpack.c.l.b16 %v4093
      %v4110 = vunpack.c.h.b16 %v4093
      %v4111 = vunpack.c.l.b16 %v4094
      %v4112 = vunpack.c.h.b16 %v4094
      %v4113 = vunpack.c.l.b16 %v4095
      %v4114 = vunpack.c.h.b16 %v4095
      %v4115 = vunpack.c.l.b16 %v4096
      %v4116 = vunpack.c.h.b16 %v4096
      %v4117 = vunpack.c.l.b16 %v4097
      %v4118 = vunpack.c.h.b16 %v4097
      %v4119 = vpack.c.b16 %v4107, %v4105
      %v4120 = vpack.c.b16 %v4108, %v4106
      %v4121 = vpack.c.b16 %v4111, %v4109
      %v4122 = vpack.c.b16 %v4112, %v4110
      %v4123 = vpack.c.b16 %v4115, %v4113
      %v4124 = vpack.c.b16 %v4116, %v4114
      %v4125 = vpack.c.b16 %v4117, %v4117
      %v4126 = vpack.c.b16 %v4118, %v4118
      %v4132 = vsel %vm626, %v4120, 0
      %v4135 = vsel %vm626, %v4122, 0
      %v4138 = vsel %vm626, %v4124, 0
      %v4141 = vsel %vm626, %v4126, 0
      %4143 = vmatprep.subr.bf16.mxu0 0
      %4144 = vmatpush1.bf16.msra.mxu0 %v573
      %4145 = vmatprep.subr.bf16.mxu0 0
      %4146 = vmatpush1.bf16.msra.mxu0 %v574
      %4147 = vmatprep.subr.bf16.mxu0 0
      %4148 = vmatpush1.bf16.msra.mxu0 %v575
      %4149 = vmatprep.subr.bf16.mxu0 0
      %4150 = vmatpush1.bf16.msra.mxu0 %v576
      %4151 = vmatprep.subr.bf16.mxu0 0
      %4152 = vmatpush1.bf16.msra.mxu0 %v577
      %4153 = vmatprep.subr.bf16.mxu0 0
      %4154 = vmatpush1.bf16.msra.mxu0 %v578
      %4155 = vmatprep.subr.bf16.mxu0 0
      %4156 = vmatpush1.bf16.msra.mxu0 %v579
      %4157 = vmatprep.subr.bf16.mxu0 0
      %4158 = vmatpush1.bf16.msra.mxu0 %v580
      %4159 = vmatprep.subr.bf16.mxu0 0
      %4160 = vmatpush1.bf16.msra.mxu0 %v581
      %4161 = vmatprep.subr.bf16.mxu0 0
      %4162 = vmatpush1.bf16.msra.mxu0 %v582
      %4163 = vmatprep.subr.bf16.mxu0 0
      %4164 = vmatpush1.bf16.msra.mxu0 %v583
      %4165 = vmatprep.subr.bf16.mxu0 0
      %4166 = vmatpush1.bf16.msra.mxu0 %v584
      %4167 = vmatprep.subr.bf16.mxu0 0
      %4168 = vmatpush1.bf16.msra.mxu0 %v641
      %4169 = vmatprep.subr.bf16.mxu0 0
      %4170 = vmatpush1.bf16.msra.mxu0 0
      %4171 = vmatprep.subr.bf16.mxu0 0
      %4172 = vmatpush1.bf16.msra.mxu0 0
      %4173 = vmatprep.subr.bf16.mxu0 0
      %4174 = vmatpush1.bf16.msra.mxu0 0
      %4175 = vmatprep.mubr.bf16.mxu0 %v4132
      %4176 = vmatmul.mubr.bf16.gmra.mrb[0].mxu0 %v4119
      %v4177 = vpop.f32.mrb[0].mxu0
      %v4178 = vadd.f32 0.0, %v4177
      %v4179 = vpop.f32.mrb[0].mxu0
      %v4180 = vpop.f32.mrb[0].mxu0
      %v4181 = vadd.f32 0.0, %v4180
      %v4182 = vpop.f32.mrb[0].mxu0
      %4183 = vmatprep.mubr.bf16.mxu0 %v4135
      %4184 = vmatmul.mubr.bf16.gmra.mrb[0].mxu0 %v4121
      %v4185 = vpop.f32.mrb[0].mxu0
      %v4186 = vadd.f32 0.0, %v4185
      %v4187 = vpop.f32.mrb[0].mxu0
      %v4188 = vpop.f32.mrb[0].mxu0
      %v4189 = vadd.f32 0.0, %v4188
      %v4190 = vpop.f32.mrb[0].mxu0
      %4191 = vmatprep.mubr.bf16.mxu0 %v4138
      %4192 = vmatmul.mubr.bf16.gmra.mrb[0].mxu0 %v4123
      %v4193 = vpop.f32.mrb[0].mxu0
      %v4194 = vadd.f32 0.0, %v4193
      %v4195 = vpop.f32.mrb[0].mxu0
      %v4196 = vpop.f32.mrb[0].mxu0
      %v4197 = vadd.f32 0.0, %v4196
      %v4198 = vpop.f32.mrb[0].mxu0
      %4199 = vmatprep.mubr.bf16.mxu0 %v4141
      %4200 = vmatmul.mubr.bf16.gmra.mrb[0].mxu0 %v4125
      %v4201 = vpop.f32.mrb[0].mxu0
      %v4202 = vadd.f32 0.0, %v4201
      %v4203 = vpop.f32.mrb[0].mxu0
      %v4204 = vpop.f32.mrb[0].mxu0
      %v4205 = vpop.f32.mrb[0].mxu0
      %4206 = vdwg.mxu0
      %s4207 = scalar_lea.vmem %s4, 224
      %v4208 = vld [vmem:[%s4207] sm:$0xff]
      %v4209 = vld [vmem:[%s4207 + $0x8] sm:$0x3]
      %v4211 = vsel %vm829, %v4178, 0
      %v4214 = vsel %vm829, %v4181, 0
      %v4217 = vsel %vm829, %v4186, 0
      %v4220 = vsel %vm829, %v4189, 0
      %v4223 = vsel %vm829, %v4194, 0
      %v4226 = vsel %vm829, %v4197, 0
      %v4229 = vsel %vm829, %v4202, 0
      %v4232 = vsel %vm639, %v4209, 0
      %4234 = vmatprep.subr.mxu0 0.0
      %4235 = vmatpush1.msra.mxu0 %v4208
      %4236 = vmatprep.subr.mxu0 0.0
      %4237 = vmatpush1.msra.mxu0 %v4232
      %4238 = vmatprep.subr.mxu0 0.0
      %4239 = vmatpush1.msra.mxu0 0.0
      %4240 = vmatprep.subr.mxu0 0.0
      %4241 = vmatpush1.msra.mxu0 0.0
      %4242 = vmatprep.subr.mxu0 0.0
      %4243 = vmatpush1.msra.mxu0 0.0
      %4244 = vmatprep.subr.mxu0 0.0
      %4245 = vmatpush1.msra.mxu0 0.0
      %4246 = vmatprep.subr.mxu0 0.0
      %4247 = vmatpush1.msra.mxu0 0.0
      %4248 = vmatprep.subr.mxu0 0.0
      %4249 = vmatpush1.msra.mxu0 0.0
      %4250 = vmatprep.subr.mxu0 0.0
      %4251 = vmatpush1.msra.mxu0 0.0
      %4252 = vmatprep.subr.mxu0 0.0
      %4253 = vmatpush1.msra.mxu0 0.0
      %4254 = vmatprep.subr.mxu0 0.0
      %4255 = vmatpush1.msra.mxu0 0.0
      %4256 = vmatprep.subr.mxu0 0.0
      %4257 = vmatpush1.msra.mxu0 0.0
      %4258 = vmatprep.subr.mxu0 0.0
      %4259 = vmatpush1.msra.mxu0 0.0
      %4260 = vmatprep.subr.mxu0 0.0
      %4261 = vmatpush1.msra.mxu0 0.0
      %4262 = vmatprep.subr.mxu0 0.0
      %4263 = vmatpush1.msra.mxu0 0.0
      %4264 = vmatprep.subr.mxu0 0.0
      %4265 = vmatpush1.msra.mxu0 0.0
      %4266 = vmatprep.subr.mxu0 0.0
      %4267 = vmatpush1.msra.mxu0 0.0
      %4268 = vmatprep.subr.mxu0 0.0
      %4269 = vmatpush1.msra.mxu0 0.0
      %4270 = vmatprep.subr.mxu0 0.0
      %4271 = vmatpush1.msra.mxu0 0.0
      %4272 = vmatprep.subr.mxu0 0.0
      %4273 = vmatpush1.msra.mxu0 0.0
      %4274 = vmatprep.subr.mxu0 0.0
      %4275 = vmatpush1.msra.mxu0 0.0
      %4276 = vmatprep.subr.mxu0 0.0
      %4277 = vmatpush1.msra.mxu0 0.0
      %4278 = vmatprep.subr.mxu0 0.0
      %4279 = vmatpush1.msra.mxu0 0.0
      %4280 = vmatprep.subr.mxu0 0.0
      %4281 = vmatpush1.msra.mxu0 0.0
      %4282 = vmatprep.subr.mxu0 0.0
      %4283 = vmatpush1.msra.mxu0 0.0
      %4284 = vmatprep.subr.mxu0 0.0
      %4285 = vmatpush1.msra.mxu0 0.0
      %4286 = vmatprep.subr.mxu0 0.0
      %4287 = vmatpush1.msra.mxu0 0.0
      %4288 = vmatprep.subr.mxu0 0.0
      %4289 = vmatpush1.msra.mxu0 0.0
      %4290 = vmatprep.subr.mxu0 0.0
      %4291 = vmatpush1.msra.mxu0 0.0
      %4292 = vmatprep.subr.mxu0 0.0
      %4293 = vmatpush1.msra.mxu0 0.0
      %4294 = vmatprep.subr.mxu0 0.0
      %4295 = vmatpush1.msra.mxu0 0.0
      %4296 = vmatprep.subr.mxu0 0.0
      %4297 = vmatpush1.msra.mxu0 0.0
      %4298 = vmatprep.mubr.f32.mxu0 0.0
      %4299 = vmatmul.mubr.f32.gmra.mrb[0].mxu0 %v4211
      %v4300 = vpop.f32.mrb[0].mxu0
      %v4301 = vadd.f32 0.0, %v4300
      %v4302 = vpop.f32.mrb[0].mxu0
      %4303 = vmatprep.mubr.f32.mxu0 0.0
      %4304 = vmatmul.mubr.f32.gmra.mrb[0].mxu0 %v4214
      %v4305 = vpop.f32.mrb[0].mxu0
      %v4306 = vadd.f32 0.0, %v4305
      %v4307 = vpop.f32.mrb[0].mxu0
      %4308 = vmatprep.mubr.f32.mxu0 0.0
      %4309 = vmatmul.mubr.f32.gmra.mrb[0].mxu0 %v4217
      %v4310 = vpop.f32.mrb[0].mxu0
      %v4311 = vadd.f32 0.0, %v4310
      %v4312 = vpop.f32.mrb[0].mxu0
      %4313 = vmatprep.mubr.f32.mxu0 0.0
      %4314 = vmatmul.mubr.f32.gmra.mrb[0].mxu0 %v4220
      %v4315 = vpop.f32.mrb[0].mxu0
      %v4316 = vadd.f32 0.0, %v4315
      %v4317 = vpop.f32.mrb[0].mxu0
      %4318 = vmatprep.mubr.f32.mxu0 0.0
      %4319 = vmatmul.mubr.f32.gmra.mrb[0].mxu0 %v4223
      %v4320 = vpop.f32.mrb[0].mxu0
      %v4321 = vadd.f32 0.0, %v4320
      %v4322 = vpop.f32.mrb[0].mxu0
      %4323 = vmatprep.mubr.f32.mxu0 0.0
      %4324 = vmatmul.mubr.f32.gmra.mrb[0].mxu0 %v4226
      %v4325 = vpop.f32.mrb[0].mxu0
      %v4326 = vadd.f32 0.0, %v4325
      %v4327 = vpop.f32.mrb[0].mxu0
      %4328 = vmatprep.mubr.f32.mxu0 0.0
      %4329 = vmatmul.mubr.f32.gmra.mrb[0].mxu0 %v4229
      %v4330 = vpop.f32.mrb[0].mxu0
      %v4331 = vadd.f32 0.0, %v4330
      %v4332 = vpop.f32.mrb[0].mxu0
      %4333 = vdwg.mxu0
      %v4334 = vadd.f32 %v4083, %v4301
      %v4335 = vadd.f32 %v4084, %v4306
      %v4336 = vadd.f32 %v4085, %v4311
      %v4337 = vadd.f32 %v4086, %v4316
      %v4338 = vadd.f32 %v4087, %v4321
      %v4339 = vadd.f32 %v4088, %v4326
      %v4340 = vadd.f32 %v4089, %v4331
      %s4341 = scalar_lea.vmem %s3, 840
      %v4342 = vld [vmem:[%s4341] sm:$0xff]
      %v4343 = vld [vmem:[%s4341 + $0x8] sm:$0xff]
      %v4344 = vld [vmem:[%s4341 + $0x10] sm:$0xff]
      %v4345 = vld [vmem:[%s4341 + $0x18] sm:$0xff]
      %v4346 = vld [vmem:[%s4341 + $0x20] sm:$0xff]
      %v4347 = vld [vmem:[%s4341 + $0x28] sm:$0xff]
      %v4348 = vld [vmem:[%s4341 + $0x30] sm:$0x11]
      %v4356 = vunpack.c.l.b16 %v4342
      %v4357 = vunpack.c.h.b16 %v4342
      %v4358 = vunpack.c.l.b16 %v4343
      %v4359 = vunpack.c.h.b16 %v4343
      %v4360 = vunpack.c.l.b16 %v4344
      %v4361 = vunpack.c.h.b16 %v4344
      %v4362 = vunpack.c.l.b16 %v4345
      %v4363 = vunpack.c.h.b16 %v4345
      %v4364 = vunpack.c.l.b16 %v4346
      %v4365 = vunpack.c.h.b16 %v4346
      %v4366 = vunpack.c.l.b16 %v4347
      %v4367 = vunpack.c.h.b16 %v4347
      %v4368 = vunpack.c.l.b16 %v4348
      %v4369 = vunpack.c.h.b16 %v4348
      %v4370 = vpack.c.b16 %v4358, %v4356
      %v4371 = vpack.c.b16 %v4359, %v4357
      %v4372 = vpack.c.b16 %v4362, %v4360
      %v4373 = vpack.c.b16 %v4363, %v4361
      %v4374 = vpack.c.b16 %v4366, %v4364
      %v4375 = vpack.c.b16 %v4367, %v4365
      %v4376 = vpack.c.b16 %v4368, %v4368
      %v4377 = vpack.c.b16 %v4369, %v4369
      %v4383 = vsel %vm626, %v4371, 0
      %v4386 = vsel %vm626, %v4373, 0
      %v4389 = vsel %vm626, %v4375, 0
      %v4392 = vsel %vm626, %v4377, 0
      %4394 = vmatprep.subr.bf16.mxu0 0
      %4395 = vmatpush1.bf16.msra.mxu0 %v573
      %4396 = vmatprep.subr.bf16.mxu0 0
      %4397 = vmatpush1.bf16.msra.mxu0 %v574
      %4398 = vmatprep.subr.bf16.mxu0 0
      %4399 = vmatpush1.bf16.msra.mxu0 %v575
      %4400 = vmatprep.subr.bf16.mxu0 0
      %4401 = vmatpush1.bf16.msra.mxu0 %v576
      %4402 = vmatprep.subr.bf16.mxu0 0
      %4403 = vmatpush1.bf16.msra.mxu0 %v577
      %4404 = vmatprep.subr.bf16.mxu0 0
      %4405 = vmatpush1.bf16.msra.mxu0 %v578
      %4406 = vmatprep.subr.bf16.mxu0 0
      %4407 = vmatpush1.bf16.msra.mxu0 %v579
      %4408 = vmatprep.subr.bf16.mxu0 0
      %4409 = vmatpush1.bf16.msra.mxu0 %v580
      %4410 = vmatprep.subr.bf16.mxu0 0
      %4411 = vmatpush1.bf16.msra.mxu0 %v581
      %4412 = vmatprep.subr.bf16.mxu0 0
      %4413 = vmatpush1.bf16.msra.mxu0 %v582
      %4414 = vmatprep.subr.bf16.mxu0 0
      %4415 = vmatpush1.bf16.msra.mxu0 %v583
      %4416 = vmatprep.subr.bf16.mxu0 0
      %4417 = vmatpush1.bf16.msra.mxu0 %v584
      %4418 = vmatprep.subr.bf16.mxu0 0
      %4419 = vmatpush1.bf16.msra.mxu0 %v641
      %4420 = vmatprep.subr.bf16.mxu0 0
      %4421 = vmatpush1.bf16.msra.mxu0 0
      %4422 = vmatprep.subr.bf16.mxu0 0
      %4423 = vmatpush1.bf16.msra.mxu0 0
      %4424 = vmatprep.subr.bf16.mxu0 0
      %4425 = vmatpush1.bf16.msra.mxu0 0
      %4426 = vmatprep.mubr.bf16.mxu0 %v4383
      %4427 = vmatmul.mubr.bf16.gmra.mrb[0].mxu0 %v4370
      %v4428 = vpop.f32.mrb[0].mxu0
      %v4429 = vadd.f32 0.0, %v4428
      %v4430 = vpop.f32.mrb[0].mxu0
      %v4431 = vpop.f32.mrb[0].mxu0
      %v4432 = vadd.f32 0.0, %v4431
      %v4433 = vpop.f32.mrb[0].mxu0
      %4434 = vmatprep.mubr.bf16.mxu0 %v4386
      %4435 = vmatmul.mubr.bf16.gmra.mrb[0].mxu0 %v4372
      %v4436 = vpop.f32.mrb[0].mxu0
      %v4437 = vadd.f32 0.0, %v4436
      %v4438 = vpop.f32.mrb[0].mxu0
      %v4439 = vpop.f32.mrb[0].mxu0
      %v4440 = vadd.f32 0.0, %v4439
      %v4441 = vpop.f32.mrb[0].mxu0
      %4442 = vmatprep.mubr.bf16.mxu0 %v4389
      %4443 = vmatmul.mubr.bf16.gmra.mrb[0].mxu0 %v4374
      %v4444 = vpop.f32.mrb[0].mxu0
      %v4445 = vadd.f32 0.0, %v4444
      %v4446 = vpop.f32.mrb[0].mxu0
      %v4447 = vpop.f32.mrb[0].mxu0
      %v4448 = vadd.f32 0.0, %v4447
      %v4449 = vpop.f32.mrb[0].mxu0
      %4450 = vmatprep.mubr.bf16.mxu0 %v4392
      %4451 = vmatmul.mubr.bf16.gmra.mrb[0].mxu0 %v4376
      %v4452 = vpop.f32.mrb[0].mxu0
      %v4453 = vadd.f32 0.0, %v4452
      %v4454 = vpop.f32.mrb[0].mxu0
      %v4455 = vpop.f32.mrb[0].mxu0
      %v4456 = vpop.f32.mrb[0].mxu0
      %4457 = vdwg.mxu0
      %s4458 = scalar_lea.vmem %s4, 240
      %v4459 = vld [vmem:[%s4458] sm:$0xff]
      %v4460 = vld [vmem:[%s4458 + $0x8] sm:$0x3]
      %v4462 = vsel %vm829, %v4429, 0
      %v4465 = vsel %vm829, %v4432, 0
      %v4468 = vsel %vm829, %v4437, 0
      %v4471 = vsel %vm829, %v4440, 0
      %v4474 = vsel %vm829, %v4445, 0
      %v4477 = vsel %vm829, %v4448, 0
      %v4480 = vsel %vm829, %v4453, 0
      %v4483 = vsel %vm639, %v4460, 0
      %4485 = vmatprep.subr.mxu0 0.0
      %4486 = vmatpush1.msra.mxu0 %v4459
      %4487 = vmatprep.subr.mxu0 0.0
      %4488 = vmatpush1.msra.mxu0 %v4483
      %4489 = vmatprep.subr.mxu0 0.0
      %4490 = vmatpush1.msra.mxu0 0.0
      %4491 = vmatprep.subr.mxu0 0.0
      %4492 = vmatpush1.msra.mxu0 0.0
      %4493 = vmatprep.subr.mxu0 0.0
      %4494 = vmatpush1.msra.mxu0 0.0
      %4495 = vmatprep.subr.mxu0 0.0
      %4496 = vmatpush1.msra.mxu0 0.0
      %4497 = vmatprep.subr.mxu0 0.0
      %4498 = vmatpush1.msra.mxu0 0.0
      %4499 = vmatprep.subr.mxu0 0.0
      %4500 = vmatpush1.msra.mxu0 0.0
      %4501 = vmatprep.subr.mxu0 0.0
      %4502 = vmatpush1.msra.mxu0 0.0
      %4503 = vmatprep.subr.mxu0 0.0
      %4504 = vmatpush1.msra.mxu0 0.0
      %4505 = vmatprep.subr.mxu0 0.0
      %4506 = vmatpush1.msra.mxu0 0.0
      %4507 = vmatprep.subr.mxu0 0.0
      %4508 = vmatpush1.msra.mxu0 0.0
      %4509 = vmatprep.subr.mxu0 0.0
      %4510 = vmatpush1.msra.mxu0 0.0
      %4511 = vmatprep.subr.mxu0 0.0
      %4512 = vmatpush1.msra.mxu0 0.0
      %4513 = vmatprep.subr.mxu0 0.0
      %4514 = vmatpush1.msra.mxu0 0.0
      %4515 = vmatprep.subr.mxu0 0.0
      %4516 = vmatpush1.msra.mxu0 0.0
      %4517 = vmatprep.subr.mxu0 0.0
      %4518 = vmatpush1.msra.mxu0 0.0
      %4519 = vmatprep.subr.mxu0 0.0
      %4520 = vmatpush1.msra.mxu0 0.0
      %4521 = vmatprep.subr.mxu0 0.0
      %4522 = vmatpush1.msra.mxu0 0.0
      %4523 = vmatprep.subr.mxu0 0.0
      %4524 = vmatpush1.msra.mxu0 0.0
      %4525 = vmatprep.subr.mxu0 0.0
      %4526 = vmatpush1.msra.mxu0 0.0
      %4527 = vmatprep.subr.mxu0 0.0
      %4528 = vmatpush1.msra.mxu0 0.0
      %4529 = vmatprep.subr.mxu0 0.0
      %4530 = vmatpush1.msra.mxu0 0.0
      %4531 = vmatprep.subr.mxu0 0.0
      %4532 = vmatpush1.msra.mxu0 0.0
      %4533 = vmatprep.subr.mxu0 0.0
      %4534 = vmatpush1.msra.mxu0 0.0
      %4535 = vmatprep.subr.mxu0 0.0
      %4536 = vmatpush1.msra.mxu0 0.0
      %4537 = vmatprep.subr.mxu0 0.0
      %4538 = vmatpush1.msra.mxu0 0.0
      %4539 = vmatprep.subr.mxu0 0.0
      %4540 = vmatpush1.msra.mxu0 0.0
      %4541 = vmatprep.subr.mxu0 0.0
      %4542 = vmatpush1.msra.mxu0 0.0
      %4543 = vmatprep.subr.mxu0 0.0
      %4544 = vmatpush1.msra.mxu0 0.0
      %4545 = vmatprep.subr.mxu0 0.0
      %4546 = vmatpush1.msra.mxu0 0.0
      %4547 = vmatprep.subr.mxu0 0.0
      %4548 = vmatpush1.msra.mxu0 0.0
      %4549 = vmatprep.mubr.f32.mxu0 0.0
      %4550 = vmatmul.mubr.f32.gmra.mrb[0].mxu0 %v4462
      %v4551 = vpop.f32.mrb[0].mxu0
      %v4552 = vadd.f32 0.0, %v4551
      %v4553 = vpop.f32.mrb[0].mxu0
      %4554 = vmatprep.mubr.f32.mxu0 0.0
      %4555 = vmatmul.mubr.f32.gmra.mrb[0].mxu0 %v4465
      %v4556 = vpop.f32.mrb[0].mxu0
      %v4557 = vadd.f32 0.0, %v4556
      %v4558 = vpop.f32.mrb[0].mxu0
      %4559 = vmatprep.mubr.f32.mxu0 0.0
      %4560 = vmatmul.mubr.f32.gmra.mrb[0].mxu0 %v4468
      %v4561 = vpop.f32.mrb[0].mxu0
      %v4562 = vadd.f32 0.0, %v4561
      %v4563 = vpop.f32.mrb[0].mxu0
      %4564 = vmatprep.mubr.f32.mxu0 0.0
      %4565 = vmatmul.mubr.f32.gmra.mrb[0].mxu0 %v4471
      %v4566 = vpop.f32.mrb[0].mxu0
      %v4567 = vadd.f32 0.0, %v4566
      %v4568 = vpop.f32.mrb[0].mxu0
      %4569 = vmatprep.mubr.f32.mxu0 0.0
      %4570 = vmatmul.mubr.f32.gmra.mrb[0].mxu0 %v4474
      %v4571 = vpop.f32.mrb[0].mxu0
      %v4572 = vadd.f32 0.0, %v4571
      %v4573 = vpop.f32.mrb[0].mxu0
      %4574 = vmatprep.mubr.f32.mxu0 0.0
      %4575 = vmatmul.mubr.f32.gmra.mrb[0].mxu0 %v4477
      %v4576 = vpop.f32.mrb[0].mxu0
      %v4577 = vadd.f32 0.0, %v4576
      %v4578 = vpop.f32.mrb[0].mxu0
      %4579 = vmatprep.mubr.f32.mxu0 0.0
      %4580 = vmatmul.mubr.f32.gmra.mrb[0].mxu0 %v4480
      %v4581 = vpop.f32.mrb[0].mxu0
      %v4582 = vadd.f32 0.0, %v4581
      %v4583 = vpop.f32.mrb[0].mxu0
      %4584 = vdwg.mxu0
      %v4585 = vadd.f32 %v4334, %v4552
      %v4586 = vadd.f32 %v4335, %v4557
      %v4587 = vadd.f32 %v4336, %v4562
      %v4588 = vadd.f32 %v4337, %v4567
      %v4589 = vadd.f32 %v4338, %v4572
      %v4590 = vadd.f32 %v4339, %v4577
      %v4591 = vadd.f32 %v4340, %v4582
      %v4592 = vld [vmem:[%s5] sm:$0x1]
      %v4594 = vlaneseq
      %v4595 = vshrl.u32 %v4594, 7
      %v4596 = vsub.s32 0, %v4595
      %v4597 = vrot.slane %v4592, %v4596
      %v4599 = vadd.f32 %v4585, %v4597
      %v4600 = vadd.f32 %v4586, %v4597
      %v4601 = vadd.f32 %v4587, %v4597
      %v4602 = vadd.f32 %v4588, %v4597
      %v4603 = vadd.f32 %v4589, %v4597
      %v4604 = vadd.f32 %v4590, %v4597
      %v4605 = vadd.f32 %v4591, %v4597
      %v4606 = vmax.f32 %v4599, 0.0
      %v4607 = vmax.f32 %v4600, 0.0
      %v4608 = vmax.f32 %v4601, 0.0
      %v4609 = vmax.f32 %v4602, 0.0
      %v4610 = vmax.f32 %v4603, 0.0
      %v4611 = vmax.f32 %v4604, 0.0
      %v4612 = vmax.f32 %v4605, 0.0
      %v4613 = vpack.c.bf16 %v4607, %v4606
      %v4614 = vpack.c.bf16 %v4609, %v4608
      %v4615 = vpack.c.bf16 %v4611, %v4610
      %v4616 = vpack.c.bf16 %v4612, %v4612
      %v4621 = vunpack.c.l.b16 %v4613
      %v4622 = vunpack.c.h.b16 %v4613
      %v4623 = vunpack.c.l.b16 %v4614
      %v4624 = vunpack.c.h.b16 %v4614
      %v4625 = vunpack.c.l.b16 %v4615
      %v4626 = vunpack.c.h.b16 %v4615
      %v4627 = vunpack.c.l.b16 %v4616
      %v4628 = vpack.c.b16 %v4621, %v4621
      %v4629 = vpack.c.b16 %v4622, %v4622
      %v4630 = vpack.c.b16 %v4623, %v4623
      %v4631 = vpack.c.b16 %v4624, %v4624
      %v4632 = vpack.c.b16 %v4625, %v4625
      %v4633 = vpack.c.b16 %v4626, %v4626
      %v4634 = vpack.c.b16 %v4627, %v4627
      %vm4642 = vcmask 158720
      %4643 = vst.msk [vmem:[%s251] sm:$0xf] %vm4642, %v4628
      %4644 = vst.msk [vmem:[%s251 + $0x4] sm:$0xf] %vm4642, %v4629
      %4645 = vst.msk [vmem:[%s251 + $0x8] sm:$0xf] %vm4642, %v4630
      %4646 = vst.msk [vmem:[%s251 + $0xc] sm:$0xf] %vm4642, %v4631
      %4647 = vst.msk [vmem:[%s251 + $0x10] sm:$0xf] %vm4642, %v4632
      %4648 = vst.msk [vmem:[%s251 + $0x14] sm:$0xf] %vm4642, %v4633
      %vm4649 = vcmask 155648
      %vm4650 = vsmask.f32 256
      %vm4651 = vmand %vm4649, %vm4650
      %v4652 = vld [vmem:[%s251 + $0x18] sm:$0x1]
      %v4653 = vsel %vm4651, %v4634, %v4652
      %4654 = vst [vmem:[%s251 + $0x18] sm:$0x1] %v4653
      %p4655 = scmp.lt.s32.totalorder %s17, 1
      %s4656 = scalar_select %p4655, %s17, 1
      %s4657 = smul.addr %s4656, 7
      %s4658 = smul.addr %s4657, 4
      %s4659 = scalar_lea.vmem %s6, %s4658
      // Predicated region
      $region45: #{clf_img_forward.2} parent=43 // pred_check
        %p4660 = pneg %p166
      $region46: #{clf_img_forward.2} parent=43 // pred_check_branch
        %4662 = sbr.rel (%p4660) target = $region48
      $region47: #{clf_img_forward.2} parent=43 // pred_region
        _
      $region48: #{clf_img_forward.2} parent=43 // pred_fallthru
        _
    $region44: #{clf_img_forward.2} parent=5 // pred_fallthru
      _
    %p4663 = scmp.le.s32.totalorder 2, %s12
    // Predicated region
    $region49: #{clf_img_forward.2} parent=5 // pred_check
      %p4664 = pneg %p4663
    $region50: #{clf_img_forward.2} parent=5 // pred_check_branch
      %4666 = sbr.rel (%p4664) target = $region52
    $region51: #{clf_img_forward.2} parent=5 // pred_region
      %s4667 = ssub.s32 %s12, 2
      // Predicated region
      $region53: #{clf_img_forward.2} parent=51 // pred_check
        %p4668 = pneg %p172
      $region54: #{clf_img_forward.2} parent=51 // pred_check_branch
        %4670 = sbr.rel (%p4668) target = $region56
      $region55: #{clf_img_forward.2} parent=51 // pred_region
        %p4671 = scmp.lt.s32.totalorder %s18, 1
        %s4672 = scalar_select %p4671, %s18, 1
        %s4673 = smul.addr %s4672, 7
        %s4674 = smul.addr %s4673, 4
        %s4675 = scalar_lea.vmem %s6, %s4674
      $region56: #{clf_img_forward.2} parent=51 // pred_fallthru
        _
    $region52: #{clf_img_forward.2} parent=5 // pred_fallthru
      _
  $region6: #{clf_img_forward.2} parent=0 // loop_footer
    %s16 = sadd.s32 1, %s12
  $region7: #{clf_img_forward.2} parent=0 // loop_footer_branch
    %11 = sbr.rel target = $region3
  $region8: #{clf_img_forward.2} parent=0 // loop_exit
    _

</llo_original>
